<compile_context>
chip_gen: v5e
topology: v5e:2x2
jax: 0.10.0
libtpu: 0.0.40
codegen_flags: <defaults>
</compile_context>

<pallas_src>
import jax
import jax.numpy as jnp
from jax import lax
from jax.experimental import pallas as pl
from jax.experimental.pallas import tpu as pltpu

B = 2                     # batch
H = W = 28                # MNIST spatial size (module hard-codes 32*26*26)
KH = KW = 3
TAPS = KH * KW            # 9
OC = 32
OH = OW = H - KH + 1      # 26
FLAT = OC * OH * OW       # 21632 (torch flatten size)
PFLAT = OH * W            # 728 = padded-flat conv row length (26 rows x 28 cols)
XPAD = 896                # 7*128 >= 786 needed by the largest tap shift
HID = 128
NCLS = 10
NCHUNK = 16               # conv channels handled per grid step
NSTEPS = OC // NCHUNK     # 2


# -----------------------------------------------------------------------------
# Fused kernel: per grid step k, compute conv+ReLU for 16 channels (lane-dense
# (B, 728) rows) and contract them against the matching collapsed fc weights into
# a partial (B, 10) logit block.  Partials are summed in the wrapper.
# -----------------------------------------------------------------------------
def fused_mnist_kernel(xs_ref, wc_ref, bc_ref, w12_ref, b12_ref, o_ref):
    # xs_ref : (9, B, 728)   VMEM  9 statically shifted copies of the flat image
    # wc_ref : (32, 9)       SMEM  conv weights (scalar reads)
    # bc_ref : (32,)         SMEM  conv bias
    # w12_ref: (16, 10, 728) VMEM  collapsed fc1@fc2 weights for this chunk
    # b12_ref: (1, 10)       VMEM  collapsed bias
    # o_ref  : (1, B, 10)          partial logits for this chunk
    k = pl.program_id(0)
    c0 = k * NCHUNK

    def channel_body(c, partial):
        ca = c0 + c
        # conv for channel ca: 9 scalar-broadcast MACs over (B, 728) slabs (VPU).
        # xs_ref is indexed per tap (no hoist) so live ranges stay bounded.
        conv_c = wc_ref[ca, 0] * xs_ref[0]
        for t in range(1, TAPS):
            conv_c = conv_c + wc_ref[ca, t] * xs_ref[t]
        conv_c = jnp.maximum(conv_c + bc_ref[ca], 0.0)            # bias + ReLU
        # (B, 728) x (10, 728)^T -> (B, 10): NT contraction over the lane dim (MXU).
        return partial + lax.dot_general(
            conv_c, w12_ref[c],
            dimension_numbers=(((1,), (1,)), ((), ())),
            preferred_element_type=jnp.float32)

    partial = lax.fori_loop(0, NCHUNK, channel_body,
                            jnp.zeros((B, NCLS), jnp.float32), unroll=True)

    # Fold the collapsed bias into the k == 0 partial only.
    bias_gate = jnp.where(k == 0, 1.0, 0.0)
    o_ref[0] = partial + bias_gate * b12_ref[...]


def mnist_fused(xs, wc, bc, w12, b12):
    flops = 2 * B * OC * PFLAT * (TAPS + NCLS)
    bytes_accessed = 4 * (OC * NCLS * PFLAT + TAPS * B * PFLAT
                          + OC * TAPS + OC + NCLS + NSTEPS * B * NCLS)
    partials = pl.pallas_call(
        fused_mnist_kernel,
        out_shape=jax.ShapeDtypeStruct((NSTEPS, B, NCLS), jnp.float32),
        grid_spec=pltpu.PrefetchScalarGridSpec(
            num_scalar_prefetch=0,
            grid=(NSTEPS,),
            in_specs=[
                pl.BlockSpec((TAPS, B, PFLAT), lambda k: (0, 0, 0)),      # xs (resident)
                pl.BlockSpec(memory_space=pltpu.MemorySpace.SMEM),        # conv w
                pl.BlockSpec(memory_space=pltpu.MemorySpace.SMEM),        # conv b
                pl.BlockSpec((NCHUNK, NCLS, PFLAT), lambda k: (k, 0, 0)),  # w12 chunk
                pl.BlockSpec((1, NCLS), lambda k: (0, 0)),                # b12
            ],
            out_specs=pl.BlockSpec((1, B, NCLS), lambda k: (k, 0, 0)),
        ),
        compiler_params=pltpu.CompilerParams(
            dimension_semantics=("parallel",)),                           # v7x 2-TC split
        cost_estimate=pl.CostEstimate(
            flops=flops, transcendentals=0, bytes_accessed=bytes_accessed),
    )(xs, wc, bc, w12, b12)
    return jnp.sum(partials, axis=0)                                      # (B, 10)


# -----------------------------------------------------------------------------
# One-time parameter prep (torch layout -> kernel streaming layout).
# -----------------------------------------------------------------------------
def prep_params(w_conv, b_conv, w1, b1, w2, b2):
    wc = w_conv.reshape(OC, TAPS)                         # (32, 9)   -> SMEM
    bc = b_conv.reshape(OC)                               # (32,)     -> SMEM
    # Collapse fc1 @ fc2 once (valid: the module has no nonlinearity between them).
    # Done at HIGHEST precision so the collapsed weights are f32-exact.
    w12 = jnp.dot(w1, w2, precision=lax.Precision.HIGHEST)          # (21632, 10)
    b12 = jnp.dot(b1, w2, precision=lax.Precision.HIGHEST) + b2     # (10,)
    # Re-layout rows from torch flatten order (c*676 + oh*26 + ow) to the kernel's
    # padded conv layout (c, oh*28 + ow).  The 2 padded columns per output row get
    # exactly-zero weight rows, cancelling the garbage the padded-flat conv puts
    # there (same invariant as before, now on w12).
    w12 = w12.reshape(OC, OH, OW, NCLS)
    w12 = jnp.pad(w12, ((0, 0), (0, 0), (0, W - OW), (0, 0)))
    w12 = w12.reshape(OC, PFLAT, NCLS)
    w12 = jnp.transpose(w12, (0, 2, 1))                   # (32, 10, 728) lane-dense
    return wc, bc, w12, b12.reshape(1, NCLS)


def prep_inputs(x_nchw):
    """Flatten, pad, and build the 9 statically shifted im2col rows: (9, B, 728)."""
    x_flat = x_nchw.reshape(B, H * W)
    x_flat = jnp.pad(x_flat, ((0, 0), (0, XPAD - H * W)))
    offs = [di * W + dj for di in range(KH) for dj in range(KW)]
    return jnp.stack([x_flat[:, o:o + PFLAT] for o in offs], axis=0)


@jax.jit
def mnist_forward(x_nchw, kparams):
    wc, bc, w12, b12 = kparams
    xs = prep_inputs(x_nchw)
    return mnist_fused(xs, wc, bc, w12, b12)              # (B, 10)


def reference_forward(x_nchw, params):
    """Un-collapsed reference (conv -> ReLU -> fc1 -> fc2) at HIGHEST precision."""
    w_conv, b_conv, w1, b1, w2, b2 = params
    conv = lax.conv_general_dilated(
        x_nchw, w_conv[:, None, :, :], window_strides=(1, 1), padding="VALID",
        dimension_numbers=("NCHW", "OIHW", "NCHW"),
        precision=lax.Precision.HIGHEST)
    conv = jnp.maximum(conv + b_conv.reshape(1, OC, 1, 1), 0.0)
    flat = conv.reshape(B, FLAT)
    h = jnp.dot(flat, w1, precision=lax.Precision.HIGHEST) + b1
    return jnp.dot(h, w2, precision=lax.Precision.HIGHEST) + b2


if __name__ == "__main__":
    key = jax.random.PRNGKey(0)
    kx, kw0, kb0, kw1, kb1, kw2, kb2 = jax.random.split(key, 7)

    x = jax.random.normal(kx, (B, 1, H, W), dtype=jnp.float32)

    # Deterministic synthetic parameters (torch shapes; Linear weights stored
    # pre-transposed as [in, out]).
    w_conv = jax.random.normal(kw0, (OC, KH, KW), jnp.float32) * 0.05
    b_conv = jax.random.normal(kb0, (OC,), jnp.float32) * 0.05
    w1 = jax.random.normal(kw1, (FLAT, HID), jnp.float32) * 0.05
    b1 = jax.random.normal(kb1, (HID,), jnp.float32) * 0.05
    w2 = jax.random.normal(kw2, (HID, NCLS), jnp.float32) * 0.05
    b2 = jax.random.normal(kb2, (NCLS,), jnp.float32) * 0.05
    params = (w_conv, b_conv, w1, b1, w2, b2)

    kparams = prep_params(*params)            # one-time layout / fc-collapse prep

    out = mnist_forward(x, kparams)
    out = jax.block_until_ready(out)

    ref = reference_forward(x, params)
    assert out.shape == (B, NCLS)
    err = jnp.max(jnp.abs(out - ref))
    # The fc1*fc2 collapse is exact in real arithmetic (~1e-5 here); the tolerance
    # budgets for TPU default-matmul-precision rounding over the 21632-long
    # contraction (a layout/permutation bug would show up as O(0.1..1) error).
    assert jnp.allclose(out, ref, rtol=1e-2, atol=1e-2), f"max abs err {err}"

    print("KERNEL_OK")
</pallas_src>

<mosaic_0001>
module attributes {stable_mosaic.version = 11 : i64} {
  func.func @fused_mnist_kernel(%arg0: i32, %arg1: memref<9x2x728xf32, #tpu.memory_space<vmem>>, %arg2: memref<32x9xf32, #tpu.memory_space<smem>>, %arg3: memref<32xf32, #tpu.memory_space<smem>>, %arg4: memref<16x10x728xf32, #tpu.memory_space<vmem>>, %arg5: memref<1x10xf32, #tpu.memory_space<vmem>>, %arg6: memref<1x2x10xf32, #tpu.memory_space<vmem>>) attributes {dimension_semantics = [#tpu.dimension_semantics<parallel>], iteration_bounds = array<i64: 2>, scalar_prefetch = 0 : i64, scratch_operands = 0 : i64, tpu.core_type = #tpu.core_type<tc>, window_params = [{pipeline_mode = #tpu.pipeline_mode<synchronous>, transform_indices = @transform_0, window_bounds = array<i64: 9, 2, 728>}, {transform_indices = @transform_1, window_bounds = array<i64: 32, 9>}, {transform_indices = @transform_2, window_bounds = array<i64: 32>}, {transform_indices = @transform_3, window_bounds = array<i64: 16, 10, 728>}, {pipeline_mode = #tpu.pipeline_mode<synchronous>, transform_indices = @transform_4, window_bounds = array<i64: 1, 10>}, {transform_indices = @transform_5, window_bounds = array<i64: 1, 2, 10>}]} {
    %c16_i32 = arith.constant 16 : i32
    %0 = arith.muli %arg0, %c16_i32 : i32
    %cst = arith.constant 0.000000e+00 : f32
    %1 = vector.broadcast %cst : f32 to vector<2x10xf32>
    %c0_i32 = arith.constant 0 : i32
    %2 = arith.addi %0, %c0_i32 : i32
    %3 = arith.index_cast %2 : i32 to index
    %c0 = arith.constant 0 : index
    %4 = memref.load %arg2[%3, %c0] : memref<32x9xf32, #tpu.memory_space<smem>>
    %c0_0 = arith.constant 0 : index
    %c0_1 = arith.constant 0 : index
    %c0_2 = arith.constant 0 : index
    %5 = vector.load %arg1[%c0_0, %c0_1, %c0_2] : memref<9x2x728xf32, #tpu.memory_space<vmem>>, vector<1x2x728xf32>
    %6 = vector.shape_cast %5 : vector<1x2x728xf32> to vector<2x728xf32>
    %7 = vector.broadcast %4 : f32 to vector<2x728xf32>
    %8 = arith.mulf %7, %6 : vector<2x728xf32>
    %9 = arith.index_cast %2 : i32 to index
    %c1 = arith.constant 1 : index
    %10 = memref.load %arg2[%9, %c1] : memref<32x9xf32, #tpu.memory_space<smem>>
    %c1_3 = arith.constant 1 : index
    %c0_4 = arith.constant 0 : index
    %c0_5 = arith.constant 0 : index
    %11 = vector.load %arg1[%c1_3, %c0_4, %c0_5] : memref<9x2x728xf32, #tpu.memory_space<vmem>>, vector<1x2x728xf32>
    %12 = vector.shape_cast %11 : vector<1x2x728xf32> to vector<2x728xf32>
    %13 = vector.broadcast %10 : f32 to vector<2x728xf32>
    %14 = arith.mulf %13, %12 : vector<2x728xf32>
    %15 = arith.addf %8, %14 : vector<2x728xf32>
    %16 = arith.index_cast %2 : i32 to index
    %c2 = arith.constant 2 : index
    %17 = memref.load %arg2[%16, %c2] : memref<32x9xf32, #tpu.memory_space<smem>>
    %c2_6 = arith.constant 2 : index
    %c0_7 = arith.constant 0 : index
    %c0_8 = arith.constant 0 : index
    %18 = vector.load %arg1[%c2_6, %c0_7, %c0_8] : memref<9x2x728xf32, #tpu.memory_space<vmem>>, vector<1x2x728xf32>
    %19 = vector.shape_cast %18 : vector<1x2x728xf32> to vector<2x728xf32>
    %20 = vector.broadcast %17 : f32 to vector<2x728xf32>
    %21 = arith.mulf %20, %19 : vector<2x728xf32>
    %22 = arith.addf %15, %21 : vector<2x728xf32>
    %23 = arith.index_cast %2 : i32 to index
    %c3 = arith.constant 3 : index
    %24 = memref.load %arg2[%23, %c3] : memref<32x9xf32, #tpu.memory_space<smem>>
    %c3_9 = arith.constant 3 : index
    %c0_10 = arith.constant 0 : index
    %c0_11 = arith.constant 0 : index
    %25 = vector.load %arg1[%c3_9, %c0_10, %c0_11] : memref<9x2x728xf32, #tpu.memory_space<vmem>>, vector<1x2x728xf32>
    %26 = vector.shape_cast %25 : vector<1x2x728xf32> to vector<2x728xf32>
    %27 = vector.broadcast %24 : f32 to vector<2x728xf32>
    %28 = arith.mulf %27, %26 : vector<2x728xf32>
    %29 = arith.addf %22, %28 : vector<2x728xf32>
    %30 = arith.index_cast %2 : i32 to index
    %c4 = arith.constant 4 : index
    %31 = memref.load %arg2[%30, %c4] : memref<32x9xf32, #tpu.memory_space<smem>>
    %c4_12 = arith.constant 4 : index
    %c0_13 = arith.constant 0 : index
    %c0_14 = arith.constant 0 : index
    %32 = vector.load %arg1[%c4_12, %c0_13, %c0_14] : memref<9x2x728xf32, #tpu.memory_space<vmem>>, vector<1x2x728xf32>
    %33 = vector.shape_cast %32 : vector<1x2x728xf32> to vector<2x728xf32>
    %34 = vector.broadcast %31 : f32 to vector<2x728xf32>
    %35 = arith.mulf %34, %33 : vector<2x728xf32>
    %36 = arith.addf %29, %35 : vector<2x728xf32>
    %37 = arith.index_cast %2 : i32 to index
    %c5 = arith.constant 5 : index
    %38 = memref.load %arg2[%37, %c5] : memref<32x9xf32, #tpu.memory_space<smem>>
    %c5_15 = arith.constant 5 : index
    %c0_16 = arith.constant 0 : index
    %c0_17 = arith.constant 0 : index
    %39 = vector.load %arg1[%c5_15, %c0_16, %c0_17] : memref<9x2x728xf32, #tpu.memory_space<vmem>>, vector<1x2x728xf32>
    %40 = vector.shape_cast %39 : vector<1x2x728xf32> to vector<2x728xf32>
    %41 = vector.broadcast %38 : f32 to vector<2x728xf32>
    %42 = arith.mulf %41, %40 : vector<2x728xf32>
    %43 = arith.addf %36, %42 : vector<2x728xf32>
    %44 = arith.index_cast %2 : i32 to index
    %c6 = arith.constant 6 : index
    %45 = memref.load %arg2[%44, %c6] : memref<32x9xf32, #tpu.memory_space<smem>>
    %c6_18 = arith.constant 6 : index
    %c0_19 = arith.constant 0 : index
    %c0_20 = arith.constant 0 : index
    %46 = vector.load %arg1[%c6_18, %c0_19, %c0_20] : memref<9x2x728xf32, #tpu.memory_space<vmem>>, vector<1x2x728xf32>
    %47 = vector.shape_cast %46 : vector<1x2x728xf32> to vector<2x728xf32>
    %48 = vector.broadcast %45 : f32 to vector<2x728xf32>
    %49 = arith.mulf %48, %47 : vector<2x728xf32>
    %50 = arith.addf %43, %49 : vector<2x728xf32>
    %51 = arith.index_cast %2 : i32 to index
    %c7 = arith.constant 7 : index
    %52 = memref.load %arg2[%51, %c7] : memref<32x9xf32, #tpu.memory_space<smem>>
    %c7_21 = arith.constant 7 : index
    %c0_22 = arith.constant 0 : index
    %c0_23 = arith.constant 0 : index
    %53 = vector.load %arg1[%c7_21, %c0_22, %c0_23] : memref<9x2x728xf32, #tpu.memory_space<vmem>>, vector<1x2x728xf32>
    %54 = vector.shape_cast %53 : vector<1x2x728xf32> to vector<2x728xf32>
    %55 = vector.broadcast %52 : f32 to vector<2x728xf32>
    %56 = arith.mulf %55, %54 : vector<2x728xf32>
    %57 = arith.addf %50, %56 : vector<2x728xf32>
    %58 = arith.index_cast %2 : i32 to index
    %c8 = arith.constant 8 : index
    %59 = memref.load %arg2[%58, %c8] : memref<32x9xf32, #tpu.memory_space<smem>>
    %c8_24 = arith.constant 8 : index
    %c0_25 = arith.constant 0 : index
    %c0_26 = arith.constant 0 : index
    %60 = vector.load %arg1[%c8_24, %c0_25, %c0_26] : memref<9x2x728xf32, #tpu.memory_space<vmem>>, vector<1x2x728xf32>
    %61 = vector.shape_cast %60 : vector<1x2x728xf32> to vector<2x728xf32>
    %62 = vector.broadcast %59 : f32 to vector<2x728xf32>
    %63 = arith.mulf %62, %61 : vector<2x728xf32>
    %64 = arith.addf %57, %63 : vector<2x728xf32>
    %65 = arith.index_cast %2 : i32 to index
    %66 = memref.load %arg3[%65] : memref<32xf32, #tpu.memory_space<smem>>
    %67 = vector.broadcast %66 : f32 to vector<2x728xf32>
    %68 = arith.addf %64, %67 : vector<2x728xf32>
    %cst_27 = arith.constant 0.000000e+00 : f32
    %69 = vector.broadcast %cst_27 : f32 to vector<2x728xf32>
    %70 = arith.maximumf %68, %69 : vector<2x728xf32>
    %71 = arith.index_cast %c0_i32 : i32 to index
    %c0_28 = arith.constant 0 : index
    %c0_29 = arith.constant 0 : index
    %72 = vector.load %arg4[%71, %c0_28, %c0_29] : memref<16x10x728xf32, #tpu.memory_space<vmem>>, vector<1x10x728xf32>
    %73 = vector.shape_cast %72 : vector<1x10x728xf32> to vector<10x728xf32>
    %cst_30 = arith.constant dense<0.000000e+00> : vector<2x10xf32>
    %74 = tpu.matmul %70, %73, %cst_30 {dimension_numbers = #tpu.dot_dimension_numbers<[1], [1], [0], [0], [0, 0, 1, 0], [], []>} : vector<2x728xf32>, vector<10x728xf32>, vector<2x10xf32> -> vector<2x10xf32>
    %75 = arith.addf %1, %74 : vector<2x10xf32>
    %c1_i32 = arith.constant 1 : i32
    %76 = arith.addi %0, %c1_i32 : i32
    %77 = arith.index_cast %76 : i32 to index
    %c0_31 = arith.constant 0 : index
    %78 = memref.load %arg2[%77, %c0_31] : memref<32x9xf32, #tpu.memory_space<smem>>
    %c0_32 = arith.constant 0 : index
    %c0_33 = arith.constant 0 : index
    %c0_34 = arith.constant 0 : index
    %79 = vector.load %arg1[%c0_32, %c0_33, %c0_34] : memref<9x2x728xf32, #tpu.memory_space<vmem>>, vector<1x2x728xf32>
    %80 = vector.shape_cast %79 : vector<1x2x728xf32> to vector<2x728xf32>
    %81 = vector.broadcast %78 : f32 to vector<2x728xf32>
    %82 = arith.mulf %81, %80 : vector<2x728xf32>
    %83 = arith.index_cast %76 : i32 to index
    %c1_35 = arith.constant 1 : index
    %84 = memref.load %arg2[%83, %c1_35] : memref<32x9xf32, #tpu.memory_space<smem>>
    %c1_36 = arith.constant 1 : index
    %c0_37 = arith.constant 0 : index
    %c0_38 = arith.constant 0 : index
    %85 = vector.load %arg1[%c1_36, %c0_37, %c0_38] : memref<9x2x728xf32, #tpu.memory_space<vmem>>, vector<1x2x728xf32>
    %86 = vector.shape_cast %85 : vector<1x2x728xf32> to vector<2x728xf32>
    %87 = vector.broadcast %84 : f32 to vector<2x728xf32>
    %88 = arith.mulf %87, %86 : vector<2x728xf32>
    %89 = arith.addf %82, %88 : vector<2x728xf32>
    %90 = arith.index_cast %76 : i32 to index
    %c2_39 = arith.constant 2 : index
    %91 = memref.load %arg2[%90, %c2_39] : memref<32x9xf32, #tpu.memory_space<smem>>
    %c2_40 = arith.constant 2 : index
    %c0_41 = arith.constant 0 : index
    %c0_42 = arith.constant 0 : index
    %92 = vector.load %arg1[%c2_40, %c0_41, %c0_42] : memref<9x2x728xf32, #tpu.memory_space<vmem>>, vector<1x2x728xf32>
    %93 = vector.shape_cast %92 : vector<1x2x728xf32> to vector<2x728xf32>
    %94 = vector.broadcast %91 : f32 to vector<2x728xf32>
    %95 = arith.mulf %94, %93 : vector<2x728xf32>
    %96 = arith.addf %89, %95 : vector<2x728xf32>
    %97 = arith.index_cast %76 : i32 to index
    %c3_43 = arith.constant 3 : index
    %98 = memref.load %arg2[%97, %c3_43] : memref<32x9xf32, #tpu.memory_space<smem>>
    %c3_44 = arith.constant 3 : index
    %c0_45 = arith.constant 0 : index
    %c0_46 = arith.constant 0 : index
    %99 = vector.load %arg1[%c3_44, %c0_45, %c0_46] : memref<9x2x728xf32, #tpu.memory_space<vmem>>, vector<1x2x728xf32>
    %100 = vector.shape_cast %99 : vector<1x2x728xf32> to vector<2x728xf32>
    %101 = vector.broadcast %98 : f32 to vector<2x728xf32>
    %102 = arith.mulf %101, %100 : vector<2x728xf32>
    %103 = arith.addf %96, %102 : vector<2x728xf32>
    %104 = arith.index_cast %76 : i32 to index
    %c4_47 = arith.constant 4 : index
    %105 = memref.load %arg2[%104, %c4_47] : memref<32x9xf32, #tpu.memory_space<smem>>
    %c4_48 = arith.constant 4 : index
    %c0_49 = arith.constant 0 : index
    %c0_50 = arith.constant 0 : index
    %106 = vector.load %arg1[%c4_48, %c0_49, %c0_50] : memref<9x2x728xf32, #tpu.memory_space<vmem>>, vector<1x2x728xf32>
    %107 = vector.shape_cast %106 : vector<1x2x728xf32> to vector<2x728xf32>
    %108 = vector.broadcast %105 : f32 to vector<2x728xf32>
    %109 = arith.mulf %108, %107 : vector<2x728xf32>
    %110 = arith.addf %103, %109 : vector<2x728xf32>
    %111 = arith.index_cast %76 : i32 to index
    %c5_51 = arith.constant 5 : index
    %112 = memref.load %arg2[%111, %c5_51] : memref<32x9xf32, #tpu.memory_space<smem>>
    %c5_52 = arith.constant 5 : index
    %c0_53 = arith.constant 0 : index
    %c0_54 = arith.constant 0 : index
    %113 = vector.load %arg1[%c5_52, %c0_53, %c0_54] : memref<9x2x728xf32, #tpu.memory_space<vmem>>, vector<1x2x728xf32>
    %114 = vector.shape_cast %113 : vector<1x2x728xf32> to vector<2x728xf32>
    %115 = vector.broadcast %112 : f32 to vector<2x728xf32>
    %116 = arith.mulf %115, %114 : vector<2x728xf32>
    %117 = arith.addf %110, %116 : vector<2x728xf32>
    %118 = arith.index_cast %76 : i32 to index
    %c6_55 = arith.constant 6 : index
    %119 = memref.load %arg2[%118, %c6_55] : memref<32x9xf32, #tpu.memory_space<smem>>
    %c6_56 = arith.constant 6 : index
    %c0_57 = arith.constant 0 : index
    %c0_58 = arith.constant 0 : index
    %120 = vector.load %arg1[%c6_56, %c0_57, %c0_58] : memref<9x2x728xf32, #tpu.memory_space<vmem>>, vector<1x2x728xf32>
    %121 = vector.shape_cast %120 : vector<1x2x728xf32> to vector<2x728xf32>
    %122 = vector.broadcast %119 : f32 to vector<2x728xf32>
    %123 = arith.mulf %122, %121 : vector<2x728xf32>
    %124 = arith.addf %117, %123 : vector<2x728xf32>
    %125 = arith.index_cast %76 : i32 to index
    %c7_59 = arith.constant 7 : index
    %126 = memref.load %arg2[%125, %c7_59] : memref<32x9xf32, #tpu.memory_space<smem>>
    %c7_60 = arith.constant 7 : index
    %c0_61 = arith.constant 0 : index
    %c0_62 = arith.constant 0 : index
    %127 = vector.load %arg1[%c7_60, %c0_61, %c0_62] : memref<9x2x728xf32, #tpu.memory_space<vmem>>, vector<1x2x728xf32>
    %128 = vector.shape_cast %127 : vector<1x2x728xf32> to vector<2x728xf32>
    %129 = vector.broadcast %126 : f32 to vector<2x728xf32>
    %130 = arith.mulf %129, %128 : vector<2x728xf32>
    %131 = arith.addf %124, %130 : vector<2x728xf32>
    %132 = arith.index_cast %76 : i32 to index
    %c8_63 = arith.constant 8 : index
    %133 = memref.load %arg2[%132, %c8_63] : memref<32x9xf32, #tpu.memory_space<smem>>
    %c8_64 = arith.constant 8 : index
    %c0_65 = arith.constant 0 : index
    %c0_66 = arith.constant 0 : index
    %134 = vector.load %arg1[%c8_64, %c0_65, %c0_66] : memref<9x2x728xf32, #tpu.memory_space<vmem>>, vector<1x2x728xf32>
    %135 = vector.shape_cast %134 : vector<1x2x728xf32> to vector<2x728xf32>
    %136 = vector.broadcast %133 : f32 to vector<2x728xf32>
    %137 = arith.mulf %136, %135 : vector<2x728xf32>
    %138 = arith.addf %131, %137 : vector<2x728xf32>
    %139 = arith.index_cast %76 : i32 to index
    %140 = memref.load %arg3[%139] : memref<32xf32, #tpu.memory_space<smem>>
    %141 = vector.broadcast %140 : f32 to vector<2x728xf32>
    %142 = arith.addf %138, %141 : vector<2x728xf32>
    %cst_67 = arith.constant 0.000000e+00 : f32
    %143 = vector.broadcast %cst_67 : f32 to vector<2x728xf32>
    %144 = arith.maximumf %142, %143 : vector<2x728xf32>
    %145 = arith.index_cast %c1_i32 : i32 to index
    %c0_68 = arith.constant 0 : index
    %c0_69 = arith.constant 0 : index
    %146 = vector.load %arg4[%145, %c0_68, %c0_69] : memref<16x10x728xf32, #tpu.memory_space<vmem>>, vector<1x10x728xf32>
    %147 = vector.shape_cast %146 : vector<1x10x728xf32> to vector<10x728xf32>
    %cst_70 = arith.constant dense<0.000000e+00> : vector<2x10xf32>
    %148 = tpu.matmul %144, %147, %cst_70 {dimension_numbers = #tpu.dot_dimension_numbers<[1], [1], [0], [0], [0, 0, 1, 0], [], []>} : vector<2x728xf32>, vector<10x728xf32>, vector<2x10xf32> -> vector<2x10xf32>
    %149 = arith.addf %75, %148 : vector<2x10xf32>
    %c2_i32 = arith.constant 2 : i32
    %150 = arith.addi %0, %c2_i32 : i32
    %151 = arith.index_cast %150 : i32 to index
    %c0_71 = arith.constant 0 : index
    %152 = memref.load %arg2[%151, %c0_71] : memref<32x9xf32, #tpu.memory_space<smem>>
    %c0_72 = arith.constant 0 : index
    %c0_73 = arith.constant 0 : index
    %c0_74 = arith.constant 0 : index
    %153 = vector.load %arg1[%c0_72, %c0_73, %c0_74] : memref<9x2x728xf32, #tpu.memory_space<vmem>>, vector<1x2x728xf32>
    %154 = vector.shape_cast %153 : vector<1x2x728xf32> to vector<2x728xf32>
    %155 = vector.broadcast %152 : f32 to vector<2x728xf32>
    %156 = arith.mulf %155, %154 : vector<2x728xf32>
    %157 = arith.index_cast %150 : i32 to index
    %c1_75 = arith.constant 1 : index
    %158 = memref.load %arg2[%157, %c1_75] : memref<32x9xf32, #tpu.memory_space<smem>>
    %c1_76 = arith.constant 1 : index
    %c0_77 = arith.constant 0 : index
    %c0_78 = arith.constant 0 : index
    %159 = vector.load %arg1[%c1_76, %c0_77, %c0_78] : memref<9x2x728xf32, #tpu.memory_space<vmem>>, vector<1x2x728xf32>
    %160 = vector.shape_cast %159 : vector<1x2x728xf32> to vector<2x728xf32>
    %161 = vector.broadcast %158 : f32 to vector<2x728xf32>
    %162 = arith.mulf %161, %160 : vector<2x728xf32>
    %163 = arith.addf %156, %162 : vector<2x728xf32>
    %164 = arith.index_cast %150 : i32 to index
    %c2_79 = arith.constant 2 : index
    %165 = memref.load %arg2[%164, %c2_79] : memref<32x9xf32, #tpu.memory_space<smem>>
    %c2_80 = arith.constant 2 : index
    %c0_81 = arith.constant 0 : index
    %c0_82 = arith.constant 0 : index
    %166 = vector.load %arg1[%c2_80, %c0_81, %c0_82] : memref<9x2x728xf32, #tpu.memory_space<vmem>>, vector<1x2x728xf32>
    %167 = vector.shape_cast %166 : vector<1x2x728xf32> to vector<2x728xf32>
    %168 = vector.broadcast %165 : f32 to vector<2x728xf32>
    %169 = arith.mulf %168, %167 : vector<2x728xf32>
    %170 = arith.addf %163, %169 : vector<2x728xf32>
    %171 = arith.index_cast %150 : i32 to index
    %c3_83 = arith.constant 3 : index
    %172 = memref.load %arg2[%171, %c3_83] : memref<32x9xf32, #tpu.memory_space<smem>>
    %c3_84 = arith.constant 3 : index
    %c0_85 = arith.constant 0 : index
    %c0_86 = arith.constant 0 : index
    %173 = vector.load %arg1[%c3_84, %c0_85, %c0_86] : memref<9x2x728xf32, #tpu.memory_space<vmem>>, vector<1x2x728xf32>
    %174 = vector.shape_cast %173 : vector<1x2x728xf32> to vector<2x728xf32>
    %175 = vector.broadcast %172 : f32 to vector<2x728xf32>
    %176 = arith.mulf %175, %174 : vector<2x728xf32>
    %177 = arith.addf %170, %176 : vector<2x728xf32>
    %178 = arith.index_cast %150 : i32 to index
    %c4_87 = arith.constant 4 : index
    %179 = memref.load %arg2[%178, %c4_87] : memref<32x9xf32, #tpu.memory_space<smem>>
    %c4_88 = arith.constant 4 : index
    %c0_89 = arith.constant 0 : index
    %c0_90 = arith.constant 0 : index
    %180 = vector.load %arg1[%c4_88, %c0_89, %c0_90] : memref<9x2x728xf32, #tpu.memory_space<vmem>>, vector<1x2x728xf32>
    %181 = vector.shape_cast %180 : vector<1x2x728xf32> to vector<2x728xf32>
    %182 = vector.broadcast %179 : f32 to vector<2x728xf32>
    %183 = arith.mulf %182, %181 : vector<2x728xf32>
    %184 = arith.addf %177, %183 : vector<2x728xf32>
    %185 = arith.index_cast %150 : i32 to index
    %c5_91 = arith.constant 5 : index
    %186 = memref.load %arg2[%185, %c5_91] : memref<32x9xf32, #tpu.memory_space<smem>>
    %c5_92 = arith.constant 5 : index
    %c0_93 = arith.constant 0 : index
    %c0_94 = arith.constant 0 : index
    %187 = vector.load %arg1[%c5_92, %c0_93, %c0_94] : memref<9x2x728xf32, #tpu.memory_space<vmem>>, vector<1x2x728xf32>
    %188 = vector.shape_cast %187 : vector<1x2x728xf32> to vector<2x728xf32>
    %189 = vector.broadcast %186 : f32 to vector<2x728xf32>
    %190 = arith.mulf %189, %188 : vector<2x728xf32>
    %191 = arith.addf %184, %190 : vector<2x728xf32>
    %192 = arith.index_cast %150 : i32 to index
    %c6_95 = arith.constant 6 : index
    %193 = memref.load %arg2[%192, %c6_95] : memref<32x9xf32, #tpu.memory_space<smem>>
    %c6_96 = arith.constant 6 : index
    %c0_97 = arith.constant 0 : index
    %c0_98 = arith.constant 0 : index
    %194 = vector.load %arg1[%c6_96, %c0_97, %c0_98] : memref<9x2x728xf32, #tpu.memory_space<vmem>>, vector<1x2x728xf32>
    %195 = vector.shape_cast %194 : vector<1x2x728xf32> to vector<2x728xf32>
    %196 = vector.broadcast %193 : f32 to vector<2x728xf32>
    %197 = arith.mulf %196, %195 : vector<2x728xf32>
    %198 = arith.addf %191, %197 : vector<2x728xf32>
    %199 = arith.index_cast %150 : i32 to index
    %c7_99 = arith.constant 7 : index
    %200 = memref.load %arg2[%199, %c7_99] : memref<32x9xf32, #tpu.memory_space<smem>>
    %c7_100 = arith.constant 7 : index
    %c0_101 = arith.constant 0 : index
    %c0_102 = arith.constant 0 : index
    %201 = vector.load %arg1[%c7_100, %c0_101, %c0_102] : memref<9x2x728xf32, #tpu.memory_space<vmem>>, vector<1x2x728xf32>
    %202 = vector.shape_cast %201 : vector<1x2x728xf32> to vector<2x728xf32>
    %203 = vector.broadcast %200 : f32 to vector<2x728xf32>
    %204 = arith.mulf %203, %202 : vector<2x728xf32>
    %205 = arith.addf %198, %204 : vector<2x728xf32>
    %206 = arith.index_cast %150 : i32 to index
    %c8_103 = arith.constant 8 : index
    %207 = memref.load %arg2[%206, %c8_103] : memref<32x9xf32, #tpu.memory_space<smem>>
    %c8_104 = arith.constant 8 : index
    %c0_105 = arith.constant 0 : index
    %c0_106 = arith.constant 0 : index
    %208 = vector.load %arg1[%c8_104, %c0_105, %c0_106] : memref<9x2x728xf32, #tpu.memory_space<vmem>>, vector<1x2x728xf32>
    %209 = vector.shape_cast %208 : vector<1x2x728xf32> to vector<2x728xf32>
    %210 = vector.broadcast %207 : f32 to vector<2x728xf32>
    %211 = arith.mulf %210, %209 : vector<2x728xf32>
    %212 = arith.addf %205, %211 : vector<2x728xf32>
    %213 = arith.index_cast %150 : i32 to index
    %214 = memref.load %arg3[%213] : memref<32xf32, #tpu.memory_space<smem>>
    %215 = vector.broadcast %214 : f32 to vector<2x728xf32>
    %216 = arith.addf %212, %215 : vector<2x728xf32>
    %cst_107 = arith.constant 0.000000e+00 : f32
    %217 = vector.broadcast %cst_107 : f32 to vector<2x728xf32>
    %218 = arith.maximumf %216, %217 : vector<2x728xf32>
    %219 = arith.index_cast %c2_i32 : i32 to index
    %c0_108 = arith.constant 0 : index
    %c0_109 = arith.constant 0 : index
    %220 = vector.load %arg4[%219, %c0_108, %c0_109] : memref<16x10x728xf32, #tpu.memory_space<vmem>>, vector<1x10x728xf32>
    %221 = vector.shape_cast %220 : vector<1x10x728xf32> to vector<10x728xf32>
    %cst_110 = arith.constant dense<0.000000e+00> : vector<2x10xf32>
    %222 = tpu.matmul %218, %221, %cst_110 {dimension_numbers = #tpu.dot_dimension_numbers<[1], [1], [0], [0], [0, 0, 1, 0], [], []>} : vector<2x728xf32>, vector<10x728xf32>, vector<2x10xf32> -> vector<2x10xf32>
    %223 = arith.addf %149, %222 : vector<2x10xf32>
    %c3_i32 = arith.constant 3 : i32
    %224 = arith.addi %0, %c3_i32 : i32
    %225 = arith.index_cast %224 : i32 to index
    %c0_111 = arith.constant 0 : index
    %226 = memref.load %arg2[%225, %c0_111] : memref<32x9xf32, #tpu.memory_space<smem>>
    %c0_112 = arith.constant 0 : index
    %c0_113 = arith.constant 0 : index
    %c0_114 = arith.constant 0 : index
    %227 = vector.load %arg1[%c0_112, %c0_113, %c0_114] : memref<9x2x728xf32, #tpu.memory_space<vmem>>, vector<1x2x728xf32>
    %228 = vector.shape_cast %227 : vector<1x2x728xf32> to vector<2x728xf32>
    %229 = vector.broadcast %226 : f32 to vector<2x728xf32>
    %230 = arith.mulf %229, %228 : vector<2x728xf32>
    %231 = arith.index_cast %224 : i32 to index
    %c1_115 = arith.constant 1 : index
    %232 = memref.load %arg2[%231, %c1_115] : memref<32x9xf32, #tpu.memory_space<smem>>
    %c1_116 = arith.constant 1 : index
    %c0_117 = arith.constant 0 : index
    %c0_118 = arith.constant 0 : index
    %233 = vector.load %arg1[%c1_116, %c0_117, %c0_118] : memref<9x2x728xf32, #tpu.memory_space<vmem>>, vector<1x2x728xf32>
    %234 = vector.shape_cast %233 : vector<1x2x728xf32> to vector<2x728xf32>
    %235 = vector.broadcast %232 : f32 to vector<2x728xf32>
    %236 = arith.mulf %235, %234 : vector<2x728xf32>
    %237 = arith.addf %230, %236 : vector<2x728xf32>
    %238 = arith.index_cast %224 : i32 to index
    %c2_119 = arith.constant 2 : index
    %239 = memref.load %arg2[%238, %c2_119] : memref<32x9xf32, #tpu.memory_space<smem>>
    %c2_120 = arith.constant 2 : index
    %c0_121 = arith.constant 0 : index
    %c0_122 = arith.constant 0 : index
    %240 = vector.load %arg1[%c2_120, %c0_121, %c0_122] : memref<9x2x728xf32, #tpu.memory_space<vmem>>, vector<1x2x728xf32>
    %241 = vector.shape_cast %240 : vector<1x2x728xf32> to vector<2x728xf32>
    %242 = vector.broadcast %239 : f32 to vector<2x728xf32>
    %243 = arith.mulf %242, %241 : vector<2x728xf32>
    %244 = arith.addf %237, %243 : vector<2x728xf32>
    %245 = arith.index_cast %224 : i32 to index
    %c3_123 = arith.constant 3 : index
    %246 = memref.load %arg2[%245, %c3_123] : memref<32x9xf32, #tpu.memory_space<smem>>
    %c3_124 = arith.constant 3 : index
    %c0_125 = arith.constant 0 : index
    %c0_126 = arith.constant 0 : index
    %247 = vector.load %arg1[%c3_124, %c0_125, %c0_126] : memref<9x2x728xf32, #tpu.memory_space<vmem>>, vector<1x2x728xf32>
    %248 = vector.shape_cast %247 : vector<1x2x728xf32> to vector<2x728xf32>
    %249 = vector.broadcast %246 : f32 to vector<2x728xf32>
    %250 = arith.mulf %249, %248 : vector<2x728xf32>
    %251 = arith.addf %244, %250 : vector<2x728xf32>
    %252 = arith.index_cast %224 : i32 to index
    %c4_127 = arith.constant 4 : index
    %253 = memref.load %arg2[%252, %c4_127] : memref<32x9xf32, #tpu.memory_space<smem>>
    %c4_128 = arith.constant 4 : index
    %c0_129 = arith.constant 0 : index
    %c0_130 = arith.constant 0 : index
    %254 = vector.load %arg1[%c4_128, %c0_129, %c0_130] : memref<9x2x728xf32, #tpu.memory_space<vmem>>, vector<1x2x728xf32>
    %255 = vector.shape_cast %254 : vector<1x2x728xf32> to vector<2x728xf32>
    %256 = vector.broadcast %253 : f32 to vector<2x728xf32>
    %257 = arith.mulf %256, %255 : vector<2x728xf32>
    %258 = arith.addf %251, %257 : vector<2x728xf32>
    %259 = arith.index_cast %224 : i32 to index
    %c5_131 = arith.constant 5 : index
    %260 = memref.load %arg2[%259, %c5_131] : memref<32x9xf32, #tpu.memory_space<smem>>
    %c5_132 = arith.constant 5 : index
    %c0_133 = arith.constant 0 : index
    %c0_134 = arith.constant 0 : index
    %261 = vector.load %arg1[%c5_132, %c0_133, %c0_134] : memref<9x2x728xf32, #tpu.memory_space<vmem>>, vector<1x2x728xf32>
    %262 = vector.shape_cast %261 : vector<1x2x728xf32> to vector<2x728xf32>
    %263 = vector.broadcast %260 : f32 to vector<2x728xf32>
    %264 = arith.mulf %263, %262 : vector<2x728xf32>
    %265 = arith.addf %258, %264 : vector<2x728xf32>
    %266 = arith.index_cast %224 : i32 to index
    %c6_135 = arith.constant 6 : index
    %267 = memref.load %arg2[%266, %c6_135] : memref<32x9xf32, #tpu.memory_space<smem>>
    %c6_136 = arith.constant 6 : index
    %c0_137 = arith.constant 0 : index
    %c0_138 = arith.constant 0 : index
    %268 = vector.load %arg1[%c6_136, %c0_137, %c0_138] : memref<9x2x728xf32, #tpu.memory_space<vmem>>, vector<1x2x728xf32>
    %269 = vector.shape_cast %268 : vector<1x2x728xf32> to vector<2x728xf32>
    %270 = vector.broadcast %267 : f32 to vector<2x728xf32>
    %271 = arith.mulf %270, %269 : vector<2x728xf32>
    %272 = arith.addf %265, %271 : vector<2x728xf32>
    %273 = arith.index_cast %224 : i32 to index
    %c7_139 = arith.constant 7 : index
    %274 = memref.load %arg2[%273, %c7_139] : memref<32x9xf32, #tpu.memory_space<smem>>
    %c7_140 = arith.constant 7 : index
    %c0_141 = arith.constant 0 : index
    %c0_142 = arith.constant 0 : index
    %275 = vector.load %arg1[%c7_140, %c0_141, %c0_142] : memref<9x2x728xf32, #tpu.memory_space<vmem>>, vector<1x2x728xf32>
    %276 = vector.shape_cast %275 : vector<1x2x728xf32> to vector<2x728xf32>
    %277 = vector.broadcast %274 : f32 to vector<2x728xf32>
    %278 = arith.mulf %277, %276 : vector<2x728xf32>
    %279 = arith.addf %272, %278 : vector<2x728xf32>
    %280 = arith.index_cast %224 : i32 to index
    %c8_143 = arith.constant 8 : index
    %281 = memref.load %arg2[%280, %c8_143] : memref<32x9xf32, #tpu.memory_space<smem>>
    %c8_144 = arith.constant 8 : index
    %c0_145 = arith.constant 0 : index
    %c0_146 = arith.constant 0 : index
    %282 = vector.load %arg1[%c8_144, %c0_145, %c0_146] : memref<9x2x728xf32, #tpu.memory_space<vmem>>, vector<1x2x728xf32>
    %283 = vector.shape_cast %282 : vector<1x2x728xf32> to vector<2x728xf32>
    %284 = vector.broadcast %281 : f32 to vector<2x728xf32>
    %285 = arith.mulf %284, %283 : vector<2x728xf32>
    %286 = arith.addf %279, %285 : vector<2x728xf32>
    %287 = arith.index_cast %224 : i32 to index
    %288 = memref.load %arg3[%287] : memref<32xf32, #tpu.memory_space<smem>>
    %289 = vector.broadcast %288 : f32 to vector<2x728xf32>
    %290 = arith.addf %286, %289 : vector<2x728xf32>
    %cst_147 = arith.constant 0.000000e+00 : f32
    %291 = vector.broadcast %cst_147 : f32 to vector<2x728xf32>
    %292 = arith.maximumf %290, %291 : vector<2x728xf32>
    %293 = arith.index_cast %c3_i32 : i32 to index
    %c0_148 = arith.constant 0 : index
    %c0_149 = arith.constant 0 : index
    %294 = vector.load %arg4[%293, %c0_148, %c0_149] : memref<16x10x728xf32, #tpu.memory_space<vmem>>, vector<1x10x728xf32>
    %295 = vector.shape_cast %294 : vector<1x10x728xf32> to vector<10x728xf32>
    %cst_150 = arith.constant dense<0.000000e+00> : vector<2x10xf32>
    %296 = tpu.matmul %292, %295, %cst_150 {dimension_numbers = #tpu.dot_dimension_numbers<[1], [1], [0], [0], [0, 0, 1, 0], [], []>} : vector<2x728xf32>, vector<10x728xf32>, vector<2x10xf32> -> vector<2x10xf32>
    %297 = arith.addf %223, %296 : vector<2x10xf32>
    %c4_i32 = arith.constant 4 : i32
    %298 = arith.addi %0, %c4_i32 : i32
    %299 = arith.index_cast %298 : i32 to index
    %c0_151 = arith.constant 0 : index
    %300 = memref.load %arg2[%299, %c0_151] : memref<32x9xf32, #tpu.memory_space<smem>>
    %c0_152 = arith.constant 0 : index
    %c0_153 = arith.constant 0 : index
    %c0_154 = arith.constant 0 : index
    %301 = vector.load %arg1[%c0_152, %c0_153, %c0_154] : memref<9x2x728xf32, #tpu.memory_space<vmem>>, vector<1x2x728xf32>
    %302 = vector.shape_cast %301 : vector<1x2x728xf32> to vector<2x728xf32>
    %303 = vector.broadcast %300 : f32 to vector<2x728xf32>
    %304 = arith.mulf %303, %302 : vector<2x728xf32>
    %305 = arith.index_cast %298 : i32 to index
    %c1_155 = arith.constant 1 : index
    %306 = memref.load %arg2[%305, %c1_155] : memref<32x9xf32, #tpu.memory_space<smem>>
    %c1_156 = arith.constant 1 : index
    %c0_157 = arith.constant 0 : index
    %c0_158 = arith.constant 0 : index
    %307 = vector.load %arg1[%c1_156, %c0_157, %c0_158] : memref<9x2x728xf32, #tpu.memory_space<vmem>>, vector<1x2x728xf32>
    %308 = vector.shape_cast %307 : vector<1x2x728xf32> to vector<2x728xf32>
    %309 = vector.broadcast %306 : f32 to vector<2x728xf32>
    %310 = arith.mulf %309, %308 : vector<2x728xf32>
    %311 = arith.addf %304, %310 : vector<2x728xf32>
    %312 = arith.index_cast %298 : i32 to index
    %c2_159 = arith.constant 2 : index
    %313 = memref.load %arg2[%312, %c2_159] : memref<32x9xf32, #tpu.memory_space<smem>>
    %c2_160 = arith.constant 2 : index
    %c0_161 = arith.constant 0 : index
    %c0_162 = arith.constant 0 : index
    %314 = vector.load %arg1[%c2_160, %c0_161, %c0_162] : memref<9x2x728xf32, #tpu.memory_space<vmem>>, vector<1x2x728xf32>
    %315 = vector.shape_cast %314 : vector<1x2x728xf32> to vector<2x728xf32>
    %316 = vector.broadcast %313 : f32 to vector<2x728xf32>
    %317 = arith.mulf %316, %315 : vector<2x728xf32>
    %318 = arith.addf %311, %317 : vector<2x728xf32>
    %319 = arith.index_cast %298 : i32 to index
    %c3_163 = arith.constant 3 : index
    %320 = memref.load %arg2[%319, %c3_163] : memref<32x9xf32, #tpu.memory_space<smem>>
    %c3_164 = arith.constant 3 : index
    %c0_165 = arith.constant 0 : index
    %c0_166 = arith.constant 0 : index
    %321 = vector.load %arg1[%c3_164, %c0_165, %c0_166] : memref<9x2x728xf32, #tpu.memory_space<vmem>>, vector<1x2x728xf32>
    %322 = vector.shape_cast %321 : vector<1x2x728xf32> to vector<2x728xf32>
    %323 = vector.broadcast %320 : f32 to vector<2x728xf32>
    %324 = arith.mulf %323, %322 : vector<2x728xf32>
    %325 = arith.addf %318, %324 : vector<2x728xf32>
    %326 = arith.index_cast %298 : i32 to index
    %c4_167 = arith.constant 4 : index
    %327 = memref.load %arg2[%326, %c4_167] : memref<32x9xf32, #tpu.memory_space<smem>>
    %c4_168 = arith.constant 4 : index
    %c0_169 = arith.constant 0 : index
    %c0_170 = arith.constant 0 : index
    %328 = vector.load %arg1[%c4_168, %c0_169, %c0_170] : memref<9x2x728xf32, #tpu.memory_space<vmem>>, vector<1x2x728xf32>
    %329 = vector.shape_cast %328 : vector<1x2x728xf32> to vector<2x728xf32>
    %330 = vector.broadcast %327 : f32 to vector<2x728xf32>
    %331 = arith.mulf %330, %329 : vector<2x728xf32>
    %332 = arith.addf %325, %331 : vector<2x728xf32>
    %333 = arith.index_cast %298 : i32 to index
    %c5_171 = arith.constant 5 : index
    %334 = memref.load %arg2[%333, %c5_171] : memref<32x9xf32, #tpu.memory_space<smem>>
    %c5_172 = arith.constant 5 : index
    %c0_173 = arith.constant 0 : index
    %c0_174 = arith.constant 0 : index
    %335 = vector.load %arg1[%c5_172, %c0_173, %c0_174] : memref<9x2x728xf32, #tpu.memory_space<vmem>>, vector<1x2x728xf32>
    %336 = vector.shape_cast %335 : vector<1x2x728xf32> to vector<2x728xf32>
    %337 = vector.broadcast %334 : f32 to vector<2x728xf32>
    %338 = arith.mulf %337, %336 : vector<2x728xf32>
    %339 = arith.addf %332, %338 : vector<2x728xf32>
    %340 = arith.index_cast %298 : i32 to index
    %c6_175 = arith.constant 6 : index
    %341 = memref.load %arg2[%340, %c6_175] : memref<32x9xf32, #tpu.memory_space<smem>>
    %c6_176 = arith.constant 6 : index
    %c0_177 = arith.constant 0 : index
    %c0_178 = arith.constant 0 : index
    %342 = vector.load %arg1[%c6_176, %c0_177, %c0_178] : memref<9x2x728xf32, #tpu.memory_space<vmem>>, vector<1x2x728xf32>
    %343 = vector.shape_cast %342 : vector<1x2x728xf32> to vector<2x728xf32>
    %344 = vector.broadcast %341 : f32 to vector<2x728xf32>
    %345 = arith.mulf %344, %343 : vector<2x728xf32>
    %346 = arith.addf %339, %345 : vector<2x728xf32>
    %347 = arith.index_cast %298 : i32 to index
    %c7_179 = arith.constant 7 : index
    %348 = memref.load %arg2[%347, %c7_179] : memref<32x9xf32, #tpu.memory_space<smem>>
    %c7_180 = arith.constant 7 : index
    %c0_181 = arith.constant 0 : index
    %c0_182 = arith.constant 0 : index
    %349 = vector.load %arg1[%c7_180, %c0_181, %c0_182] : memref<9x2x728xf32, #tpu.memory_space<vmem>>, vector<1x2x728xf32>
    %350 = vector.shape_cast %349 : vector<1x2x728xf32> to vector<2x728xf32>
    %351 = vector.broadcast %348 : f32 to vector<2x728xf32>
    %352 = arith.mulf %351, %350 : vector<2x728xf32>
    %353 = arith.addf %346, %352 : vector<2x728xf32>
    %354 = arith.index_cast %298 : i32 to index
    %c8_183 = arith.constant 8 : index
    %355 = memref.load %arg2[%354, %c8_183] : memref<32x9xf32, #tpu.memory_space<smem>>
    %c8_184 = arith.constant 8 : index
    %c0_185 = arith.constant 0 : index
    %c0_186 = arith.constant 0 : index
    %356 = vector.load %arg1[%c8_184, %c0_185, %c0_186] : memref<9x2x728xf32, #tpu.memory_space<vmem>>, vector<1x2x728xf32>
    %357 = vector.shape_cast %356 : vector<1x2x728xf32> to vector<2x728xf32>
    %358 = vector.broadcast %355 : f32 to vector<2x728xf32>
    %359 = arith.mulf %358, %357 : vector<2x728xf32>
    %360 = arith.addf %353, %359 : vector<2x728xf32>
    %361 = arith.index_cast %298 : i32 to index
    %362 = memref.load %arg3[%361] : memref<32xf32, #tpu.memory_space<smem>>
    %363 = vector.broadcast %362 : f32 to vector<2x728xf32>
    %364 = arith.addf %360, %363 : vector<2x728xf32>
    %cst_187 = arith.constant 0.000000e+00 : f32
    %365 = vector.broadcast %cst_187 : f32 to vector<2x728xf32>
    %366 = arith.maximumf %364, %365 : vector<2x728xf32>
    %367 = arith.index_cast %c4_i32 : i32 to index
    %c0_188 = arith.constant 0 : index
    %c0_189 = arith.constant 0 : index
    %368 = vector.load %arg4[%367, %c0_188, %c0_189] : memref<16x10x728xf32, #tpu.memory_space<vmem>>, vector<1x10x728xf32>
    %369 = vector.shape_cast %368 : vector<1x10x728xf32> to vector<10x728xf32>
    %cst_190 = arith.constant dense<0.000000e+00> : vector<2x10xf32>
    %370 = tpu.matmul %366, %369, %cst_190 {dimension_numbers = #tpu.dot_dimension_numbers<[1], [1], [0], [0], [0, 0, 1, 0], [], []>} : vector<2x728xf32>, vector<10x728xf32>, vector<2x10xf32> -> vector<2x10xf32>
    %371 = arith.addf %297, %370 : vector<2x10xf32>
    %c5_i32 = arith.constant 5 : i32
    %372 = arith.addi %0, %c5_i32 : i32
    %373 = arith.index_cast %372 : i32 to index
    %c0_191 = arith.constant 0 : index
    %374 = memref.load %arg2[%373, %c0_191] : memref<32x9xf32, #tpu.memory_space<smem>>
    %c0_192 = arith.constant 0 : index
    %c0_193 = arith.constant 0 : index
    %c0_194 = arith.constant 0 : index
    %375 = vector.load %arg1[%c0_192, %c0_193, %c0_194] : memref<9x2x728xf32, #tpu.memory_space<vmem>>, vector<1x2x728xf32>
    %376 = vector.shape_cast %375 : vector<1x2x728xf32> to vector<2x728xf32>
    %377 = vector.broadcast %374 : f32 to vector<2x728xf32>
    %378 = arith.mulf %377, %376 : vector<2x728xf32>
    %379 = arith.index_cast %372 : i32 to index
    %c1_195 = arith.constant 1 : index
    %380 = memref.load %arg2[%379, %c1_195] : memref<32x9xf32, #tpu.memory_space<smem>>
    %c1_196 = arith.constant 1 : index
    %c0_197 = arith.constant 0 : index
    %c0_198 = arith.constant 0 : index
    %381 = vector.load %arg1[%c1_196, %c0_197, %c0_198] : memref<9x2x728xf32, #tpu.memory_space<vmem>>, vector<1x2x728xf32>
    %382 = vector.shape_cast %381 : vector<1x2x728xf32> to vector<2x728xf32>
    %383 = vector.broadcast %380 : f32 to vector<2x728xf32>
    %384 = arith.mulf %383, %382 : vector<2x728xf32>
    %385 = arith.addf %378, %384 : vector<2x728xf32>
    %386 = arith.index_cast %372 : i32 to index
    %c2_199 = arith.constant 2 : index
    %387 = memref.load %arg2[%386, %c2_199] : memref<32x9xf32, #tpu.memory_space<smem>>
    %c2_200 = arith.constant 2 : index
    %c0_201 = arith.constant 0 : index
    %c0_202 = arith.constant 0 : index
    %388 = vector.load %arg1[%c2_200, %c0_201, %c0_202] : memref<9x2x728xf32, #tpu.memory_space<vmem>>, vector<1x2x728xf32>
    %389 = vector.shape_cast %388 : vector<1x2x728xf32> to vector<2x728xf32>
    %390 = vector.broadcast %387 : f32 to vector<2x728xf32>
    %391 = arith.mulf %390, %389 : vector<2x728xf32>
    %392 = arith.addf %385, %391 : vector<2x728xf32>
    %393 = arith.index_cast %372 : i32 to index
    %c3_203 = arith.constant 3 : index
    %394 = memref.load %arg2[%393, %c3_203] : memref<32x9xf32, #tpu.memory_space<smem>>
    %c3_204 = arith.constant 3 : index
    %c0_205 = arith.constant 0 : index
    %c0_206 = arith.constant 0 : index
    %395 = vector.load %arg1[%c3_204, %c0_205, %c0_206] : memref<9x2x728xf32, #tpu.memory_space<vmem>>, vector<1x2x728xf32>
    %396 = vector.shape_cast %395 : vector<1x2x728xf32> to vector<2x728xf32>
    %397 = vector.broadcast %394 : f32 to vector<2x728xf32>
    %398 = arith.mulf %397, %396 : vector<2x728xf32>
    %399 = arith.addf %392, %398 : vector<2x728xf32>
    %400 = arith.index_cast %372 : i32 to index
    %c4_207 = arith.constant 4 : index
    %401 = memref.load %arg2[%400, %c4_207] : memref<32x9xf32, #tpu.memory_space<smem>>
    %c4_208 = arith.constant 4 : index
    %c0_209 = arith.constant 0 : index
    %c0_210 = arith.constant 0 : index
    %402 = vector.load %arg1[%c4_208, %c0_209, %c0_210] : memref<9x2x728xf32, #tpu.memory_space<vmem>>, vector<1x2x728xf32>
    %403 = vector.shape_cast %402 : vector<1x2x728xf32> to vector<2x728xf32>
    %404 = vector.broadcast %401 : f32 to vector<2x728xf32>
    %405 = arith.mulf %404, %403 : vector<2x728xf32>
    %406 = arith.addf %399, %405 : vector<2x728xf32>
    %407 = arith.index_cast %372 : i32 to index
    %c5_211 = arith.constant 5 : index
    %408 = memref.load %arg2[%407, %c5_211] : memref<32x9xf32, #tpu.memory_space<smem>>
    %c5_212 = arith.constant 5 : index
    %c0_213 = arith.constant 0 : index
    %c0_214 = arith.constant 0 : index
    %409 = vector.load %arg1[%c5_212, %c0_213, %c0_214] : memref<9x2x728xf32, #tpu.memory_space<vmem>>, vector<1x2x728xf32>
    %410 = vector.shape_cast %409 : vector<1x2x728xf32> to vector<2x728xf32>
    %411 = vector.broadcast %408 : f32 to vector<2x728xf32>
    %412 = arith.mulf %411, %410 : vector<2x728xf32>
    %413 = arith.addf %406, %412 : vector<2x728xf32>
    %414 = arith.index_cast %372 : i32 to index
    %c6_215 = arith.constant 6 : index
    %415 = memref.load %arg2[%414, %c6_215] : memref<32x9xf32, #tpu.memory_space<smem>>
    %c6_216 = arith.constant 6 : index
    %c0_217 = arith.constant 0 : index
    %c0_218 = arith.constant 0 : index
    %416 = vector.load %arg1[%c6_216, %c0_217, %c0_218] : memref<9x2x728xf32, #tpu.memory_space<vmem>>, vector<1x2x728xf32>
    %417 = vector.shape_cast %416 : vector<1x2x728xf32> to vector<2x728xf32>
    %418 = vector.broadcast %415 : f32 to vector<2x728xf32>
    %419 = arith.mulf %418, %417 : vector<2x728xf32>
    %420 = arith.addf %413, %419 : vector<2x728xf32>
    %421 = arith.index_cast %372 : i32 to index
    %c7_219 = arith.constant 7 : index
    %422 = memref.load %arg2[%421, %c7_219] : memref<32x9xf32, #tpu.memory_space<smem>>
    %c7_220 = arith.constant 7 : index
    %c0_221 = arith.constant 0 : index
    %c0_222 = arith.constant 0 : index
    %423 = vector.load %arg1[%c7_220, %c0_221, %c0_222] : memref<9x2x728xf32, #tpu.memory_space<vmem>>, vector<1x2x728xf32>
    %424 = vector.shape_cast %423 : vector<1x2x728xf32> to vector<2x728xf32>
    %425 = vector.broadcast %422 : f32 to vector<2x728xf32>
    %426 = arith.mulf %425, %424 : vector<2x728xf32>
    %427 = arith.addf %420, %426 : vector<2x728xf32>
    %428 = arith.index_cast %372 : i32 to index
    %c8_223 = arith.constant 8 : index
    %429 = memref.load %arg2[%428, %c8_223] : memref<32x9xf32, #tpu.memory_space<smem>>
    %c8_224 = arith.constant 8 : index
    %c0_225 = arith.constant 0 : index
    %c0_226 = arith.constant 0 : index
    %430 = vector.load %arg1[%c8_224, %c0_225, %c0_226] : memref<9x2x728xf32, #tpu.memory_space<vmem>>, vector<1x2x728xf32>
    %431 = vector.shape_cast %430 : vector<1x2x728xf32> to vector<2x728xf32>
    %432 = vector.broadcast %429 : f32 to vector<2x728xf32>
    %433 = arith.mulf %432, %431 : vector<2x728xf32>
    %434 = arith.addf %427, %433 : vector<2x728xf32>
    %435 = arith.index_cast %372 : i32 to index
    %436 = memref.load %arg3[%435] : memref<32xf32, #tpu.memory_space<smem>>
    %437 = vector.broadcast %436 : f32 to vector<2x728xf32>
    %438 = arith.addf %434, %437 : vector<2x728xf32>
    %cst_227 = arith.constant 0.000000e+00 : f32
    %439 = vector.broadcast %cst_227 : f32 to vector<2x728xf32>
    %440 = arith.maximumf %438, %439 : vector<2x728xf32>
    %441 = arith.index_cast %c5_i32 : i32 to index
    %c0_228 = arith.constant 0 : index
    %c0_229 = arith.constant 0 : index
    %442 = vector.load %arg4[%441, %c0_228, %c0_229] : memref<16x10x728xf32, #tpu.memory_space<vmem>>, vector<1x10x728xf32>
    %443 = vector.shape_cast %442 : vector<1x10x728xf32> to vector<10x728xf32>
    %cst_230 = arith.constant dense<0.000000e+00> : vector<2x10xf32>
    %444 = tpu.matmul %440, %443, %cst_230 {dimension_numbers = #tpu.dot_dimension_numbers<[1], [1], [0], [0], [0, 0, 1, 0], [], []>} : vector<2x728xf32>, vector<10x728xf32>, vector<2x10xf32> -> vector<2x10xf32>
    %445 = arith.addf %371, %444 : vector<2x10xf32>
    %c6_i32 = arith.constant 6 : i32
    %446 = arith.addi %0, %c6_i32 : i32
    %447 = arith.index_cast %446 : i32 to index
    %c0_231 = arith.constant 0 : index
    %448 = memref.load %arg2[%447, %c0_231] : memref<32x9xf32, #tpu.memory_space<smem>>
    %c0_232 = arith.constant 0 : index
    %c0_233 = arith.constant 0 : index
    %c0_234 = arith.constant 0 : index
    %449 = vector.load %arg1[%c0_232, %c0_233, %c0_234] : memref<9x2x728xf32, #tpu.memory_space<vmem>>, vector<1x2x728xf32>
    %450 = vector.shape_cast %449 : vector<1x2x728xf32> to vector<2x728xf32>
    %451 = vector.broadcast %448 : f32 to vector<2x728xf32>
    %452 = arith.mulf %451, %450 : vector<2x728xf32>
    %453 = arith.index_cast %446 : i32 to index
    %c1_235 = arith.constant 1 : index
    %454 = memref.load %arg2[%453, %c1_235] : memref<32x9xf32, #tpu.memory_space<smem>>
    %c1_236 = arith.constant 1 : index
    %c0_237 = arith.constant 0 : index
    %c0_238 = arith.constant 0 : index
    %455 = vector.load %arg1[%c1_236, %c0_237, %c0_238] : memref<9x2x728xf32, #tpu.memory_space<vmem>>, vector<1x2x728xf32>
    %456 = vector.shape_cast %455 : vector<1x2x728xf32> to vector<2x728xf32>
    %457 = vector.broadcast %454 : f32 to vector<2x728xf32>
    %458 = arith.mulf %457, %456 : vector<2x728xf32>
    %459 = arith.addf %452, %458 : vector<2x728xf32>
    %460 = arith.index_cast %446 : i32 to index
    %c2_239 = arith.constant 2 : index
    %461 = memref.load %arg2[%460, %c2_239] : memref<32x9xf32, #tpu.memory_space<smem>>
    %c2_240 = arith.constant 2 : index
    %c0_241 = arith.constant 0 : index
    %c0_242 = arith.constant 0 : index
    %462 = vector.load %arg1[%c2_240, %c0_241, %c0_242] : memref<9x2x728xf32, #tpu.memory_space<vmem>>, vector<1x2x728xf32>
    %463 = vector.shape_cast %462 : vector<1x2x728xf32> to vector<2x728xf32>
    %464 = vector.broadcast %461 : f32 to vector<2x728xf32>
    %465 = arith.mulf %464, %463 : vector<2x728xf32>
    %466 = arith.addf %459, %465 : vector<2x728xf32>
    %467 = arith.index_cast %446 : i32 to index
    %c3_243 = arith.constant 3 : index
    %468 = memref.load %arg2[%467, %c3_243] : memref<32x9xf32, #tpu.memory_space<smem>>
    %c3_244 = arith.constant 3 : index
    %c0_245 = arith.constant 0 : index
    %c0_246 = arith.constant 0 : index
    %469 = vector.load %arg1[%c3_244, %c0_245, %c0_246] : memref<9x2x728xf32, #tpu.memory_space<vmem>>, vector<1x2x728xf32>
    %470 = vector.shape_cast %469 : vector<1x2x728xf32> to vector<2x728xf32>
    %471 = vector.broadcast %468 : f32 to vector<2x728xf32>
    %472 = arith.mulf %471, %470 : vector<2x728xf32>
    %473 = arith.addf %466, %472 : vector<2x728xf32>
    %474 = arith.index_cast %446 : i32 to index
    %c4_247 = arith.constant 4 : index
    %475 = memref.load %arg2[%474, %c4_247] : memref<32x9xf32, #tpu.memory_space<smem>>
    %c4_248 = arith.constant 4 : index
    %c0_249 = arith.constant 0 : index
    %c0_250 = arith.constant 0 : index
    %476 = vector.load %arg1[%c4_248, %c0_249, %c0_250] : memref<9x2x728xf32, #tpu.memory_space<vmem>>, vector<1x2x728xf32>
    %477 = vector.shape_cast %476 : vector<1x2x728xf32> to vector<2x728xf32>
    %478 = vector.broadcast %475 : f32 to vector<2x728xf32>
    %479 = arith.mulf %478, %477 : vector<2x728xf32>
    %480 = arith.addf %473, %479 : vector<2x728xf32>
    %481 = arith.index_cast %446 : i32 to index
    %c5_251 = arith.constant 5 : index
    %482 = memref.load %arg2[%481, %c5_251] : memref<32x9xf32, #tpu.memory_space<smem>>
    %c5_252 = arith.constant 5 : index
    %c0_253 = arith.constant 0 : index
    %c0_254 = arith.constant 0 : index
    %483 = vector.load %arg1[%c5_252, %c0_253, %c0_254] : memref<9x2x728xf32, #tpu.memory_space<vmem>>, vector<1x2x728xf32>
    %484 = vector.shape_cast %483 : vector<1x2x728xf32> to vector<2x728xf32>
    %485 = vector.broadcast %482 : f32 to vector<2x728xf32>
    %486 = arith.mulf %485, %484 : vector<2x728xf32>
    %487 = arith.addf %480, %486 : vector<2x728xf32>
    %488 = arith.index_cast %446 : i32 to index
    %c6_255 = arith.constant 6 : index
    %489 = memref.load %arg2[%488, %c6_255] : memref<32x9xf32, #tpu.memory_space<smem>>
    %c6_256 = arith.constant 6 : index
    %c0_257 = arith.constant 0 : index
    %c0_258 = arith.constant 0 : index
    %490 = vector.load %arg1[%c6_256, %c0_257, %c0_258] : memref<9x2x728xf32, #tpu.memory_space<vmem>>, vector<1x2x728xf32>
    %491 = vector.shape_cast %490 : vector<1x2x728xf32> to vector<2x728xf32>
    %492 = vector.broadcast %489 : f32 to vector<2x728xf32>
    %493 = arith.mulf %492, %491 : vector<2x728xf32>
    %494 = arith.addf %487, %493 : vector<2x728xf32>
    %495 = arith.index_cast %446 : i32 to index
    %c7_259 = arith.constant 7 : index
    %496 = memref.load %arg2[%495, %c7_259] : memref<32x9xf32, #tpu.memory_space<smem>>
    %c7_260 = arith.constant 7 : index
    %c0_261 = arith.constant 0 : index
    %c0_262 = arith.constant 0 : index
    %497 = vector.load %arg1[%c7_260, %c0_261, %c0_262] : memref<9x2x728xf32, #tpu.memory_space<vmem>>, vector<1x2x728xf32>
    %498 = vector.shape_cast %497 : vector<1x2x728xf32> to vector<2x728xf32>
    %499 = vector.broadcast %496 : f32 to vector<2x728xf32>
    %500 = arith.mulf %499, %498 : vector<2x728xf32>
    %501 = arith.addf %494, %500 : vector<2x728xf32>
    %502 = arith.index_cast %446 : i32 to index
    %c8_263 = arith.constant 8 : index
    %503 = memref.load %arg2[%502, %c8_263] : memref<32x9xf32, #tpu.memory_space<smem>>
    %c8_264 = arith.constant 8 : index
    %c0_265 = arith.constant 0 : index
    %c0_266 = arith.constant 0 : index
    %504 = vector.load %arg1[%c8_264, %c0_265, %c0_266] : memref<9x2x728xf32, #tpu.memory_space<vmem>>, vector<1x2x728xf32>
    %505 = vector.shape_cast %504 : vector<1x2x728xf32> to vector<2x728xf32>
    %506 = vector.broadcast %503 : f32 to vector<2x728xf32>
    %507 = arith.mulf %506, %505 : vector<2x728xf32>
    %508 = arith.addf %501, %507 : vector<2x728xf32>
    %509 = arith.index_cast %446 : i32 to index
    %510 = memref.load %arg3[%509] : memref<32xf32, #tpu.memory_space<smem>>
    %511 = vector.broadcast %510 : f32 to vector<2x728xf32>
    %512 = arith.addf %508, %511 : vector<2x728xf32>
    %cst_267 = arith.constant 0.000000e+00 : f32
    %513 = vector.broadcast %cst_267 : f32 to vector<2x728xf32>
    %514 = arith.maximumf %512, %513 : vector<2x728xf32>
    %515 = arith.index_cast %c6_i32 : i32 to index
    %c0_268 = arith.constant 0 : index
    %c0_269 = arith.constant 0 : index
    %516 = vector.load %arg4[%515, %c0_268, %c0_269] : memref<16x10x728xf32, #tpu.memory_space<vmem>>, vector<1x10x728xf32>
    %517 = vector.shape_cast %516 : vector<1x10x728xf32> to vector<10x728xf32>
    %cst_270 = arith.constant dense<0.000000e+00> : vector<2x10xf32>
    %518 = tpu.matmul %514, %517, %cst_270 {dimension_numbers = #tpu.dot_dimension_numbers<[1], [1], [0], [0], [0, 0, 1, 0], [], []>} : vector<2x728xf32>, vector<10x728xf32>, vector<2x10xf32> -> vector<2x10xf32>
    %519 = arith.addf %445, %518 : vector<2x10xf32>
    %c7_i32 = arith.constant 7 : i32
    %520 = arith.addi %0, %c7_i32 : i32
    %521 = arith.index_cast %520 : i32 to index
    %c0_271 = arith.constant 0 : index
    %522 = memref.load %arg2[%521, %c0_271] : memref<32x9xf32, #tpu.memory_space<smem>>
    %c0_272 = arith.constant 0 : index
    %c0_273 = arith.constant 0 : index
    %c0_274 = arith.constant 0 : index
    %523 = vector.load %arg1[%c0_272, %c0_273, %c0_274] : memref<9x2x728xf32, #tpu.memory_space<vmem>>, vector<1x2x728xf32>
    %524 = vector.shape_cast %523 : vector<1x2x728xf32> to vector<2x728xf32>
    %525 = vector.broadcast %522 : f32 to vector<2x728xf32>
    %526 = arith.mulf %525, %524 : vector<2x728xf32>
    %527 = arith.index_cast %520 : i32 to index
    %c1_275 = arith.constant 1 : index
    %528 = memref.load %arg2[%527, %c1_275] : memref<32x9xf32, #tpu.memory_space<smem>>
    %c1_276 = arith.constant 1 : index
    %c0_277 = arith.constant 0 : index
    %c0_278 = arith.constant 0 : index
    %529 = vector.load %arg1[%c1_276, %c0_277, %c0_278] : memref<9x2x728xf32, #tpu.memory_space<vmem>>, vector<1x2x728xf32>
    %530 = vector.shape_cast %529 : vector<1x2x728xf32> to vector<2x728xf32>
    %531 = vector.broadcast %528 : f32 to vector<2x728xf32>
    %532 = arith.mulf %531, %530 : vector<2x728xf32>
    %533 = arith.addf %526, %532 : vector<2x728xf32>
    %534 = arith.index_cast %520 : i32 to index
    %c2_279 = arith.constant 2 : index
    %535 = memref.load %arg2[%534, %c2_279] : memref<32x9xf32, #tpu.memory_space<smem>>
    %c2_280 = arith.constant 2 : index
    %c0_281 = arith.constant 0 : index
    %c0_282 = arith.constant 0 : index
    %536 = vector.load %arg1[%c2_280, %c0_281, %c0_282] : memref<9x2x728xf32, #tpu.memory_space<vmem>>, vector<1x2x728xf32>
    %537 = vector.shape_cast %536 : vector<1x2x728xf32> to vector<2x728xf32>
    %538 = vector.broadcast %535 : f32 to vector<2x728xf32>
    %539 = arith.mulf %538, %537 : vector<2x728xf32>
    %540 = arith.addf %533, %539 : vector<2x728xf32>
    %541 = arith.index_cast %520 : i32 to index
    %c3_283 = arith.constant 3 : index
    %542 = memref.load %arg2[%541, %c3_283] : memref<32x9xf32, #tpu.memory_space<smem>>
    %c3_284 = arith.constant 3 : index
    %c0_285 = arith.constant 0 : index
    %c0_286 = arith.constant 0 : index
    %543 = vector.load %arg1[%c3_284, %c0_285, %c0_286] : memref<9x2x728xf32, #tpu.memory_space<vmem>>, vector<1x2x728xf32>
    %544 = vector.shape_cast %543 : vector<1x2x728xf32> to vector<2x728xf32>
    %545 = vector.broadcast %542 : f32 to vector<2x728xf32>
    %546 = arith.mulf %545, %544 : vector<2x728xf32>
    %547 = arith.addf %540, %546 : vector<2x728xf32>
    %548 = arith.index_cast %520 : i32 to index
    %c4_287 = arith.constant 4 : index
    %549 = memref.load %arg2[%548, %c4_287] : memref<32x9xf32, #tpu.memory_space<smem>>
    %c4_288 = arith.constant 4 : index
    %c0_289 = arith.constant 0 : index
    %c0_290 = arith.constant 0 : index
    %550 = vector.load %arg1[%c4_288, %c0_289, %c0_290] : memref<9x2x728xf32, #tpu.memory_space<vmem>>, vector<1x2x728xf32>
    %551 = vector.shape_cast %550 : vector<1x2x728xf32> to vector<2x728xf32>
    %552 = vector.broadcast %549 : f32 to vector<2x728xf32>
    %553 = arith.mulf %552, %551 : vector<2x728xf32>
    %554 = arith.addf %547, %553 : vector<2x728xf32>
    %555 = arith.index_cast %520 : i32 to index
    %c5_291 = arith.constant 5 : index
    %556 = memref.load %arg2[%555, %c5_291] : memref<32x9xf32, #tpu.memory_space<smem>>
    %c5_292 = arith.constant 5 : index
    %c0_293 = arith.constant 0 : index
    %c0_294 = arith.constant 0 : index
    %557 = vector.load %arg1[%c5_292, %c0_293, %c0_294] : memref<9x2x728xf32, #tpu.memory_space<vmem>>, vector<1x2x728xf32>
    %558 = vector.shape_cast %557 : vector<1x2x728xf32> to vector<2x728xf32>
    %559 = vector.broadcast %556 : f32 to vector<2x728xf32>
    %560 = arith.mulf %559, %558 : vector<2x728xf32>
    %561 = arith.addf %554, %560 : vector<2x728xf32>
    %562 = arith.index_cast %520 : i32 to index
    %c6_295 = arith.constant 6 : index
    %563 = memref.load %arg2[%562, %c6_295] : memref<32x9xf32, #tpu.memory_space<smem>>
    %c6_296 = arith.constant 6 : index
    %c0_297 = arith.constant 0 : index
    %c0_298 = arith.constant 0 : index
    %564 = vector.load %arg1[%c6_296, %c0_297, %c0_298] : memref<9x2x728xf32, #tpu.memory_space<vmem>>, vector<1x2x728xf32>
    %565 = vector.shape_cast %564 : vector<1x2x728xf32> to vector<2x728xf32>
    %566 = vector.broadcast %563 : f32 to vector<2x728xf32>
    %567 = arith.mulf %566, %565 : vector<2x728xf32>
    %568 = arith.addf %561, %567 : vector<2x728xf32>
    %569 = arith.index_cast %520 : i32 to index
    %c7_299 = arith.constant 7 : index
    %570 = memref.load %arg2[%569, %c7_299] : memref<32x9xf32, #tpu.memory_space<smem>>
    %c7_300 = arith.constant 7 : index
    %c0_301 = arith.constant 0 : index
    %c0_302 = arith.constant 0 : index
    %571 = vector.load %arg1[%c7_300, %c0_301, %c0_302] : memref<9x2x728xf32, #tpu.memory_space<vmem>>, vector<1x2x728xf32>
    %572 = vector.shape_cast %571 : vector<1x2x728xf32> to vector<2x728xf32>
    %573 = vector.broadcast %570 : f32 to vector<2x728xf32>
    %574 = arith.mulf %573, %572 : vector<2x728xf32>
    %575 = arith.addf %568, %574 : vector<2x728xf32>
    %576 = arith.index_cast %520 : i32 to index
    %c8_303 = arith.constant 8 : index
    %577 = memref.load %arg2[%576, %c8_303] : memref<32x9xf32, #tpu.memory_space<smem>>
    %c8_304 = arith.constant 8 : index
    %c0_305 = arith.constant 0 : index
    %c0_306 = arith.constant 0 : index
    %578 = vector.load %arg1[%c8_304, %c0_305, %c0_306] : memref<9x2x728xf32, #tpu.memory_space<vmem>>, vector<1x2x728xf32>
    %579 = vector.shape_cast %578 : vector<1x2x728xf32> to vector<2x728xf32>
    %580 = vector.broadcast %577 : f32 to vector<2x728xf32>
    %581 = arith.mulf %580, %579 : vector<2x728xf32>
    %582 = arith.addf %575, %581 : vector<2x728xf32>
    %583 = arith.index_cast %520 : i32 to index
    %584 = memref.load %arg3[%583] : memref<32xf32, #tpu.memory_space<smem>>
    %585 = vector.broadcast %584 : f32 to vector<2x728xf32>
    %586 = arith.addf %582, %585 : vector<2x728xf32>
    %cst_307 = arith.constant 0.000000e+00 : f32
    %587 = vector.broadcast %cst_307 : f32 to vector<2x728xf32>
    %588 = arith.maximumf %586, %587 : vector<2x728xf32>
    %589 = arith.index_cast %c7_i32 : i32 to index
    %c0_308 = arith.constant 0 : index
    %c0_309 = arith.constant 0 : index
    %590 = vector.load %arg4[%589, %c0_308, %c0_309] : memref<16x10x728xf32, #tpu.memory_space<vmem>>, vector<1x10x728xf32>
    %591 = vector.shape_cast %590 : vector<1x10x728xf32> to vector<10x728xf32>
    %cst_310 = arith.constant dense<0.000000e+00> : vector<2x10xf32>
    %592 = tpu.matmul %588, %591, %cst_310 {dimension_numbers = #tpu.dot_dimension_numbers<[1], [1], [0], [0], [0, 0, 1, 0], [], []>} : vector<2x728xf32>, vector<10x728xf32>, vector<2x10xf32> -> vector<2x10xf32>
    %593 = arith.addf %519, %592 : vector<2x10xf32>
    %c8_i32 = arith.constant 8 : i32
    %594 = arith.addi %0, %c8_i32 : i32
    %595 = arith.index_cast %594 : i32 to index
    %c0_311 = arith.constant 0 : index
    %596 = memref.load %arg2[%595, %c0_311] : memref<32x9xf32, #tpu.memory_space<smem>>
    %c0_312 = arith.constant 0 : index
    %c0_313 = arith.constant 0 : index
    %c0_314 = arith.constant 0 : index
    %597 = vector.load %arg1[%c0_312, %c0_313, %c0_314] : memref<9x2x728xf32, #tpu.memory_space<vmem>>, vector<1x2x728xf32>
    %598 = vector.shape_cast %597 : vector<1x2x728xf32> to vector<2x728xf32>
    %599 = vector.broadcast %596 : f32 to vector<2x728xf32>
    %600 = arith.mulf %599, %598 : vector<2x728xf32>
    %601 = arith.index_cast %594 : i32 to index
    %c1_315 = arith.constant 1 : index
    %602 = memref.load %arg2[%601, %c1_315] : memref<32x9xf32, #tpu.memory_space<smem>>
    %c1_316 = arith.constant 1 : index
    %c0_317 = arith.constant 0 : index
    %c0_318 = arith.constant 0 : index
    %603 = vector.load %arg1[%c1_316, %c0_317, %c0_318] : memref<9x2x728xf32, #tpu.memory_space<vmem>>, vector<1x2x728xf32>
    %604 = vector.shape_cast %603 : vector<1x2x728xf32> to vector<2x728xf32>
    %605 = vector.broadcast %602 : f32 to vector<2x728xf32>
    %606 = arith.mulf %605, %604 : vector<2x728xf32>
    %607 = arith.addf %600, %606 : vector<2x728xf32>
    %608 = arith.index_cast %594 : i32 to index
    %c2_319 = arith.constant 2 : index
    %609 = memref.load %arg2[%608, %c2_319] : memref<32x9xf32, #tpu.memory_space<smem>>
    %c2_320 = arith.constant 2 : index
    %c0_321 = arith.constant 0 : index
    %c0_322 = arith.constant 0 : index
    %610 = vector.load %arg1[%c2_320, %c0_321, %c0_322] : memref<9x2x728xf32, #tpu.memory_space<vmem>>, vector<1x2x728xf32>
    %611 = vector.shape_cast %610 : vector<1x2x728xf32> to vector<2x728xf32>
    %612 = vector.broadcast %609 : f32 to vector<2x728xf32>
    %613 = arith.mulf %612, %611 : vector<2x728xf32>
    %614 = arith.addf %607, %613 : vector<2x728xf32>
    %615 = arith.index_cast %594 : i32 to index
    %c3_323 = arith.constant 3 : index
    %616 = memref.load %arg2[%615, %c3_323] : memref<32x9xf32, #tpu.memory_space<smem>>
    %c3_324 = arith.constant 3 : index
    %c0_325 = arith.constant 0 : index
    %c0_326 = arith.constant 0 : index
    %617 = vector.load %arg1[%c3_324, %c0_325, %c0_326] : memref<9x2x728xf32, #tpu.memory_space<vmem>>, vector<1x2x728xf32>
    %618 = vector.shape_cast %617 : vector<1x2x728xf32> to vector<2x728xf32>
    %619 = vector.broadcast %616 : f32 to vector<2x728xf32>
    %620 = arith.mulf %619, %618 : vector<2x728xf32>
    %621 = arith.addf %614, %620 : vector<2x728xf32>
    %622 = arith.index_cast %594 : i32 to index
    %c4_327 = arith.constant 4 : index
    %623 = memref.load %arg2[%622, %c4_327] : memref<32x9xf32, #tpu.memory_space<smem>>
    %c4_328 = arith.constant 4 : index
    %c0_329 = arith.constant 0 : index
    %c0_330 = arith.constant 0 : index
    %624 = vector.load %arg1[%c4_328, %c0_329, %c0_330] : memref<9x2x728xf32, #tpu.memory_space<vmem>>, vector<1x2x728xf32>
    %625 = vector.shape_cast %624 : vector<1x2x728xf32> to vector<2x728xf32>
    %626 = vector.broadcast %623 : f32 to vector<2x728xf32>
    %627 = arith.mulf %626, %625 : vector<2x728xf32>
    %628 = arith.addf %621, %627 : vector<2x728xf32>
    %629 = arith.index_cast %594 : i32 to index
    %c5_331 = arith.constant 5 : index
    %630 = memref.load %arg2[%629, %c5_331] : memref<32x9xf32, #tpu.memory_space<smem>>
    %c5_332 = arith.constant 5 : index
    %c0_333 = arith.constant 0 : index
    %c0_334 = arith.constant 0 : index
    %631 = vector.load %arg1[%c5_332, %c0_333, %c0_334] : memref<9x2x728xf32, #tpu.memory_space<vmem>>, vector<1x2x728xf32>
    %632 = vector.shape_cast %631 : vector<1x2x728xf32> to vector<2x728xf32>
    %633 = vector.broadcast %630 : f32 to vector<2x728xf32>
    %634 = arith.mulf %633, %632 : vector<2x728xf32>
    %635 = arith.addf %628, %634 : vector<2x728xf32>
    %636 = arith.index_cast %594 : i32 to index
    %c6_335 = arith.constant 6 : index
    %637 = memref.load %arg2[%636, %c6_335] : memref<32x9xf32, #tpu.memory_space<smem>>
    %c6_336 = arith.constant 6 : index
    %c0_337 = arith.constant 0 : index
    %c0_338 = arith.constant 0 : index
    %638 = vector.load %arg1[%c6_336, %c0_337, %c0_338] : memref<9x2x728xf32, #tpu.memory_space<vmem>>, vector<1x2x728xf32>
    %639 = vector.shape_cast %638 : vector<1x2x728xf32> to vector<2x728xf32>
    %640 = vector.broadcast %637 : f32 to vector<2x728xf32>
    %641 = arith.mulf %640, %639 : vector<2x728xf32>
    %642 = arith.addf %635, %641 : vector<2x728xf32>
    %643 = arith.index_cast %594 : i32 to index
    %c7_339 = arith.constant 7 : index
    %644 = memref.load %arg2[%643, %c7_339] : memref<32x9xf32, #tpu.memory_space<smem>>
    %c7_340 = arith.constant 7 : index
    %c0_341 = arith.constant 0 : index
    %c0_342 = arith.constant 0 : index
    %645 = vector.load %arg1[%c7_340, %c0_341, %c0_342] : memref<9x2x728xf32, #tpu.memory_space<vmem>>, vector<1x2x728xf32>
    %646 = vector.shape_cast %645 : vector<1x2x728xf32> to vector<2x728xf32>
    %647 = vector.broadcast %644 : f32 to vector<2x728xf32>
    %648 = arith.mulf %647, %646 : vector<2x728xf32>
    %649 = arith.addf %642, %648 : vector<2x728xf32>
    %650 = arith.index_cast %594 : i32 to index
    %c8_343 = arith.constant 8 : index
    %651 = memref.load %arg2[%650, %c8_343] : memref<32x9xf32, #tpu.memory_space<smem>>
    %c8_344 = arith.constant 8 : index
    %c0_345 = arith.constant 0 : index
    %c0_346 = arith.constant 0 : index
    %652 = vector.load %arg1[%c8_344, %c0_345, %c0_346] : memref<9x2x728xf32, #tpu.memory_space<vmem>>, vector<1x2x728xf32>
    %653 = vector.shape_cast %652 : vector<1x2x728xf32> to vector<2x728xf32>
    %654 = vector.broadcast %651 : f32 to vector<2x728xf32>
    %655 = arith.mulf %654, %653 : vector<2x728xf32>
    %656 = arith.addf %649, %655 : vector<2x728xf32>
    %657 = arith.index_cast %594 : i32 to index
    %658 = memref.load %arg3[%657] : memref<32xf32, #tpu.memory_space<smem>>
    %659 = vector.broadcast %658 : f32 to vector<2x728xf32>
    %660 = arith.addf %656, %659 : vector<2x728xf32>
    %cst_347 = arith.constant 0.000000e+00 : f32
    %661 = vector.broadcast %cst_347 : f32 to vector<2x728xf32>
    %662 = arith.maximumf %660, %661 : vector<2x728xf32>
    %663 = arith.index_cast %c8_i32 : i32 to index
    %c0_348 = arith.constant 0 : index
    %c0_349 = arith.constant 0 : index
    %664 = vector.load %arg4[%663, %c0_348, %c0_349] : memref<16x10x728xf32, #tpu.memory_space<vmem>>, vector<1x10x728xf32>
    %665 = vector.shape_cast %664 : vector<1x10x728xf32> to vector<10x728xf32>
    %cst_350 = arith.constant dense<0.000000e+00> : vector<2x10xf32>
    %666 = tpu.matmul %662, %665, %cst_350 {dimension_numbers = #tpu.dot_dimension_numbers<[1], [1], [0], [0], [0, 0, 1, 0], [], []>} : vector<2x728xf32>, vector<10x728xf32>, vector<2x10xf32> -> vector<2x10xf32>
    %667 = arith.addf %593, %666 : vector<2x10xf32>
    %c9_i32 = arith.constant 9 : i32
    %668 = arith.addi %0, %c9_i32 : i32
    %669 = arith.index_cast %668 : i32 to index
    %c0_351 = arith.constant 0 : index
    %670 = memref.load %arg2[%669, %c0_351] : memref<32x9xf32, #tpu.memory_space<smem>>
    %c0_352 = arith.constant 0 : index
    %c0_353 = arith.constant 0 : index
    %c0_354 = arith.constant 0 : index
    %671 = vector.load %arg1[%c0_352, %c0_353, %c0_354] : memref<9x2x728xf32, #tpu.memory_space<vmem>>, vector<1x2x728xf32>
    %672 = vector.shape_cast %671 : vector<1x2x728xf32> to vector<2x728xf32>
    %673 = vector.broadcast %670 : f32 to vector<2x728xf32>
    %674 = arith.mulf %673, %672 : vector<2x728xf32>
    %675 = arith.index_cast %668 : i32 to index
    %c1_355 = arith.constant 1 : index
    %676 = memref.load %arg2[%675, %c1_355] : memref<32x9xf32, #tpu.memory_space<smem>>
    %c1_356 = arith.constant 1 : index
    %c0_357 = arith.constant 0 : index
    %c0_358 = arith.constant 0 : index
    %677 = vector.load %arg1[%c1_356, %c0_357, %c0_358] : memref<9x2x728xf32, #tpu.memory_space<vmem>>, vector<1x2x728xf32>
    %678 = vector.shape_cast %677 : vector<1x2x728xf32> to vector<2x728xf32>
    %679 = vector.broadcast %676 : f32 to vector<2x728xf32>
    %680 = arith.mulf %679, %678 : vector<2x728xf32>
    %681 = arith.addf %674, %680 : vector<2x728xf32>
    %682 = arith.index_cast %668 : i32 to index
    %c2_359 = arith.constant 2 : index
    %683 = memref.load %arg2[%682, %c2_359] : memref<32x9xf32, #tpu.memory_space<smem>>
    %c2_360 = arith.constant 2 : index
    %c0_361 = arith.constant 0 : index
    %c0_362 = arith.constant 0 : index
    %684 = vector.load %arg1[%c2_360, %c0_361, %c0_362] : memref<9x2x728xf32, #tpu.memory_space<vmem>>, vector<1x2x728xf32>
    %685 = vector.shape_cast %684 : vector<1x2x728xf32> to vector<2x728xf32>
    %686 = vector.broadcast %683 : f32 to vector<2x728xf32>
    %687 = arith.mulf %686, %685 : vector<2x728xf32>
    %688 = arith.addf %681, %687 : vector<2x728xf32>
    %689 = arith.index_cast %668 : i32 to index
    %c3_363 = arith.constant 3 : index
    %690 = memref.load %arg2[%689, %c3_363] : memref<32x9xf32, #tpu.memory_space<smem>>
    %c3_364 = arith.constant 3 : index
    %c0_365 = arith.constant 0 : index
    %c0_366 = arith.constant 0 : index
    %691 = vector.load %arg1[%c3_364, %c0_365, %c0_366] : memref<9x2x728xf32, #tpu.memory_space<vmem>>, vector<1x2x728xf32>
    %692 = vector.shape_cast %691 : vector<1x2x728xf32> to vector<2x728xf32>
    %693 = vector.broadcast %690 : f32 to vector<2x728xf32>
    %694 = arith.mulf %693, %692 : vector<2x728xf32>
    %695 = arith.addf %688, %694 : vector<2x728xf32>
    %696 = arith.index_cast %668 : i32 to index
    %c4_367 = arith.constant 4 : index
    %697 = memref.load %arg2[%696, %c4_367] : memref<32x9xf32, #tpu.memory_space<smem>>
    %c4_368 = arith.constant 4 : index
    %c0_369 = arith.constant 0 : index
    %c0_370 = arith.constant 0 : index
    %698 = vector.load %arg1[%c4_368, %c0_369, %c0_370] : memref<9x2x728xf32, #tpu.memory_space<vmem>>, vector<1x2x728xf32>
    %699 = vector.shape_cast %698 : vector<1x2x728xf32> to vector<2x728xf32>
    %700 = vector.broadcast %697 : f32 to vector<2x728xf32>
    %701 = arith.mulf %700, %699 : vector<2x728xf32>
    %702 = arith.addf %695, %701 : vector<2x728xf32>
    %703 = arith.index_cast %668 : i32 to index
    %c5_371 = arith.constant 5 : index
    %704 = memref.load %arg2[%703, %c5_371] : memref<32x9xf32, #tpu.memory_space<smem>>
    %c5_372 = arith.constant 5 : index
    %c0_373 = arith.constant 0 : index
    %c0_374 = arith.constant 0 : index
    %705 = vector.load %arg1[%c5_372, %c0_373, %c0_374] : memref<9x2x728xf32, #tpu.memory_space<vmem>>, vector<1x2x728xf32>
    %706 = vector.shape_cast %705 : vector<1x2x728xf32> to vector<2x728xf32>
    %707 = vector.broadcast %704 : f32 to vector<2x728xf32>
    %708 = arith.mulf %707, %706 : vector<2x728xf32>
    %709 = arith.addf %702, %708 : vector<2x728xf32>
    %710 = arith.index_cast %668 : i32 to index
    %c6_375 = arith.constant 6 : index
    %711 = memref.load %arg2[%710, %c6_375] : memref<32x9xf32, #tpu.memory_space<smem>>
    %c6_376 = arith.constant 6 : index
    %c0_377 = arith.constant 0 : index
    %c0_378 = arith.constant 0 : index
    %712 = vector.load %arg1[%c6_376, %c0_377, %c0_378] : memref<9x2x728xf32, #tpu.memory_space<vmem>>, vector<1x2x728xf32>
    %713 = vector.shape_cast %712 : vector<1x2x728xf32> to vector<2x728xf32>
    %714 = vector.broadcast %711 : f32 to vector<2x728xf32>
    %715 = arith.mulf %714, %713 : vector<2x728xf32>
    %716 = arith.addf %709, %715 : vector<2x728xf32>
    %717 = arith.index_cast %668 : i32 to index
    %c7_379 = arith.constant 7 : index
    %718 = memref.load %arg2[%717, %c7_379] : memref<32x9xf32, #tpu.memory_space<smem>>
    %c7_380 = arith.constant 7 : index
    %c0_381 = arith.constant 0 : index
    %c0_382 = arith.constant 0 : index
    %719 = vector.load %arg1[%c7_380, %c0_381, %c0_382] : memref<9x2x728xf32, #tpu.memory_space<vmem>>, vector<1x2x728xf32>
    %720 = vector.shape_cast %719 : vector<1x2x728xf32> to vector<2x728xf32>
    %721 = vector.broadcast %718 : f32 to vector<2x728xf32>
    %722 = arith.mulf %721, %720 : vector<2x728xf32>
    %723 = arith.addf %716, %722 : vector<2x728xf32>
    %724 = arith.index_cast %668 : i32 to index
    %c8_383 = arith.constant 8 : index
    %725 = memref.load %arg2[%724, %c8_383] : memref<32x9xf32, #tpu.memory_space<smem>>
    %c8_384 = arith.constant 8 : index
    %c0_385 = arith.constant 0 : index
    %c0_386 = arith.constant 0 : index
    %726 = vector.load %arg1[%c8_384, %c0_385, %c0_386] : memref<9x2x728xf32, #tpu.memory_space<vmem>>, vector<1x2x728xf32>
    %727 = vector.shape_cast %726 : vector<1x2x728xf32> to vector<2x728xf32>
    %728 = vector.broadcast %725 : f32 to vector<2x728xf32>
    %729 = arith.mulf %728, %727 : vector<2x728xf32>
    %730 = arith.addf %723, %729 : vector<2x728xf32>
    %731 = arith.index_cast %668 : i32 to index
    %732 = memref.load %arg3[%731] : memref<32xf32, #tpu.memory_space<smem>>
    %733 = vector.broadcast %732 : f32 to vector<2x728xf32>
    %734 = arith.addf %730, %733 : vector<2x728xf32>
    %cst_387 = arith.constant 0.000000e+00 : f32
    %735 = vector.broadcast %cst_387 : f32 to vector<2x728xf32>
    %736 = arith.maximumf %734, %735 : vector<2x728xf32>
    %737 = arith.index_cast %c9_i32 : i32 to index
    %c0_388 = arith.constant 0 : index
    %c0_389 = arith.constant 0 : index
    %738 = vector.load %arg4[%737, %c0_388, %c0_389] : memref<16x10x728xf32, #tpu.memory_space<vmem>>, vector<1x10x728xf32>
    %739 = vector.shape_cast %738 : vector<1x10x728xf32> to vector<10x728xf32>
    %cst_390 = arith.constant dense<0.000000e+00> : vector<2x10xf32>
    %740 = tpu.matmul %736, %739, %cst_390 {dimension_numbers = #tpu.dot_dimension_numbers<[1], [1], [0], [0], [0, 0, 1, 0], [], []>} : vector<2x728xf32>, vector<10x728xf32>, vector<2x10xf32> -> vector<2x10xf32>
    %741 = arith.addf %667, %740 : vector<2x10xf32>
    %c10_i32 = arith.constant 10 : i32
    %742 = arith.addi %0, %c10_i32 : i32
    %743 = arith.index_cast %742 : i32 to index
    %c0_391 = arith.constant 0 : index
    %744 = memref.load %arg2[%743, %c0_391] : memref<32x9xf32, #tpu.memory_space<smem>>
    %c0_392 = arith.constant 0 : index
    %c0_393 = arith.constant 0 : index
    %c0_394 = arith.constant 0 : index
    %745 = vector.load %arg1[%c0_392, %c0_393, %c0_394] : memref<9x2x728xf32, #tpu.memory_space<vmem>>, vector<1x2x728xf32>
    %746 = vector.shape_cast %745 : vector<1x2x728xf32> to vector<2x728xf32>
    %747 = vector.broadcast %744 : f32 to vector<2x728xf32>
    %748 = arith.mulf %747, %746 : vector<2x728xf32>
    %749 = arith.index_cast %742 : i32 to index
    %c1_395 = arith.constant 1 : index
    %750 = memref.load %arg2[%749, %c1_395] : memref<32x9xf32, #tpu.memory_space<smem>>
    %c1_396 = arith.constant 1 : index
    %c0_397 = arith.constant 0 : index
    %c0_398 = arith.constant 0 : index
    %751 = vector.load %arg1[%c1_396, %c0_397, %c0_398] : memref<9x2x728xf32, #tpu.memory_space<vmem>>, vector<1x2x728xf32>
    %752 = vector.shape_cast %751 : vector<1x2x728xf32> to vector<2x728xf32>
    %753 = vector.broadcast %750 : f32 to vector<2x728xf32>
    %754 = arith.mulf %753, %752 : vector<2x728xf32>
    %755 = arith.addf %748, %754 : vector<2x728xf32>
    %756 = arith.index_cast %742 : i32 to index
    %c2_399 = arith.constant 2 : index
    %757 = memref.load %arg2[%756, %c2_399] : memref<32x9xf32, #tpu.memory_space<smem>>
    %c2_400 = arith.constant 2 : index
    %c0_401 = arith.constant 0 : index
    %c0_402 = arith.constant 0 : index
    %758 = vector.load %arg1[%c2_400, %c0_401, %c0_402] : memref<9x2x728xf32, #tpu.memory_space<vmem>>, vector<1x2x728xf32>
    %759 = vector.shape_cast %758 : vector<1x2x728xf32> to vector<2x728xf32>
    %760 = vector.broadcast %757 : f32 to vector<2x728xf32>
    %761 = arith.mulf %760, %759 : vector<2x728xf32>
    %762 = arith.addf %755, %761 : vector<2x728xf32>
    %763 = arith.index_cast %742 : i32 to index
    %c3_403 = arith.constant 3 : index
    %764 = memref.load %arg2[%763, %c3_403] : memref<32x9xf32, #tpu.memory_space<smem>>
    %c3_404 = arith.constant 3 : index
    %c0_405 = arith.constant 0 : index
    %c0_406 = arith.constant 0 : index
    %765 = vector.load %arg1[%c3_404, %c0_405, %c0_406] : memref<9x2x728xf32, #tpu.memory_space<vmem>>, vector<1x2x728xf32>
    %766 = vector.shape_cast %765 : vector<1x2x728xf32> to vector<2x728xf32>
    %767 = vector.broadcast %764 : f32 to vector<2x728xf32>
    %768 = arith.mulf %767, %766 : vector<2x728xf32>
    %769 = arith.addf %762, %768 : vector<2x728xf32>
    %770 = arith.index_cast %742 : i32 to index
    %c4_407 = arith.constant 4 : index
    %771 = memref.load %arg2[%770, %c4_407] : memref<32x9xf32, #tpu.memory_space<smem>>
    %c4_408 = arith.constant 4 : index
    %c0_409 = arith.constant 0 : index
    %c0_410 = arith.constant 0 : index
    %772 = vector.load %arg1[%c4_408, %c0_409, %c0_410] : memref<9x2x728xf32, #tpu.memory_space<vmem>>, vector<1x2x728xf32>
    %773 = vector.shape_cast %772 : vector<1x2x728xf32> to vector<2x728xf32>
    %774 = vector.broadcast %771 : f32 to vector<2x728xf32>
    %775 = arith.mulf %774, %773 : vector<2x728xf32>
    %776 = arith.addf %769, %775 : vector<2x728xf32>
    %777 = arith.index_cast %742 : i32 to index
    %c5_411 = arith.constant 5 : index
    %778 = memref.load %arg2[%777, %c5_411] : memref<32x9xf32, #tpu.memory_space<smem>>
    %c5_412 = arith.constant 5 : index
    %c0_413 = arith.constant 0 : index
    %c0_414 = arith.constant 0 : index
    %779 = vector.load %arg1[%c5_412, %c0_413, %c0_414] : memref<9x2x728xf32, #tpu.memory_space<vmem>>, vector<1x2x728xf32>
    %780 = vector.shape_cast %779 : vector<1x2x728xf32> to vector<2x728xf32>
    %781 = vector.broadcast %778 : f32 to vector<2x728xf32>
    %782 = arith.mulf %781, %780 : vector<2x728xf32>
    %783 = arith.addf %776, %782 : vector<2x728xf32>
    %784 = arith.index_cast %742 : i32 to index
    %c6_415 = arith.constant 6 : index
    %785 = memref.load %arg2[%784, %c6_415] : memref<32x9xf32, #tpu.memory_space<smem>>
    %c6_416 = arith.constant 6 : index
    %c0_417 = arith.constant 0 : index
    %c0_418 = arith.constant 0 : index
    %786 = vector.load %arg1[%c6_416, %c0_417, %c0_418] : memref<9x2x728xf32, #tpu.memory_space<vmem>>, vector<1x2x728xf32>
    %787 = vector.shape_cast %786 : vector<1x2x728xf32> to vector<2x728xf32>
    %788 = vector.broadcast %785 : f32 to vector<2x728xf32>
    %789 = arith.mulf %788, %787 : vector<2x728xf32>
    %790 = arith.addf %783, %789 : vector<2x728xf32>
    %791 = arith.index_cast %742 : i32 to index
    %c7_419 = arith.constant 7 : index
    %792 = memref.load %arg2[%791, %c7_419] : memref<32x9xf32, #tpu.memory_space<smem>>
    %c7_420 = arith.constant 7 : index
    %c0_421 = arith.constant 0 : index
    %c0_422 = arith.constant 0 : index
    %793 = vector.load %arg1[%c7_420, %c0_421, %c0_422] : memref<9x2x728xf32, #tpu.memory_space<vmem>>, vector<1x2x728xf32>
    %794 = vector.shape_cast %793 : vector<1x2x728xf32> to vector<2x728xf32>
    %795 = vector.broadcast %792 : f32 to vector<2x728xf32>
    %796 = arith.mulf %795, %794 : vector<2x728xf32>
    %797 = arith.addf %790, %796 : vector<2x728xf32>
    %798 = arith.index_cast %742 : i32 to index
    %c8_423 = arith.constant 8 : index
    %799 = memref.load %arg2[%798, %c8_423] : memref<32x9xf32, #tpu.memory_space<smem>>
    %c8_424 = arith.constant 8 : index
    %c0_425 = arith.constant 0 : index
    %c0_426 = arith.constant 0 : index
    %800 = vector.load %arg1[%c8_424, %c0_425, %c0_426] : memref<9x2x728xf32, #tpu.memory_space<vmem>>, vector<1x2x728xf32>
    %801 = vector.shape_cast %800 : vector<1x2x728xf32> to vector<2x728xf32>
    %802 = vector.broadcast %799 : f32 to vector<2x728xf32>
    %803 = arith.mulf %802, %801 : vector<2x728xf32>
    %804 = arith.addf %797, %803 : vector<2x728xf32>
    %805 = arith.index_cast %742 : i32 to index
    %806 = memref.load %arg3[%805] : memref<32xf32, #tpu.memory_space<smem>>
    %807 = vector.broadcast %806 : f32 to vector<2x728xf32>
    %808 = arith.addf %804, %807 : vector<2x728xf32>
    %cst_427 = arith.constant 0.000000e+00 : f32
    %809 = vector.broadcast %cst_427 : f32 to vector<2x728xf32>
    %810 = arith.maximumf %808, %809 : vector<2x728xf32>
    %811 = arith.index_cast %c10_i32 : i32 to index
    %c0_428 = arith.constant 0 : index
    %c0_429 = arith.constant 0 : index
    %812 = vector.load %arg4[%811, %c0_428, %c0_429] : memref<16x10x728xf32, #tpu.memory_space<vmem>>, vector<1x10x728xf32>
    %813 = vector.shape_cast %812 : vector<1x10x728xf32> to vector<10x728xf32>
    %cst_430 = arith.constant dense<0.000000e+00> : vector<2x10xf32>
    %814 = tpu.matmul %810, %813, %cst_430 {dimension_numbers = #tpu.dot_dimension_numbers<[1], [1], [0], [0], [0, 0, 1, 0], [], []>} : vector<2x728xf32>, vector<10x728xf32>, vector<2x10xf32> -> vector<2x10xf32>
    %815 = arith.addf %741, %814 : vector<2x10xf32>
    %c11_i32 = arith.constant 11 : i32
    %816 = arith.addi %0, %c11_i32 : i32
    %817 = arith.index_cast %816 : i32 to index
    %c0_431 = arith.constant 0 : index
    %818 = memref.load %arg2[%817, %c0_431] : memref<32x9xf32, #tpu.memory_space<smem>>
    %c0_432 = arith.constant 0 : index
    %c0_433 = arith.constant 0 : index
    %c0_434 = arith.constant 0 : index
    %819 = vector.load %arg1[%c0_432, %c0_433, %c0_434] : memref<9x2x728xf32, #tpu.memory_space<vmem>>, vector<1x2x728xf32>
    %820 = vector.shape_cast %819 : vector<1x2x728xf32> to vector<2x728xf32>
    %821 = vector.broadcast %818 : f32 to vector<2x728xf32>
    %822 = arith.mulf %821, %820 : vector<2x728xf32>
    %823 = arith.index_cast %816 : i32 to index
    %c1_435 = arith.constant 1 : index
    %824 = memref.load %arg2[%823, %c1_435] : memref<32x9xf32, #tpu.memory_space<smem>>
    %c1_436 = arith.constant 1 : index
    %c0_437 = arith.constant 0 : index
    %c0_438 = arith.constant 0 : index
    %825 = vector.load %arg1[%c1_436, %c0_437, %c0_438] : memref<9x2x728xf32, #tpu.memory_space<vmem>>, vector<1x2x728xf32>
    %826 = vector.shape_cast %825 : vector<1x2x728xf32> to vector<2x728xf32>
    %827 = vector.broadcast %824 : f32 to vector<2x728xf32>
    %828 = arith.mulf %827, %826 : vector<2x728xf32>
    %829 = arith.addf %822, %828 : vector<2x728xf32>
    %830 = arith.index_cast %816 : i32 to index
    %c2_439 = arith.constant 2 : index
    %831 = memref.load %arg2[%830, %c2_439] : memref<32x9xf32, #tpu.memory_space<smem>>
    %c2_440 = arith.constant 2 : index
    %c0_441 = arith.constant 0 : index
    %c0_442 = arith.constant 0 : index
    %832 = vector.load %arg1[%c2_440, %c0_441, %c0_442] : memref<9x2x728xf32, #tpu.memory_space<vmem>>, vector<1x2x728xf32>
    %833 = vector.shape_cast %832 : vector<1x2x728xf32> to vector<2x728xf32>
    %834 = vector.broadcast %831 : f32 to vector<2x728xf32>
    %835 = arith.mulf %834, %833 : vector<2x728xf32>
    %836 = arith.addf %829, %835 : vector<2x728xf32>
    %837 = arith.index_cast %816 : i32 to index
    %c3_443 = arith.constant 3 : index
    %838 = memref.load %arg2[%837, %c3_443] : memref<32x9xf32, #tpu.memory_space<smem>>
    %c3_444 = arith.constant 3 : index
    %c0_445 = arith.constant 0 : index
    %c0_446 = arith.constant 0 : index
    %839 = vector.load %arg1[%c3_444, %c0_445, %c0_446] : memref<9x2x728xf32, #tpu.memory_space<vmem>>, vector<1x2x728xf32>
    %840 = vector.shape_cast %839 : vector<1x2x728xf32> to vector<2x728xf32>
    %841 = vector.broadcast %838 : f32 to vector<2x728xf32>
    %842 = arith.mulf %841, %840 : vector<2x728xf32>
    %843 = arith.addf %836, %842 : vector<2x728xf32>
    %844 = arith.index_cast %816 : i32 to index
    %c4_447 = arith.constant 4 : index
    %845 = memref.load %arg2[%844, %c4_447] : memref<32x9xf32, #tpu.memory_space<smem>>
    %c4_448 = arith.constant 4 : index
    %c0_449 = arith.constant 0 : index
    %c0_450 = arith.constant 0 : index
    %846 = vector.load %arg1[%c4_448, %c0_449, %c0_450] : memref<9x2x728xf32, #tpu.memory_space<vmem>>, vector<1x2x728xf32>
    %847 = vector.shape_cast %846 : vector<1x2x728xf32> to vector<2x728xf32>
    %848 = vector.broadcast %845 : f32 to vector<2x728xf32>
    %849 = arith.mulf %848, %847 : vector<2x728xf32>
    %850 = arith.addf %843, %849 : vector<2x728xf32>
    %851 = arith.index_cast %816 : i32 to index
    %c5_451 = arith.constant 5 : index
    %852 = memref.load %arg2[%851, %c5_451] : memref<32x9xf32, #tpu.memory_space<smem>>
    %c5_452 = arith.constant 5 : index
    %c0_453 = arith.constant 0 : index
    %c0_454 = arith.constant 0 : index
    %853 = vector.load %arg1[%c5_452, %c0_453, %c0_454] : memref<9x2x728xf32, #tpu.memory_space<vmem>>, vector<1x2x728xf32>
    %854 = vector.shape_cast %853 : vector<1x2x728xf32> to vector<2x728xf32>
    %855 = vector.broadcast %852 : f32 to vector<2x728xf32>
    %856 = arith.mulf %855, %854 : vector<2x728xf32>
    %857 = arith.addf %850, %856 : vector<2x728xf32>
    %858 = arith.index_cast %816 : i32 to index
    %c6_455 = arith.constant 6 : index
    %859 = memref.load %arg2[%858, %c6_455] : memref<32x9xf32, #tpu.memory_space<smem>>
    %c6_456 = arith.constant 6 : index
    %c0_457 = arith.constant 0 : index
    %c0_458 = arith.constant 0 : index
    %860 = vector.load %arg1[%c6_456, %c0_457, %c0_458] : memref<9x2x728xf32, #tpu.memory_space<vmem>>, vector<1x2x728xf32>
    %861 = vector.shape_cast %860 : vector<1x2x728xf32> to vector<2x728xf32>
    %862 = vector.broadcast %859 : f32 to vector<2x728xf32>
    %863 = arith.mulf %862, %861 : vector<2x728xf32>
    %864 = arith.addf %857, %863 : vector<2x728xf32>
    %865 = arith.index_cast %816 : i32 to index
    %c7_459 = arith.constant 7 : index
    %866 = memref.load %arg2[%865, %c7_459] : memref<32x9xf32, #tpu.memory_space<smem>>
    %c7_460 = arith.constant 7 : index
    %c0_461 = arith.constant 0 : index
    %c0_462 = arith.constant 0 : index
    %867 = vector.load %arg1[%c7_460, %c0_461, %c0_462] : memref<9x2x728xf32, #tpu.memory_space<vmem>>, vector<1x2x728xf32>
    %868 = vector.shape_cast %867 : vector<1x2x728xf32> to vector<2x728xf32>
    %869 = vector.broadcast %866 : f32 to vector<2x728xf32>
    %870 = arith.mulf %869, %868 : vector<2x728xf32>
    %871 = arith.addf %864, %870 : vector<2x728xf32>
    %872 = arith.index_cast %816 : i32 to index
    %c8_463 = arith.constant 8 : index
    %873 = memref.load %arg2[%872, %c8_463] : memref<32x9xf32, #tpu.memory_space<smem>>
    %c8_464 = arith.constant 8 : index
    %c0_465 = arith.constant 0 : index
    %c0_466 = arith.constant 0 : index
    %874 = vector.load %arg1[%c8_464, %c0_465, %c0_466] : memref<9x2x728xf32, #tpu.memory_space<vmem>>, vector<1x2x728xf32>
    %875 = vector.shape_cast %874 : vector<1x2x728xf32> to vector<2x728xf32>
    %876 = vector.broadcast %873 : f32 to vector<2x728xf32>
    %877 = arith.mulf %876, %875 : vector<2x728xf32>
    %878 = arith.addf %871, %877 : vector<2x728xf32>
    %879 = arith.index_cast %816 : i32 to index
    %880 = memref.load %arg3[%879] : memref<32xf32, #tpu.memory_space<smem>>
    %881 = vector.broadcast %880 : f32 to vector<2x728xf32>
    %882 = arith.addf %878, %881 : vector<2x728xf32>
    %cst_467 = arith.constant 0.000000e+00 : f32
    %883 = vector.broadcast %cst_467 : f32 to vector<2x728xf32>
    %884 = arith.maximumf %882, %883 : vector<2x728xf32>
    %885 = arith.index_cast %c11_i32 : i32 to index
    %c0_468 = arith.constant 0 : index
    %c0_469 = arith.constant 0 : index
    %886 = vector.load %arg4[%885, %c0_468, %c0_469] : memref<16x10x728xf32, #tpu.memory_space<vmem>>, vector<1x10x728xf32>
    %887 = vector.shape_cast %886 : vector<1x10x728xf32> to vector<10x728xf32>
    %cst_470 = arith.constant dense<0.000000e+00> : vector<2x10xf32>
    %888 = tpu.matmul %884, %887, %cst_470 {dimension_numbers = #tpu.dot_dimension_numbers<[1], [1], [0], [0], [0, 0, 1, 0], [], []>} : vector<2x728xf32>, vector<10x728xf32>, vector<2x10xf32> -> vector<2x10xf32>
    %889 = arith.addf %815, %888 : vector<2x10xf32>
    %c12_i32 = arith.constant 12 : i32
    %890 = arith.addi %0, %c12_i32 : i32
    %891 = arith.index_cast %890 : i32 to index
    %c0_471 = arith.constant 0 : index
    %892 = memref.load %arg2[%891, %c0_471] : memref<32x9xf32, #tpu.memory_space<smem>>
    %c0_472 = arith.constant 0 : index
    %c0_473 = arith.constant 0 : index
    %c0_474 = arith.constant 0 : index
    %893 = vector.load %arg1[%c0_472, %c0_473, %c0_474] : memref<9x2x728xf32, #tpu.memory_space<vmem>>, vector<1x2x728xf32>
    %894 = vector.shape_cast %893 : vector<1x2x728xf32> to vector<2x728xf32>
    %895 = vector.broadcast %892 : f32 to vector<2x728xf32>
    %896 = arith.mulf %895, %894 : vector<2x728xf32>
    %897 = arith.index_cast %890 : i32 to index
    %c1_475 = arith.constant 1 : index
    %898 = memref.load %arg2[%897, %c1_475] : memref<32x9xf32, #tpu.memory_space<smem>>
    %c1_476 = arith.constant 1 : index
    %c0_477 = arith.constant 0 : index
    %c0_478 = arith.constant 0 : index
    %899 = vector.load %arg1[%c1_476, %c0_477, %c0_478] : memref<9x2x728xf32, #tpu.memory_space<vmem>>, vector<1x2x728xf32>
    %900 = vector.shape_cast %899 : vector<1x2x728xf32> to vector<2x728xf32>
    %901 = vector.broadcast %898 : f32 to vector<2x728xf32>
    %902 = arith.mulf %901, %900 : vector<2x728xf32>
    %903 = arith.addf %896, %902 : vector<2x728xf32>
    %904 = arith.index_cast %890 : i32 to index
    %c2_479 = arith.constant 2 : index
    %905 = memref.load %arg2[%904, %c2_479] : memref<32x9xf32, #tpu.memory_space<smem>>
    %c2_480 = arith.constant 2 : index
    %c0_481 = arith.constant 0 : index
    %c0_482 = arith.constant 0 : index
    %906 = vector.load %arg1[%c2_480, %c0_481, %c0_482] : memref<9x2x728xf32, #tpu.memory_space<vmem>>, vector<1x2x728xf32>
    %907 = vector.shape_cast %906 : vector<1x2x728xf32> to vector<2x728xf32>
    %908 = vector.broadcast %905 : f32 to vector<2x728xf32>
    %909 = arith.mulf %908, %907 : vector<2x728xf32>
    %910 = arith.addf %903, %909 : vector<2x728xf32>
    %911 = arith.index_cast %890 : i32 to index
    %c3_483 = arith.constant 3 : index
    %912 = memref.load %arg2[%911, %c3_483] : memref<32x9xf32, #tpu.memory_space<smem>>
    %c3_484 = arith.constant 3 : index
    %c0_485 = arith.constant 0 : index
    %c0_486 = arith.constant 0 : index
    %913 = vector.load %arg1[%c3_484, %c0_485, %c0_486] : memref<9x2x728xf32, #tpu.memory_space<vmem>>, vector<1x2x728xf32>
    %914 = vector.shape_cast %913 : vector<1x2x728xf32> to vector<2x728xf32>
    %915 = vector.broadcast %912 : f32 to vector<2x728xf32>
    %916 = arith.mulf %915, %914 : vector<2x728xf32>
    %917 = arith.addf %910, %916 : vector<2x728xf32>
    %918 = arith.index_cast %890 : i32 to index
    %c4_487 = arith.constant 4 : index
    %919 = memref.load %arg2[%918, %c4_487] : memref<32x9xf32, #tpu.memory_space<smem>>
    %c4_488 = arith.constant 4 : index
    %c0_489 = arith.constant 0 : index
    %c0_490 = arith.constant 0 : index
    %920 = vector.load %arg1[%c4_488, %c0_489, %c0_490] : memref<9x2x728xf32, #tpu.memory_space<vmem>>, vector<1x2x728xf32>
    %921 = vector.shape_cast %920 : vector<1x2x728xf32> to vector<2x728xf32>
    %922 = vector.broadcast %919 : f32 to vector<2x728xf32>
    %923 = arith.mulf %922, %921 : vector<2x728xf32>
    %924 = arith.addf %917, %923 : vector<2x728xf32>
    %925 = arith.index_cast %890 : i32 to index
    %c5_491 = arith.constant 5 : index
    %926 = memref.load %arg2[%925, %c5_491] : memref<32x9xf32, #tpu.memory_space<smem>>
    %c5_492 = arith.constant 5 : index
    %c0_493 = arith.constant 0 : index
    %c0_494 = arith.constant 0 : index
    %927 = vector.load %arg1[%c5_492, %c0_493, %c0_494] : memref<9x2x728xf32, #tpu.memory_space<vmem>>, vector<1x2x728xf32>
    %928 = vector.shape_cast %927 : vector<1x2x728xf32> to vector<2x728xf32>
    %929 = vector.broadcast %926 : f32 to vector<2x728xf32>
    %930 = arith.mulf %929, %928 : vector<2x728xf32>
    %931 = arith.addf %924, %930 : vector<2x728xf32>
    %932 = arith.index_cast %890 : i32 to index
    %c6_495 = arith.constant 6 : index
    %933 = memref.load %arg2[%932, %c6_495] : memref<32x9xf32, #tpu.memory_space<smem>>
    %c6_496 = arith.constant 6 : index
    %c0_497 = arith.constant 0 : index
    %c0_498 = arith.constant 0 : index
    %934 = vector.load %arg1[%c6_496, %c0_497, %c0_498] : memref<9x2x728xf32, #tpu.memory_space<vmem>>, vector<1x2x728xf32>
    %935 = vector.shape_cast %934 : vector<1x2x728xf32> to vector<2x728xf32>
    %936 = vector.broadcast %933 : f32 to vector<2x728xf32>
    %937 = arith.mulf %936, %935 : vector<2x728xf32>
    %938 = arith.addf %931, %937 : vector<2x728xf32>
    %939 = arith.index_cast %890 : i32 to index
    %c7_499 = arith.constant 7 : index
    %940 = memref.load %arg2[%939, %c7_499] : memref<32x9xf32, #tpu.memory_space<smem>>
    %c7_500 = arith.constant 7 : index
    %c0_501 = arith.constant 0 : index
    %c0_502 = arith.constant 0 : index
    %941 = vector.load %arg1[%c7_500, %c0_501, %c0_502] : memref<9x2x728xf32, #tpu.memory_space<vmem>>, vector<1x2x728xf32>
    %942 = vector.shape_cast %941 : vector<1x2x728xf32> to vector<2x728xf32>
    %943 = vector.broadcast %940 : f32 to vector<2x728xf32>
    %944 = arith.mulf %943, %942 : vector<2x728xf32>
    %945 = arith.addf %938, %944 : vector<2x728xf32>
    %946 = arith.index_cast %890 : i32 to index
    %c8_503 = arith.constant 8 : index
    %947 = memref.load %arg2[%946, %c8_503] : memref<32x9xf32, #tpu.memory_space<smem>>
    %c8_504 = arith.constant 8 : index
    %c0_505 = arith.constant 0 : index
    %c0_506 = arith.constant 0 : index
    %948 = vector.load %arg1[%c8_504, %c0_505, %c0_506] : memref<9x2x728xf32, #tpu.memory_space<vmem>>, vector<1x2x728xf32>
    %949 = vector.shape_cast %948 : vector<1x2x728xf32> to vector<2x728xf32>
    %950 = vector.broadcast %947 : f32 to vector<2x728xf32>
    %951 = arith.mulf %950, %949 : vector<2x728xf32>
    %952 = arith.addf %945, %951 : vector<2x728xf32>
    %953 = arith.index_cast %890 : i32 to index
    %954 = memref.load %arg3[%953] : memref<32xf32, #tpu.memory_space<smem>>
    %955 = vector.broadcast %954 : f32 to vector<2x728xf32>
    %956 = arith.addf %952, %955 : vector<2x728xf32>
    %cst_507 = arith.constant 0.000000e+00 : f32
    %957 = vector.broadcast %cst_507 : f32 to vector<2x728xf32>
    %958 = arith.maximumf %956, %957 : vector<2x728xf32>
    %959 = arith.index_cast %c12_i32 : i32 to index
    %c0_508 = arith.constant 0 : index
    %c0_509 = arith.constant 0 : index
    %960 = vector.load %arg4[%959, %c0_508, %c0_509] : memref<16x10x728xf32, #tpu.memory_space<vmem>>, vector<1x10x728xf32>
    %961 = vector.shape_cast %960 : vector<1x10x728xf32> to vector<10x728xf32>
    %cst_510 = arith.constant dense<0.000000e+00> : vector<2x10xf32>
    %962 = tpu.matmul %958, %961, %cst_510 {dimension_numbers = #tpu.dot_dimension_numbers<[1], [1], [0], [0], [0, 0, 1, 0], [], []>} : vector<2x728xf32>, vector<10x728xf32>, vector<2x10xf32> -> vector<2x10xf32>
    %963 = arith.addf %889, %962 : vector<2x10xf32>
    %c13_i32 = arith.constant 13 : i32
    %964 = arith.addi %0, %c13_i32 : i32
    %965 = arith.index_cast %964 : i32 to index
    %c0_511 = arith.constant 0 : index
    %966 = memref.load %arg2[%965, %c0_511] : memref<32x9xf32, #tpu.memory_space<smem>>
    %c0_512 = arith.constant 0 : index
    %c0_513 = arith.constant 0 : index
    %c0_514 = arith.constant 0 : index
    %967 = vector.load %arg1[%c0_512, %c0_513, %c0_514] : memref<9x2x728xf32, #tpu.memory_space<vmem>>, vector<1x2x728xf32>
    %968 = vector.shape_cast %967 : vector<1x2x728xf32> to vector<2x728xf32>
    %969 = vector.broadcast %966 : f32 to vector<2x728xf32>
    %970 = arith.mulf %969, %968 : vector<2x728xf32>
    %971 = arith.index_cast %964 : i32 to index
    %c1_515 = arith.constant 1 : index
    %972 = memref.load %arg2[%971, %c1_515] : memref<32x9xf32, #tpu.memory_space<smem>>
    %c1_516 = arith.constant 1 : index
    %c0_517 = arith.constant 0 : index
    %c0_518 = arith.constant 0 : index
    %973 = vector.load %arg1[%c1_516, %c0_517, %c0_518] : memref<9x2x728xf32, #tpu.memory_space<vmem>>, vector<1x2x728xf32>
    %974 = vector.shape_cast %973 : vector<1x2x728xf32> to vector<2x728xf32>
    %975 = vector.broadcast %972 : f32 to vector<2x728xf32>
    %976 = arith.mulf %975, %974 : vector<2x728xf32>
    %977 = arith.addf %970, %976 : vector<2x728xf32>
    %978 = arith.index_cast %964 : i32 to index
    %c2_519 = arith.constant 2 : index
    %979 = memref.load %arg2[%978, %c2_519] : memref<32x9xf32, #tpu.memory_space<smem>>
    %c2_520 = arith.constant 2 : index
    %c0_521 = arith.constant 0 : index
    %c0_522 = arith.constant 0 : index
    %980 = vector.load %arg1[%c2_520, %c0_521, %c0_522] : memref<9x2x728xf32, #tpu.memory_space<vmem>>, vector<1x2x728xf32>
    %981 = vector.shape_cast %980 : vector<1x2x728xf32> to vector<2x728xf32>
    %982 = vector.broadcast %979 : f32 to vector<2x728xf32>
    %983 = arith.mulf %982, %981 : vector<2x728xf32>
    %984 = arith.addf %977, %983 : vector<2x728xf32>
    %985 = arith.index_cast %964 : i32 to index
    %c3_523 = arith.constant 3 : index
    %986 = memref.load %arg2[%985, %c3_523] : memref<32x9xf32, #tpu.memory_space<smem>>
    %c3_524 = arith.constant 3 : index
    %c0_525 = arith.constant 0 : index
    %c0_526 = arith.constant 0 : index
    %987 = vector.load %arg1[%c3_524, %c0_525, %c0_526] : memref<9x2x728xf32, #tpu.memory_space<vmem>>, vector<1x2x728xf32>
    %988 = vector.shape_cast %987 : vector<1x2x728xf32> to vector<2x728xf32>
    %989 = vector.broadcast %986 : f32 to vector<2x728xf32>
    %990 = arith.mulf %989, %988 : vector<2x728xf32>
    %991 = arith.addf %984, %990 : vector<2x728xf32>
    %992 = arith.index_cast %964 : i32 to index
    %c4_527 = arith.constant 4 : index
    %993 = memref.load %arg2[%992, %c4_527] : memref<32x9xf32, #tpu.memory_space<smem>>
    %c4_528 = arith.constant 4 : index
    %c0_529 = arith.constant 0 : index
    %c0_530 = arith.constant 0 : index
    %994 = vector.load %arg1[%c4_528, %c0_529, %c0_530] : memref<9x2x728xf32, #tpu.memory_space<vmem>>, vector<1x2x728xf32>
    %995 = vector.shape_cast %994 : vector<1x2x728xf32> to vector<2x728xf32>
    %996 = vector.broadcast %993 : f32 to vector<2x728xf32>
    %997 = arith.mulf %996, %995 : vector<2x728xf32>
    %998 = arith.addf %991, %997 : vector<2x728xf32>
    %999 = arith.index_cast %964 : i32 to index
    %c5_531 = arith.constant 5 : index
    %1000 = memref.load %arg2[%999, %c5_531] : memref<32x9xf32, #tpu.memory_space<smem>>
    %c5_532 = arith.constant 5 : index
    %c0_533 = arith.constant 0 : index
    %c0_534 = arith.constant 0 : index
    %1001 = vector.load %arg1[%c5_532, %c0_533, %c0_534] : memref<9x2x728xf32, #tpu.memory_space<vmem>>, vector<1x2x728xf32>
    %1002 = vector.shape_cast %1001 : vector<1x2x728xf32> to vector<2x728xf32>
    %1003 = vector.broadcast %1000 : f32 to vector<2x728xf32>
    %1004 = arith.mulf %1003, %1002 : vector<2x728xf32>
    %1005 = arith.addf %998, %1004 : vector<2x728xf32>
    %1006 = arith.index_cast %964 : i32 to index
    %c6_535 = arith.constant 6 : index
    %1007 = memref.load %arg2[%1006, %c6_535] : memref<32x9xf32, #tpu.memory_space<smem>>
    %c6_536 = arith.constant 6 : index
    %c0_537 = arith.constant 0 : index
    %c0_538 = arith.constant 0 : index
    %1008 = vector.load %arg1[%c6_536, %c0_537, %c0_538] : memref<9x2x728xf32, #tpu.memory_space<vmem>>, vector<1x2x728xf32>
    %1009 = vector.shape_cast %1008 : vector<1x2x728xf32> to vector<2x728xf32>
    %1010 = vector.broadcast %1007 : f32 to vector<2x728xf32>
    %1011 = arith.mulf %1010, %1009 : vector<2x728xf32>
    %1012 = arith.addf %1005, %1011 : vector<2x728xf32>
    %1013 = arith.index_cast %964 : i32 to index
    %c7_539 = arith.constant 7 : index
    %1014 = memref.load %arg2[%1013, %c7_539] : memref<32x9xf32, #tpu.memory_space<smem>>
    %c7_540 = arith.constant 7 : index
    %c0_541 = arith.constant 0 : index
    %c0_542 = arith.constant 0 : index
    %1015 = vector.load %arg1[%c7_540, %c0_541, %c0_542] : memref<9x2x728xf32, #tpu.memory_space<vmem>>, vector<1x2x728xf32>
    %1016 = vector.shape_cast %1015 : vector<1x2x728xf32> to vector<2x728xf32>
    %1017 = vector.broadcast %1014 : f32 to vector<2x728xf32>
    %1018 = arith.mulf %1017, %1016 : vector<2x728xf32>
    %1019 = arith.addf %1012, %1018 : vector<2x728xf32>
    %1020 = arith.index_cast %964 : i32 to index
    %c8_543 = arith.constant 8 : index
    %1021 = memref.load %arg2[%1020, %c8_543] : memref<32x9xf32, #tpu.memory_space<smem>>
    %c8_544 = arith.constant 8 : index
    %c0_545 = arith.constant 0 : index
    %c0_546 = arith.constant 0 : index
    %1022 = vector.load %arg1[%c8_544, %c0_545, %c0_546] : memref<9x2x728xf32, #tpu.memory_space<vmem>>, vector<1x2x728xf32>
    %1023 = vector.shape_cast %1022 : vector<1x2x728xf32> to vector<2x728xf32>
    %1024 = vector.broadcast %1021 : f32 to vector<2x728xf32>
    %1025 = arith.mulf %1024, %1023 : vector<2x728xf32>
    %1026 = arith.addf %1019, %1025 : vector<2x728xf32>
    %1027 = arith.index_cast %964 : i32 to index
    %1028 = memref.load %arg3[%1027] : memref<32xf32, #tpu.memory_space<smem>>
    %1029 = vector.broadcast %1028 : f32 to vector<2x728xf32>
    %1030 = arith.addf %1026, %1029 : vector<2x728xf32>
    %cst_547 = arith.constant 0.000000e+00 : f32
    %1031 = vector.broadcast %cst_547 : f32 to vector<2x728xf32>
    %1032 = arith.maximumf %1030, %1031 : vector<2x728xf32>
    %1033 = arith.index_cast %c13_i32 : i32 to index
    %c0_548 = arith.constant 0 : index
    %c0_549 = arith.constant 0 : index
    %1034 = vector.load %arg4[%1033, %c0_548, %c0_549] : memref<16x10x728xf32, #tpu.memory_space<vmem>>, vector<1x10x728xf32>
    %1035 = vector.shape_cast %1034 : vector<1x10x728xf32> to vector<10x728xf32>
    %cst_550 = arith.constant dense<0.000000e+00> : vector<2x10xf32>
    %1036 = tpu.matmul %1032, %1035, %cst_550 {dimension_numbers = #tpu.dot_dimension_numbers<[1], [1], [0], [0], [0, 0, 1, 0], [], []>} : vector<2x728xf32>, vector<10x728xf32>, vector<2x10xf32> -> vector<2x10xf32>
    %1037 = arith.addf %963, %1036 : vector<2x10xf32>
    %c14_i32 = arith.constant 14 : i32
    %1038 = arith.addi %0, %c14_i32 : i32
    %1039 = arith.index_cast %1038 : i32 to index
    %c0_551 = arith.constant 0 : index
    %1040 = memref.load %arg2[%1039, %c0_551] : memref<32x9xf32, #tpu.memory_space<smem>>
    %c0_552 = arith.constant 0 : index
    %c0_553 = arith.constant 0 : index
    %c0_554 = arith.constant 0 : index
    %1041 = vector.load %arg1[%c0_552, %c0_553, %c0_554] : memref<9x2x728xf32, #tpu.memory_space<vmem>>, vector<1x2x728xf32>
    %1042 = vector.shape_cast %1041 : vector<1x2x728xf32> to vector<2x728xf32>
    %1043 = vector.broadcast %1040 : f32 to vector<2x728xf32>
    %1044 = arith.mulf %1043, %1042 : vector<2x728xf32>
    %1045 = arith.index_cast %1038 : i32 to index
    %c1_555 = arith.constant 1 : index
    %1046 = memref.load %arg2[%1045, %c1_555] : memref<32x9xf32, #tpu.memory_space<smem>>
    %c1_556 = arith.constant 1 : index
    %c0_557 = arith.constant 0 : index
    %c0_558 = arith.constant 0 : index
    %1047 = vector.load %arg1[%c1_556, %c0_557, %c0_558] : memref<9x2x728xf32, #tpu.memory_space<vmem>>, vector<1x2x728xf32>
    %1048 = vector.shape_cast %1047 : vector<1x2x728xf32> to vector<2x728xf32>
    %1049 = vector.broadcast %1046 : f32 to vector<2x728xf32>
    %1050 = arith.mulf %1049, %1048 : vector<2x728xf32>
    %1051 = arith.addf %1044, %1050 : vector<2x728xf32>
    %1052 = arith.index_cast %1038 : i32 to index
    %c2_559 = arith.constant 2 : index
    %1053 = memref.load %arg2[%1052, %c2_559] : memref<32x9xf32, #tpu.memory_space<smem>>
    %c2_560 = arith.constant 2 : index
    %c0_561 = arith.constant 0 : index
    %c0_562 = arith.constant 0 : index
    %1054 = vector.load %arg1[%c2_560, %c0_561, %c0_562] : memref<9x2x728xf32, #tpu.memory_space<vmem>>, vector<1x2x728xf32>
    %1055 = vector.shape_cast %1054 : vector<1x2x728xf32> to vector<2x728xf32>
    %1056 = vector.broadcast %1053 : f32 to vector<2x728xf32>
    %1057 = arith.mulf %1056, %1055 : vector<2x728xf32>
    %1058 = arith.addf %1051, %1057 : vector<2x728xf32>
    %1059 = arith.index_cast %1038 : i32 to index
    %c3_563 = arith.constant 3 : index
    %1060 = memref.load %arg2[%1059, %c3_563] : memref<32x9xf32, #tpu.memory_space<smem>>
    %c3_564 = arith.constant 3 : index
    %c0_565 = arith.constant 0 : index
    %c0_566 = arith.constant 0 : index
    %1061 = vector.load %arg1[%c3_564, %c0_565, %c0_566] : memref<9x2x728xf32, #tpu.memory_space<vmem>>, vector<1x2x728xf32>
    %1062 = vector.shape_cast %1061 : vector<1x2x728xf32> to vector<2x728xf32>
    %1063 = vector.broadcast %1060 : f32 to vector<2x728xf32>
    %1064 = arith.mulf %1063, %1062 : vector<2x728xf32>
    %1065 = arith.addf %1058, %1064 : vector<2x728xf32>
    %1066 = arith.index_cast %1038 : i32 to index
    %c4_567 = arith.constant 4 : index
    %1067 = memref.load %arg2[%1066, %c4_567] : memref<32x9xf32, #tpu.memory_space<smem>>
    %c4_568 = arith.constant 4 : index
    %c0_569 = arith.constant 0 : index
    %c0_570 = arith.constant 0 : index
    %1068 = vector.load %arg1[%c4_568, %c0_569, %c0_570] : memref<9x2x728xf32, #tpu.memory_space<vmem>>, vector<1x2x728xf32>
    %1069 = vector.shape_cast %1068 : vector<1x2x728xf32> to vector<2x728xf32>
    %1070 = vector.broadcast %1067 : f32 to vector<2x728xf32>
    %1071 = arith.mulf %1070, %1069 : vector<2x728xf32>
    %1072 = arith.addf %1065, %1071 : vector<2x728xf32>
    %1073 = arith.index_cast %1038 : i32 to index
    %c5_571 = arith.constant 5 : index
    %1074 = memref.load %arg2[%1073, %c5_571] : memref<32x9xf32, #tpu.memory_space<smem>>
    %c5_572 = arith.constant 5 : index
    %c0_573 = arith.constant 0 : index
    %c0_574 = arith.constant 0 : index
    %1075 = vector.load %arg1[%c5_572, %c0_573, %c0_574] : memref<9x2x728xf32, #tpu.memory_space<vmem>>, vector<1x2x728xf32>
    %1076 = vector.shape_cast %1075 : vector<1x2x728xf32> to vector<2x728xf32>
    %1077 = vector.broadcast %1074 : f32 to vector<2x728xf32>
    %1078 = arith.mulf %1077, %1076 : vector<2x728xf32>
    %1079 = arith.addf %1072, %1078 : vector<2x728xf32>
    %1080 = arith.index_cast %1038 : i32 to index
    %c6_575 = arith.constant 6 : index
    %1081 = memref.load %arg2[%1080, %c6_575] : memref<32x9xf32, #tpu.memory_space<smem>>
    %c6_576 = arith.constant 6 : index
    %c0_577 = arith.constant 0 : index
    %c0_578 = arith.constant 0 : index
    %1082 = vector.load %arg1[%c6_576, %c0_577, %c0_578] : memref<9x2x728xf32, #tpu.memory_space<vmem>>, vector<1x2x728xf32>
    %1083 = vector.shape_cast %1082 : vector<1x2x728xf32> to vector<2x728xf32>
    %1084 = vector.broadcast %1081 : f32 to vector<2x728xf32>
    %1085 = arith.mulf %1084, %1083 : vector<2x728xf32>
    %1086 = arith.addf %1079, %1085 : vector<2x728xf32>
    %1087 = arith.index_cast %1038 : i32 to index
    %c7_579 = arith.constant 7 : index
    %1088 = memref.load %arg2[%1087, %c7_579] : memref<32x9xf32, #tpu.memory_space<smem>>
    %c7_580 = arith.constant 7 : index
    %c0_581 = arith.constant 0 : index
    %c0_582 = arith.constant 0 : index
    %1089 = vector.load %arg1[%c7_580, %c0_581, %c0_582] : memref<9x2x728xf32, #tpu.memory_space<vmem>>, vector<1x2x728xf32>
    %1090 = vector.shape_cast %1089 : vector<1x2x728xf32> to vector<2x728xf32>
    %1091 = vector.broadcast %1088 : f32 to vector<2x728xf32>
    %1092 = arith.mulf %1091, %1090 : vector<2x728xf32>
    %1093 = arith.addf %1086, %1092 : vector<2x728xf32>
    %1094 = arith.index_cast %1038 : i32 to index
    %c8_583 = arith.constant 8 : index
    %1095 = memref.load %arg2[%1094, %c8_583] : memref<32x9xf32, #tpu.memory_space<smem>>
    %c8_584 = arith.constant 8 : index
    %c0_585 = arith.constant 0 : index
    %c0_586 = arith.constant 0 : index
    %1096 = vector.load %arg1[%c8_584, %c0_585, %c0_586] : memref<9x2x728xf32, #tpu.memory_space<vmem>>, vector<1x2x728xf32>
    %1097 = vector.shape_cast %1096 : vector<1x2x728xf32> to vector<2x728xf32>
    %1098 = vector.broadcast %1095 : f32 to vector<2x728xf32>
    %1099 = arith.mulf %1098, %1097 : vector<2x728xf32>
    %1100 = arith.addf %1093, %1099 : vector<2x728xf32>
    %1101 = arith.index_cast %1038 : i32 to index
    %1102 = memref.load %arg3[%1101] : memref<32xf32, #tpu.memory_space<smem>>
    %1103 = vector.broadcast %1102 : f32 to vector<2x728xf32>
    %1104 = arith.addf %1100, %1103 : vector<2x728xf32>
    %cst_587 = arith.constant 0.000000e+00 : f32
    %1105 = vector.broadcast %cst_587 : f32 to vector<2x728xf32>
    %1106 = arith.maximumf %1104, %1105 : vector<2x728xf32>
    %1107 = arith.index_cast %c14_i32 : i32 to index
    %c0_588 = arith.constant 0 : index
    %c0_589 = arith.constant 0 : index
    %1108 = vector.load %arg4[%1107, %c0_588, %c0_589] : memref<16x10x728xf32, #tpu.memory_space<vmem>>, vector<1x10x728xf32>
    %1109 = vector.shape_cast %1108 : vector<1x10x728xf32> to vector<10x728xf32>
    %cst_590 = arith.constant dense<0.000000e+00> : vector<2x10xf32>
    %1110 = tpu.matmul %1106, %1109, %cst_590 {dimension_numbers = #tpu.dot_dimension_numbers<[1], [1], [0], [0], [0, 0, 1, 0], [], []>} : vector<2x728xf32>, vector<10x728xf32>, vector<2x10xf32> -> vector<2x10xf32>
    %1111 = arith.addf %1037, %1110 : vector<2x10xf32>
    %c15_i32 = arith.constant 15 : i32
    %1112 = arith.addi %0, %c15_i32 : i32
    %1113 = arith.index_cast %1112 : i32 to index
    %c0_591 = arith.constant 0 : index
    %1114 = memref.load %arg2[%1113, %c0_591] : memref<32x9xf32, #tpu.memory_space<smem>>
    %c0_592 = arith.constant 0 : index
    %c0_593 = arith.constant 0 : index
    %c0_594 = arith.constant 0 : index
    %1115 = vector.load %arg1[%c0_592, %c0_593, %c0_594] : memref<9x2x728xf32, #tpu.memory_space<vmem>>, vector<1x2x728xf32>
    %1116 = vector.shape_cast %1115 : vector<1x2x728xf32> to vector<2x728xf32>
    %1117 = vector.broadcast %1114 : f32 to vector<2x728xf32>
    %1118 = arith.mulf %1117, %1116 : vector<2x728xf32>
    %1119 = arith.index_cast %1112 : i32 to index
    %c1_595 = arith.constant 1 : index
    %1120 = memref.load %arg2[%1119, %c1_595] : memref<32x9xf32, #tpu.memory_space<smem>>
    %c1_596 = arith.constant 1 : index
    %c0_597 = arith.constant 0 : index
    %c0_598 = arith.constant 0 : index
    %1121 = vector.load %arg1[%c1_596, %c0_597, %c0_598] : memref<9x2x728xf32, #tpu.memory_space<vmem>>, vector<1x2x728xf32>
    %1122 = vector.shape_cast %1121 : vector<1x2x728xf32> to vector<2x728xf32>
    %1123 = vector.broadcast %1120 : f32 to vector<2x728xf32>
    %1124 = arith.mulf %1123, %1122 : vector<2x728xf32>
    %1125 = arith.addf %1118, %1124 : vector<2x728xf32>
    %1126 = arith.index_cast %1112 : i32 to index
    %c2_599 = arith.constant 2 : index
    %1127 = memref.load %arg2[%1126, %c2_599] : memref<32x9xf32, #tpu.memory_space<smem>>
    %c2_600 = arith.constant 2 : index
    %c0_601 = arith.constant 0 : index
    %c0_602 = arith.constant 0 : index
    %1128 = vector.load %arg1[%c2_600, %c0_601, %c0_602] : memref<9x2x728xf32, #tpu.memory_space<vmem>>, vector<1x2x728xf32>
    %1129 = vector.shape_cast %1128 : vector<1x2x728xf32> to vector<2x728xf32>
    %1130 = vector.broadcast %1127 : f32 to vector<2x728xf32>
    %1131 = arith.mulf %1130, %1129 : vector<2x728xf32>
    %1132 = arith.addf %1125, %1131 : vector<2x728xf32>
    %1133 = arith.index_cast %1112 : i32 to index
    %c3_603 = arith.constant 3 : index
    %1134 = memref.load %arg2[%1133, %c3_603] : memref<32x9xf32, #tpu.memory_space<smem>>
    %c3_604 = arith.constant 3 : index
    %c0_605 = arith.constant 0 : index
    %c0_606 = arith.constant 0 : index
    %1135 = vector.load %arg1[%c3_604, %c0_605, %c0_606] : memref<9x2x728xf32, #tpu.memory_space<vmem>>, vector<1x2x728xf32>
    %1136 = vector.shape_cast %1135 : vector<1x2x728xf32> to vector<2x728xf32>
    %1137 = vector.broadcast %1134 : f32 to vector<2x728xf32>
    %1138 = arith.mulf %1137, %1136 : vector<2x728xf32>
    %1139 = arith.addf %1132, %1138 : vector<2x728xf32>
    %1140 = arith.index_cast %1112 : i32 to index
    %c4_607 = arith.constant 4 : index
    %1141 = memref.load %arg2[%1140, %c4_607] : memref<32x9xf32, #tpu.memory_space<smem>>
    %c4_608 = arith.constant 4 : index
    %c0_609 = arith.constant 0 : index
    %c0_610 = arith.constant 0 : index
    %1142 = vector.load %arg1[%c4_608, %c0_609, %c0_610] : memref<9x2x728xf32, #tpu.memory_space<vmem>>, vector<1x2x728xf32>
    %1143 = vector.shape_cast %1142 : vector<1x2x728xf32> to vector<2x728xf32>
    %1144 = vector.broadcast %1141 : f32 to vector<2x728xf32>
    %1145 = arith.mulf %1144, %1143 : vector<2x728xf32>
    %1146 = arith.addf %1139, %1145 : vector<2x728xf32>
    %1147 = arith.index_cast %1112 : i32 to index
    %c5_611 = arith.constant 5 : index
    %1148 = memref.load %arg2[%1147, %c5_611] : memref<32x9xf32, #tpu.memory_space<smem>>
    %c5_612 = arith.constant 5 : index
    %c0_613 = arith.constant 0 : index
    %c0_614 = arith.constant 0 : index
    %1149 = vector.load %arg1[%c5_612, %c0_613, %c0_614] : memref<9x2x728xf32, #tpu.memory_space<vmem>>, vector<1x2x728xf32>
    %1150 = vector.shape_cast %1149 : vector<1x2x728xf32> to vector<2x728xf32>
    %1151 = vector.broadcast %1148 : f32 to vector<2x728xf32>
    %1152 = arith.mulf %1151, %1150 : vector<2x728xf32>
    %1153 = arith.addf %1146, %1152 : vector<2x728xf32>
    %1154 = arith.index_cast %1112 : i32 to index
    %c6_615 = arith.constant 6 : index
    %1155 = memref.load %arg2[%1154, %c6_615] : memref<32x9xf32, #tpu.memory_space<smem>>
    %c6_616 = arith.constant 6 : index
    %c0_617 = arith.constant 0 : index
    %c0_618 = arith.constant 0 : index
    %1156 = vector.load %arg1[%c6_616, %c0_617, %c0_618] : memref<9x2x728xf32, #tpu.memory_space<vmem>>, vector<1x2x728xf32>
    %1157 = vector.shape_cast %1156 : vector<1x2x728xf32> to vector<2x728xf32>
    %1158 = vector.broadcast %1155 : f32 to vector<2x728xf32>
    %1159 = arith.mulf %1158, %1157 : vector<2x728xf32>
    %1160 = arith.addf %1153, %1159 : vector<2x728xf32>
    %1161 = arith.index_cast %1112 : i32 to index
    %c7_619 = arith.constant 7 : index
    %1162 = memref.load %arg2[%1161, %c7_619] : memref<32x9xf32, #tpu.memory_space<smem>>
    %c7_620 = arith.constant 7 : index
    %c0_621 = arith.constant 0 : index
    %c0_622 = arith.constant 0 : index
    %1163 = vector.load %arg1[%c7_620, %c0_621, %c0_622] : memref<9x2x728xf32, #tpu.memory_space<vmem>>, vector<1x2x728xf32>
    %1164 = vector.shape_cast %1163 : vector<1x2x728xf32> to vector<2x728xf32>
    %1165 = vector.broadcast %1162 : f32 to vector<2x728xf32>
    %1166 = arith.mulf %1165, %1164 : vector<2x728xf32>
    %1167 = arith.addf %1160, %1166 : vector<2x728xf32>
    %1168 = arith.index_cast %1112 : i32 to index
    %c8_623 = arith.constant 8 : index
    %1169 = memref.load %arg2[%1168, %c8_623] : memref<32x9xf32, #tpu.memory_space<smem>>
    %c8_624 = arith.constant 8 : index
    %c0_625 = arith.constant 0 : index
    %c0_626 = arith.constant 0 : index
    %1170 = vector.load %arg1[%c8_624, %c0_625, %c0_626] : memref<9x2x728xf32, #tpu.memory_space<vmem>>, vector<1x2x728xf32>
    %1171 = vector.shape_cast %1170 : vector<1x2x728xf32> to vector<2x728xf32>
    %1172 = vector.broadcast %1169 : f32 to vector<2x728xf32>
    %1173 = arith.mulf %1172, %1171 : vector<2x728xf32>
    %1174 = arith.addf %1167, %1173 : vector<2x728xf32>
    %1175 = arith.index_cast %1112 : i32 to index
    %1176 = memref.load %arg3[%1175] : memref<32xf32, #tpu.memory_space<smem>>
    %1177 = vector.broadcast %1176 : f32 to vector<2x728xf32>
    %1178 = arith.addf %1174, %1177 : vector<2x728xf32>
    %cst_627 = arith.constant 0.000000e+00 : f32
    %1179 = vector.broadcast %cst_627 : f32 to vector<2x728xf32>
    %1180 = arith.maximumf %1178, %1179 : vector<2x728xf32>
    %1181 = arith.index_cast %c15_i32 : i32 to index
    %c0_628 = arith.constant 0 : index
    %c0_629 = arith.constant 0 : index
    %1182 = vector.load %arg4[%1181, %c0_628, %c0_629] : memref<16x10x728xf32, #tpu.memory_space<vmem>>, vector<1x10x728xf32>
    %1183 = vector.shape_cast %1182 : vector<1x10x728xf32> to vector<10x728xf32>
    %cst_630 = arith.constant dense<0.000000e+00> : vector<2x10xf32>
    %1184 = tpu.matmul %1180, %1183, %cst_630 {dimension_numbers = #tpu.dot_dimension_numbers<[1], [1], [0], [0], [0, 0, 1, 0], [], []>} : vector<2x728xf32>, vector<10x728xf32>, vector<2x10xf32> -> vector<2x10xf32>
    %1185 = arith.addf %1111, %1184 : vector<2x10xf32>
    %c16_i32_631 = arith.constant 16 : i32
    %c0_i32_632 = arith.constant 0 : i32
    %1186 = arith.cmpi eq, %arg0, %c0_i32_632 : i32
    %cst_633 = arith.constant 1.000000e+00 : f32
    %cst_634 = arith.constant 0.000000e+00 : f32
    %1187 = arith.select %1186, %cst_633, %cst_634 : f32
    %c0_635 = arith.constant 0 : index
    %c0_636 = arith.constant 0 : index
    %1188 = vector.load %arg5[%c0_635, %c0_636] : memref<1x10xf32, #tpu.memory_space<vmem>>, vector<1x10xf32>
    %1189 = vector.broadcast %1187 : f32 to vector<1x10xf32>
    %1190 = arith.mulf %1189, %1188 : vector<1x10xf32>
    %1191 = vector.broadcast %1190 : vector<1x10xf32> to vector<2x10xf32>
    %1192 = arith.addf %1185, %1191 : vector<2x10xf32>
    %c0_637 = arith.constant 0 : index
    %c0_638 = arith.constant 0 : index
    %c0_639 = arith.constant 0 : index
    %1193 = vector.load %arg6[%c0_637, %c0_638, %c0_639] : memref<1x2x10xf32, #tpu.memory_space<vmem>>, vector<1x2x10xf32>
    %1194 = vector.shape_cast %1193 : vector<1x2x10xf32> to vector<2x10xf32>
    %1195 = vector.shape_cast %1192 : vector<2x10xf32> to vector<1x2x10xf32>
    tpu.vector_store %arg6[%c0_637, %c0_638, %c0_639], %1195 {strides = array<i32>} : memref<1x2x10xf32, #tpu.memory_space<vmem>>, vector<1x2x10xf32>,
    return
  }
  func.func @transform_0(%arg0: i32) -> (i32, i32, i32) {
    %c0_i32 = arith.constant 0 : i32
    %c0_i32_0 = arith.constant 0 : i32
    %c0_i32_1 = arith.constant 0 : i32
    %c0_i32_2 = arith.constant 0 : i32
    return %c0_i32, %c0_i32_0, %c0_i32_1 : i32, i32, i32
  }
  func.func @transform_1(%arg0: i32) -> (i32, i32) {
    %c0_i32 = arith.constant 0 : i32
    %c0_i32_0 = arith.constant 0 : i32
    %c0_i32_1 = arith.constant 0 : i32
    return %c0_i32, %c0_i32_0 : i32, i32
  }
  func.func @transform_2(%arg0: i32) -> i32 {
    %c0_i32 = arith.constant 0 : i32
    %c0_i32_0 = arith.constant 0 : i32
    return %c0_i32 : i32
  }
  func.func @transform_3(%arg0: i32) -> (i32, i32, i32) {
    %c0_i32 = arith.constant 0 : i32
    %c0_i32_0 = arith.constant 0 : i32
    %c0_i32_1 = arith.constant 0 : i32
    return %arg0, %c0_i32, %c0_i32_0 : i32, i32, i32
  }
  func.func @transform_4(%arg0: i32) -> (i32, i32) {
    %c0_i32 = arith.constant 0 : i32
    %c0_i32_0 = arith.constant 0 : i32
    %c0_i32_1 = arith.constant 0 : i32
    return %c0_i32, %c0_i32_0 : i32, i32
  }
  func.func @transform_5(%arg0: i32) -> (i32, i32, i32) {
    %c0_i32 = arith.constant 0 : i32
    %c0_i32_0 = arith.constant 0 : i32
    %c0_i32_1 = arith.constant 0 : i32
    return %arg0, %c0_i32, %c0_i32_0 : i32, i32, i32
  }
}

</mosaic_0001>

<llo_original>
// kernel: mnist_forward.1
$region0: #{mnist_forward.1}
  #allocation0 [shape = 'u32[]', space=smem, size = 0x4, offset = 0x4, fixed_abs, tag = 'smem constant byte address 0x4 - core index']
  #allocation1 [shape = 'u32[72,128]{1,0:T(1,128)}', space=vmem, size = 0x9000, scoped, tag = 'internal scratch']
  %s0 = inlined_call_operand.vmem [shape: f32[9,2,728], index: 0, kind: input, shape index: {}]
  %s1 = inlined_call_operand.vmem [shape: f32[32,9], index: 1, kind: input, shape index: {}]
  %s2 = inlined_call_operand.vmem [shape: f32[32], index: 2, kind: input, shape index: {}]
  %s3 = inlined_call_operand.vmem [shape: f32[32,10,728], index: 3, kind: input, shape index: {}]
  %s4 = inlined_call_operand.vmem [shape: f32[1,10], index: 4, kind: input, shape index: {}]
  %s5 = inlined_call_operand.vmem [shape: f32[2,2,10], index: 5, kind: output, shape index: {}]
  %s6 = sld [smem:[#allocation0]]
  $region61: #{mnist_forward.1} parent=0
    _
  %s8 = ssub.s32 1, %s6
  %s9 = scalar_select 0, %s8, %s6
  $region1: #{mnist_forward.1} parent=0
    #allocation2 [shape = 'u8[16384]{0}', space=smem, size = 0x4000, scoped, tag = 'input window, operand 1, single buffered']
    #allocation3 [shape = 's32[2]{0}', space=sflag, size = 0x8, scoped, tag = 'scoped memory for mnist_forward.1']
    #allocation4 [shape = 'u8[512]{0}', space=smem, size = 0x200, scoped, tag = 'input window, operand 2, single buffered']
    #allocation5 [shape = 's32[1]{0}', space=sflag, size = 0x4, scoped, tag = 'scoped memory for mnist_forward.1']
    %10 = vsyncpa [#allocation3], 0
    %11 = vsyncpa [#allocation5], 0
    loop: start=0, step=1, limit=4
    $region2: #{mnist_forward.1} parent=1 // loop_pre_header
      _
    $region3: #{mnist_forward.1} parent=1 // loop_header
      %s13 = sphi 0, %s17
      %p14 = scmp.ge.s32.totalorder %s13, 4
      %s21 = sphi 0, %s21
      %s23 = sphi 0, %s21
      %s24 = sphi 0, %s23
      %s38 = sphi 0, %s24
      %s42 = sphi 0, %s42
      %s44 = sphi 0, %s42
      %s45 = sphi 0, %s44
      %s59 = sphi 0, %s45
      %s63 = sphi 0, %s63
      %s65 = sphi 0, %s63
      %s66 = sphi 0, %s65
      %s80 = sphi 0, %s66
      %s86 = sphi 0, %s88
      %s89 = sphi 0, %s86
      %s90 = sphi 0, %s89
      %s106 = sphi 0, %s90
      %s110 = sphi 0, %s110
      %s112 = sphi 0, %s110
      %s113 = sphi 0, %s112
      %s127 = sphi 0, %s113
      %s133 = sphi 0, %s135
      %s136 = sphi 0, %s133
      %s137 = sphi 0, %s136
      %s153 = sphi 0, %s137
    $region4: #{mnist_forward.1} parent=1 // loop_header_branch
      %16 = sbr.rel (%p14) target = $region8
    $region5: #{mnist_forward.1} parent=1 // loop_body
      %s18 = ssub.s32 %s13, 1
      %s19 = ssub.s32 %s13, 2
      %s20 = sadd.s32 %s13, 1
      %s22 = sadd.s32 %s21, 1
      %p25 = scmp.eq.s32.totalorder %s13, 1
      %p26 = scmp.ne.s32.totalorder %s21, %s23
      %p27 = scmp.eq.s32.totalorder %s13, 0
      %p28 = por %p26, %p27
      %p29 = scmp.ne.s32.totalorder %s21, %s23
      %p30 = scmp.eq.s32.totalorder %s18, 1
      %p31 = por %p29, %p30
      %p32 = scmp.ne.s32.totalorder %s23, %s24
      %p33 = scmp.eq.s32.totalorder %s18, 0
      %p34 = por %p32, %p33
      %p35 = scmp.ne.s32.totalorder %s23, %s24
      %p36 = scmp.eq.s32.totalorder %s19, 1
      %p37 = por %p35, %p36
      %p39 = scmp.ne.s32.totalorder %s24, %s38
      %p40 = scmp.eq.s32.totalorder %s19, 0
      %p41 = por %p39, %p40
      %s43 = sadd.s32 %s42, 1
      %p46 = scmp.eq.s32.totalorder %s13, 1
      %p47 = scmp.ne.s32.totalorder %s42, %s44
      %p48 = scmp.eq.s32.totalorder %s13, 0
      %p49 = por %p47, %p48
      %p50 = scmp.ne.s32.totalorder %s42, %s44
      %p51 = scmp.eq.s32.totalorder %s18, 1
      %p52 = por %p50, %p51
      %p53 = scmp.ne.s32.totalorder %s44, %s45
      %p54 = scmp.eq.s32.totalorder %s18, 0
      %p55 = por %p53, %p54
      %p56 = scmp.ne.s32.totalorder %s44, %s45
      %p57 = scmp.eq.s32.totalorder %s19, 1
      %p58 = por %p56, %p57
      %p60 = scmp.ne.s32.totalorder %s45, %s59
      %p61 = scmp.eq.s32.totalorder %s19, 0
      %p62 = por %p60, %p61
      %s64 = sadd.s32 %s63, 1
      %p67 = scmp.eq.s32.totalorder %s13, 1
      %p68 = scmp.ne.s32.totalorder %s63, %s65
      %p69 = scmp.eq.s32.totalorder %s13, 0
      %p70 = por %p68, %p69
      %p71 = scmp.ne.s32.totalorder %s63, %s65
      %p72 = scmp.eq.s32.totalorder %s18, 1
      %p73 = por %p71, %p72
      %p74 = scmp.ne.s32.totalorder %s65, %s66
      %p75 = scmp.eq.s32.totalorder %s18, 0
      %p76 = por %p74, %p75
      %p77 = scmp.ne.s32.totalorder %s65, %s66
      %p78 = scmp.eq.s32.totalorder %s19, 1
      %p79 = por %p77, %p78
      %p81 = scmp.ne.s32.totalorder %s66, %s80
      %p82 = scmp.eq.s32.totalorder %s19, 0
      %p83 = por %p81, %p82
      %s84 = ssub.s32 %s13, %s20
      %p85 = scmp.eq.s32.totalorder %s84, 0
      %s87 = sadd.s32 %s86, 1
      %s88 = scalar_select %p85, %s86, %s87
      %p91 = pneg %p85
      %p92 = scmp.eq.s32.totalorder %s13, 1
      %p93 = por %p91, %p92
      %p94 = scmp.ne.s32.totalorder %s86, %s89
      %p95 = scmp.eq.s32.totalorder %s13, 0
      %p96 = por %p94, %p95
      %p97 = scmp.ne.s32.totalorder %s86, %s89
      %p98 = scmp.eq.s32.totalorder %s18, 1
      %p99 = por %p97, %p98
      %p100 = scmp.ne.s32.totalorder %s89, %s90
      %p101 = scmp.eq.s32.totalorder %s18, 0
      %p102 = por %p100, %p101
      %p103 = scmp.ne.s32.totalorder %s89, %s90
      %p104 = scmp.eq.s32.totalorder %s19, 1
      %p105 = por %p103, %p104
      %p107 = scmp.ne.s32.totalorder %s90, %s106
      %p108 = scmp.eq.s32.totalorder %s19, 0
      %p109 = por %p107, %p108
      %s111 = sadd.s32 %s110, 1
      %p114 = scmp.eq.s32.totalorder %s13, 1
      %p115 = scmp.ne.s32.totalorder %s110, %s112
      %p116 = scmp.eq.s32.totalorder %s13, 0
      %p117 = por %p115, %p116
      %p118 = scmp.ne.s32.totalorder %s110, %s112
      %p119 = scmp.eq.s32.totalorder %s18, 1
      %p120 = por %p118, %p119
      %p121 = scmp.ne.s32.totalorder %s112, %s113
      %p122 = scmp.eq.s32.totalorder %s18, 0
      %p123 = por %p121, %p122
      %p124 = scmp.ne.s32.totalorder %s112, %s113
      %p125 = scmp.eq.s32.totalorder %s19, 1
      %p126 = por %p124, %p125
      %p128 = scmp.ne.s32.totalorder %s113, %s127
      %p129 = scmp.eq.s32.totalorder %s19, 0
      %p130 = por %p128, %p129
      %s131 = ssub.s32 %s13, %s20
      %p132 = scmp.eq.s32.totalorder %s131, 0
      %s134 = sadd.s32 %s133, 1
      %s135 = scalar_select %p132, %s133, %s134
      %p138 = pneg %p132
      %p139 = scmp.eq.s32.totalorder %s13, 1
      %p140 = por %p138, %p139
      %p141 = scmp.ne.s32.totalorder %s133, %s136
      %p142 = scmp.eq.s32.totalorder %s13, 0
      %p143 = por %p141, %p142
      %p144 = scmp.ne.s32.totalorder %s133, %s136
      %p145 = scmp.eq.s32.totalorder %s18, 1
      %p146 = por %p144, %p145
      %p147 = scmp.ne.s32.totalorder %s136, %s137
      %p148 = scmp.eq.s32.totalorder %s18, 0
      %p149 = por %p147, %p148
      %p150 = scmp.ne.s32.totalorder %s136, %s137
      %p151 = scmp.eq.s32.totalorder %s19, 1
      %p152 = por %p150, %p151
      %p154 = scmp.ne.s32.totalorder %s137, %s153
      %p155 = scmp.eq.s32.totalorder %s19, 0
      %p156 = por %p154, %p155
      %p157 = scmp.le.s32.totalorder 1, %s13
      %p158 = scmp.lt.s32.totalorder %s13, 3
      %p159 = pnand %p157, %p158
      %p160 = pneg %p159
      // Predicated region
      $region9: #{mnist_forward.1} parent=5 // pred_check
        _
      $region10: #{mnist_forward.1} parent=5 // pred_check_branch
        %162 = sbr.rel (%p159) target = $region12
      $region11: #{mnist_forward.1} parent=5 // pred_region
        %s163 = ssub.s32 %s13, 1
        // Predicated region
        $region13: #{mnist_forward.1} parent=11 // pred_check
          %p164 = pneg %p34
        $region14: #{mnist_forward.1} parent=11 // pred_check_branch
          %166 = sbr.rel (%p164) target = $region16
        $region15: #{mnist_forward.1} parent=11 // pred_region
          _
        $region16: #{mnist_forward.1} parent=11 // pred_fallthru
          _
        // Predicated region
        $region17: #{mnist_forward.1} parent=11 // pred_check
          %p167 = pneg %p55
        $region18: #{mnist_forward.1} parent=11 // pred_check_branch
          %169 = sbr.rel (%p167) target = $region20
        $region19: #{mnist_forward.1} parent=11 // pred_region
          %171 = vsyncadd [#allocation3], 0
          %s172 = sshll.u32 %s1, 4
          %s173 = int_to_ptr.vmem [resolvable:$true] %s172
          %178 = dma.vmem_to_smem %s173, 512, [#allocation2], [#allocation3], 128, 128, 8
        $region20: #{mnist_forward.1} parent=11 // pred_fallthru
          _
        // Predicated region
        $region21: #{mnist_forward.1} parent=11 // pred_check
          %p179 = pneg %p76
        $region22: #{mnist_forward.1} parent=11 // pred_check_branch
          %181 = sbr.rel (%p179) target = $region24
        $region23: #{mnist_forward.1} parent=11 // pred_region
          %183 = vsyncadd [#allocation5], 0
          %s185 = sshll.u32 %s2, 4
          %s186 = int_to_ptr.vmem [resolvable:$true] %s185
          %188 = dma.vmem_to_smem %s186, 16, [#allocation4], [#allocation5]
        $region24: #{mnist_forward.1} parent=11 // pred_fallthru
          _
        // Predicated region
        $region25: #{mnist_forward.1} parent=11 // pred_check
          %p189 = pneg %p123
        $region26: #{mnist_forward.1} parent=11 // pred_check_branch
          %191 = sbr.rel (%p189) target = $region28
        $region27: #{mnist_forward.1} parent=11 // pred_region
          _
        $region28: #{mnist_forward.1} parent=11 // pred_fallthru
          _
      $region12: #{mnist_forward.1} parent=5 // pred_fallthru
        _
      %p192 = scmp.lt.s32.totalorder %s13, 2
      // Predicated region
      $region29: #{mnist_forward.1} parent=5 // pred_check
        %p193 = pneg %p192
      $region30: #{mnist_forward.1} parent=5 // pred_check_branch
        %195 = sbr.rel (%p193) target = $region32
      $region31: #{mnist_forward.1} parent=5 // pred_region
        // Predicated region
        $region33: #{mnist_forward.1} parent=31 // pred_check
          %p196 = pneg %p96
        $region34: #{mnist_forward.1} parent=31 // pred_check_branch
          %198 = sbr.rel (%p196) target = $region36
        $region35: #{mnist_forward.1} parent=31 // pred_region
          %s199 = smul.u32 16, %s13
          %p200 = scmp.lt.s32.totalorder %s199, 31
          %s201 = scalar_select %p200, %s199, 31
          %s202 = smul.addr %s201, 12
          %s203 = smul.addr %s202, 8
          %s204 = scalar_lea.vmem %s3, %s203
          %s205 = smul.u32 16, %s13
        $region36: #{mnist_forward.1} parent=31 // pred_fallthru
          _
      $region32: #{mnist_forward.1} parent=5 // pred_fallthru
        _
      %p206 = scmp.le.s32.totalorder 1, %s13
      %p207 = scmp.lt.s32.totalorder %s13, 3
      %p208 = pnand %p206, %p207
      %p209 = pneg %p208
      // Predicated region
      $region37: #{mnist_forward.1} parent=5 // pred_check
        _
      $region38: #{mnist_forward.1} parent=5 // pred_check_branch
        %211 = sbr.rel (%p208) target = $region40
      $region39: #{mnist_forward.1} parent=5 // pred_region
        %s212 = ssub.s32 %s13, 1
        // Predicated region
        $region41: #{mnist_forward.1} parent=39 // pred_check
          %p213 = pneg %p55
        $region42: #{mnist_forward.1} parent=39 // pred_check_branch
          %215 = sbr.rel (%p213) target = $region44
        $region43: #{mnist_forward.1} parent=39 // pred_region
          %217 = dma.done [#allocation3], 512
        $region44: #{mnist_forward.1} parent=39 // pred_fallthru
          _
        // Predicated region
        $region45: #{mnist_forward.1} parent=39 // pred_check
          %p218 = pneg %p76
        $region46: #{mnist_forward.1} parent=39 // pred_check_branch
          %220 = sbr.rel (%p218) target = $region48
        $region47: #{mnist_forward.1} parent=39 // pred_region
          %222 = dma.done [#allocation5], 16
        $region48: #{mnist_forward.1} parent=39 // pred_fallthru
          _
        %223 = sfence
        %p224 = pneg %p34
        %p225 = pneg %p31
        %p226 = pneg %p55
        %p227 = pneg %p52
        %p228 = pneg %p76
        %p229 = pneg %p73
        %s230 = smul.u32 16, %s18
        %p231 = scmp.lt.s32.totalorder %s230, 31
        %s232 = scalar_select %p231, %s230, 31
        %s233 = smul.addr %s232, 12
        %s234 = smul.addr %s233, 8
        %s235 = scalar_lea.vmem %s3, %s234
        %p236 = pneg %p102
        %p237 = pneg %p99
        %p238 = pneg %p123
        %p239 = pneg %p120
        %p240 = pneg %p149
        %p241 = pneg %p146
        %p242 = scmp.lt.s32.totalorder %s18, 1
        %s243 = scalar_select %p242, %s18, 1
        %s244 = smul.addr %s243, 2
        %s245 = scalar_lea.vmem %s5, %s244
        %s246 = smul.u32 16, %s18
        %p247 = scmp.lt.s32.totalorder %s246, 31
        %s248 = scalar_select %p247, %s246, 31
        %s249 = smul.addr %s248, 12
        %s250 = smul.addr %s249, 8
        %s251 = scalar_lea.vmem %s3, %s250
        %s252 = smul.u32 16, %s18
        %p253 = scmp.lt.s32.totalorder %s18, 1
        %s254 = scalar_select %p253, %s18, 1
        %s255 = smul.addr %s254, 2
        %s256 = scalar_lea.vmem %s5, %s255
        %s257 = smul.u32 %s18, 16
        %s258 = smul.u32 %s257, 128
        %s259 = sld [smem:[#allocation2 + %s258]]
        %v260 = vld [vmem:[%s0] sm:$0xff]
        %v261 = vld [vmem:[%s0 + $0x8] sm:$0xf]
        %v262 = vstv %s259
        %v263 = vmul.f32 %v262, %v260
        %v264 = vmul.f32 %v262, %v261
        %s265 = sadd.s32 %s258, 1
        %s266 = sld [smem:[#allocation2 + %s265]]
        %s267 = scalar_lea.vmem %s0, 12
        %v268 = vld [vmem:[%s267] sm:$0xff]
        %v269 = vld [vmem:[%s267 + $0x8] sm:$0xf]
        %v270 = vstv %s266
        %v271 = vmul.f32 %v270, %v268
        %v272 = vmul.f32 %v270, %v269
        %v273 = vadd.f32 %v263, %v271
        %v274 = vadd.f32 %v264, %v272
        %s275 = sadd.s32 %s258, 2
        %s276 = sld [smem:[#allocation2 + %s275]]
        %s277 = scalar_lea.vmem %s0, 24
        %v278 = vld [vmem:[%s277] sm:$0xff]
        %v279 = vld [vmem:[%s277 + $0x8] sm:$0xf]
        %v280 = vstv %s276
        %v281 = vmul.f32 %v280, %v278
        %v282 = vmul.f32 %v280, %v279
        %v283 = vadd.f32 %v273, %v281
        %v284 = vadd.f32 %v274, %v282
        %s285 = sadd.s32 %s258, 3
        %s286 = sld [smem:[#allocation2 + %s285]]
        %s287 = scalar_lea.vmem %s0, 36
        %v288 = vld [vmem:[%s287] sm:$0xff]
        %v289 = vld [vmem:[%s287 + $0x8] sm:$0xf]
        %v290 = vstv %s286
        %v291 = vmul.f32 %v290, %v288
        %v292 = vmul.f32 %v290, %v289
        %v293 = vadd.f32 %v283, %v291
        %v294 = vadd.f32 %v284, %v292
        %s295 = sadd.s32 %s258, 4
        %s296 = sld [smem:[#allocation2 + %s295]]
        %s297 = scalar_lea.vmem %s0, 48
        %v298 = vld [vmem:[%s297] sm:$0xff]
        %v299 = vld [vmem:[%s297 + $0x8] sm:$0xf]
        %v300 = vstv %s296
        %v301 = vmul.f32 %v300, %v298
        %v302 = vmul.f32 %v300, %v299
        %v303 = vadd.f32 %v293, %v301
        %v304 = vadd.f32 %v294, %v302
        %s305 = sadd.s32 %s258, 5
        %s306 = sld [smem:[#allocation2 + %s305]]
        %s307 = scalar_lea.vmem %s0, 60
        %v308 = vld [vmem:[%s307] sm:$0xff]
        %v309 = vld [vmem:[%s307 + $0x8] sm:$0xf]
        %v310 = vstv %s306
        %v311 = vmul.f32 %v310, %v308
        %v312 = vmul.f32 %v310, %v309
        %v313 = vadd.f32 %v303, %v311
        %v314 = vadd.f32 %v304, %v312
        %s315 = sadd.s32 %s258, 6
        %s316 = sld [smem:[#allocation2 + %s315]]
        %s317 = scalar_lea.vmem %s0, 72
        %v318 = vld [vmem:[%s317] sm:$0xff]
        %v319 = vld [vmem:[%s317 + $0x8] sm:$0xf]
        %v320 = vstv %s316
        %v321 = vmul.f32 %v320, %v318
        %v322 = vmul.f32 %v320, %v319
        %v323 = vadd.f32 %v313, %v321
        %v324 = vadd.f32 %v314, %v322
        %s325 = sadd.s32 %s258, 7
        %s326 = sld [smem:[#allocation2 + %s325]]
        %s327 = scalar_lea.vmem %s0, 84
        %v328 = vld [vmem:[%s327] sm:$0xff]
        %v329 = vld [vmem:[%s327 + $0x8] sm:$0xf]
        %v330 = vstv %s326
        %v331 = vmul.f32 %v330, %v328
        %v332 = vmul.f32 %v330, %v329
        %v333 = vadd.f32 %v323, %v331
        %v334 = vadd.f32 %v324, %v332
        %s335 = sadd.s32 %s258, 8
        %s336 = sld [smem:[#allocation2 + %s335]]
        %s337 = scalar_lea.vmem %s0, 96
        %v338 = vld [vmem:[%s337] sm:$0xff]
        %v339 = vld [vmem:[%s337 + $0x8] sm:$0xf]
        %v340 = vstv %s336
        %v341 = vmul.f32 %v340, %v338
        %v342 = vmul.f32 %v340, %v339
        %v343 = vadd.f32 %v333, %v341
        %v344 = vadd.f32 %v334, %v342
        %s345 = sld [smem:[#allocation4 + %s257]]
        %v346 = vstv %s345
        %v347 = vadd.f32 %v343, %v346
        %v348 = vadd.f32 %v344, %v346
        %v349 = vmax.f32 %v347, 0.0
        %v350 = vmax.f32 %v348, 0.0
        %v351 = vld [vmem:[%s251] sm:$0xff]
        %v352 = vld [vmem:[%s251 + $0x8] sm:$0xff]
        %v353 = vld [vmem:[%s251 + $0x10] sm:$0xff]
        %v354 = vld [vmem:[%s251 + $0x18] sm:$0xff]
        %v355 = vld [vmem:[%s251 + $0x20] sm:$0xff]
        %v356 = vld [vmem:[%s251 + $0x28] sm:$0xff]
        %v357 = vld [vmem:[%s251 + $0x30] sm:$0x3]
        %v358 = vld [vmem:[%s251 + $0x38] sm:$0x3]
        %v359 = vld [vmem:[%s251 + $0x40] sm:$0x3]
        %v360 = vld [vmem:[%s251 + $0x48] sm:$0x3]
        %v361 = vld [vmem:[%s251 + $0x50] sm:$0x3]
        %v362 = vld [vmem:[%s251 + $0x58] sm:$0x3]
        %s363 = sadd.s32 %s257, 1
        %s364 = smul.u32 %s363, 128
        %s365 = sld [smem:[#allocation2 + %s364]]
        %v366 = vstv %s365
        %v367 = vmul.f32 %v366, %v260
        %v368 = vmul.f32 %v366, %v261
        %s369 = sadd.s32 %s364, 1
        %s370 = sld [smem:[#allocation2 + %s369]]
        %v371 = vstv %s370
        %v372 = vmul.f32 %v371, %v268
        %v373 = vmul.f32 %v371, %v269
        %v374 = vadd.f32 %v367, %v372
        %v375 = vadd.f32 %v368, %v373
        %s376 = sadd.s32 %s364, 2
        %s377 = sld [smem:[#allocation2 + %s376]]
        %v378 = vstv %s377
        %v379 = vmul.f32 %v378, %v278
        %v380 = vmul.f32 %v378, %v279
        %v381 = vadd.f32 %v374, %v379
        %v382 = vadd.f32 %v375, %v380
        %s383 = sadd.s32 %s364, 3
        %s384 = sld [smem:[#allocation2 + %s383]]
        %v385 = vstv %s384
        %v386 = vmul.f32 %v385, %v288
        %v387 = vmul.f32 %v385, %v289
        %v388 = vadd.f32 %v381, %v386
        %v389 = vadd.f32 %v382, %v387
        %s390 = sadd.s32 %s364, 4
        %s391 = sld [smem:[#allocation2 + %s390]]
        %v392 = vstv %s391
        %v393 = vmul.f32 %v392, %v298
        %v394 = vmul.f32 %v392, %v299
        %v395 = vadd.f32 %v388, %v393
        %v396 = vadd.f32 %v389, %v394
        %s397 = sadd.s32 %s364, 5
        %s398 = sld [smem:[#allocation2 + %s397]]
        %v399 = vstv %s398
        %v400 = vmul.f32 %v399, %v308
        %v401 = vmul.f32 %v399, %v309
        %v402 = vadd.f32 %v395, %v400
        %v403 = vadd.f32 %v396, %v401
        %s404 = sadd.s32 %s364, 6
        %s405 = sld [smem:[#allocation2 + %s404]]
        %v406 = vstv %s405
        %v407 = vmul.f32 %v406, %v318
        %v408 = vmul.f32 %v406, %v319
        %v409 = vadd.f32 %v402, %v407
        %v410 = vadd.f32 %v403, %v408
        %s411 = sadd.s32 %s364, 7
        %s412 = sld [smem:[#allocation2 + %s411]]
        %v413 = vstv %s412
        %v414 = vmul.f32 %v413, %v328
        %v415 = vmul.f32 %v413, %v329
        %v416 = vadd.f32 %v409, %v414
        %v417 = vadd.f32 %v410, %v415
        %s418 = sadd.s32 %s364, 8
        %s419 = sld [smem:[#allocation2 + %s418]]
        %v420 = vstv %s419
        %v421 = vmul.f32 %v420, %v338
        %v422 = vmul.f32 %v420, %v339
        %v423 = vadd.f32 %v416, %v421
        %v424 = vadd.f32 %v417, %v422
        %s425 = sld [smem:[#allocation4 + %s363]]
        %v426 = vstv %s425
        %v427 = vadd.f32 %v423, %v426
        %v428 = vadd.f32 %v424, %v426
        %v429 = vmax.f32 %v427, 0.0
        %v430 = vmax.f32 %v428, 0.0
        %s431 = scalar_lea.vmem %s251, 96
        %v432 = vld [vmem:[%s431] sm:$0xff]
        %v433 = vld [vmem:[%s431 + $0x8] sm:$0xff]
        %v434 = vld [vmem:[%s431 + $0x10] sm:$0xff]
        %v435 = vld [vmem:[%s431 + $0x18] sm:$0xff]
        %v436 = vld [vmem:[%s431 + $0x20] sm:$0xff]
        %v437 = vld [vmem:[%s431 + $0x28] sm:$0xff]
        %v438 = vld [vmem:[%s431 + $0x30] sm:$0x3]
        %v439 = vld [vmem:[%s431 + $0x38] sm:$0x3]
        %v440 = vld [vmem:[%s431 + $0x40] sm:$0x3]
        %v441 = vld [vmem:[%s431 + $0x48] sm:$0x3]
        %v442 = vld [vmem:[%s431 + $0x50] sm:$0x3]
        %v443 = vld [vmem:[%s431 + $0x58] sm:$0x3]
        %446 = vst [vmem:[#allocation1] ss:$4 sm:$0xff] %v429
        %s447 = scalar_lea.vmem [#allocation1], 32
        %448 = vst [vmem:[%s447] ss:$4 sm:$0xff] %v430
        %v449 = vld.sshfl [vmem:[#allocation1] sm:$0xff pattern:$0x73625140]
        %v450 = vld.sshfl [vmem:[#allocation1 + $0x8] sm:$0xff pattern:$0x73625140]
        %v451 = vld.sshfl [vmem:[#allocation1 + $0x10] sm:$0xff pattern:$0x73625140]
        %v452 = vld.sshfl [vmem:[#allocation1 + $0x18] sm:$0xff pattern:$0x73625140]
        %v453 = vld.sshfl [vmem:[#allocation1 + $0x20] sm:$0xff pattern:$0x73625140]
        %v454 = vld.sshfl [vmem:[#allocation1 + $0x28] sm:$0xff pattern:$0x73625140]
        %vm460 = vcmask 719872
        %v461 = vsel %vm460, %v454, 0
        %v464 = vsel %vm460, %v437, 0
        %v467 = vsel %vm460, %v443, 0
        %469 = vmatpush.xpose.msra.mxu0 0.0
        %470 = vmatpush.xpose.msra.mxu0 0.0
        %471 = vmatpush.xpose.msra.mxu0 0.0
        %472 = vmatpush.xpose.msra.mxu0 0.0
        %473 = vmatpush.xpose.msra.mxu0 0.0
        %474 = vmatpush.xpose.msra.mxu0 0.0
        %475 = vmatpush.xpose.msra.mxu0 0.0
        %476 = vmatpush.xpose.msra.mxu0 0.0
        %477 = vmatpush.xpose.msra.mxu0 0.0
        %478 = vmatpush.xpose.msra.mxu0 0.0
        %479 = vmatpush.xpose.msra.mxu0 0.0
        %480 = vmatpush.xpose.msra.mxu0 0.0
        %481 = vmatpush.xpose.msra.mxu0 0.0
        %482 = vmatpush.xpose.msra.mxu0 0.0
        %483 = vmatpush.xpose.msra.mxu0 %v438
        %484 = vmatpush.xpose.msra.mxu0 %v432
        %485 = vmatmul.f32.gmra.mxu0 %v449
        %v486 = vpop.f32.mrf.mxu0
        %v487 = vadd.f32 0.0, %v486
        %488 = vdwg.mxu0
        %489 = vmatpush.xpose.msra.mxu0 0.0
        %490 = vmatpush.xpose.msra.mxu0 0.0
        %491 = vmatpush.xpose.msra.mxu0 0.0
        %492 = vmatpush.xpose.msra.mxu0 0.0
        %493 = vmatpush.xpose.msra.mxu0 0.0
        %494 = vmatpush.xpose.msra.mxu0 0.0
        %495 = vmatpush.xpose.msra.mxu0 0.0
        %496 = vmatpush.xpose.msra.mxu0 0.0
        %497 = vmatpush.xpose.msra.mxu0 0.0
        %498 = vmatpush.xpose.msra.mxu0 0.0
        %499 = vmatpush.xpose.msra.mxu0 0.0
        %500 = vmatpush.xpose.msra.mxu0 0.0
        %501 = vmatpush.xpose.msra.mxu0 0.0
        %502 = vmatpush.xpose.msra.mxu0 0.0
        %503 = vmatpush.xpose.msra.mxu0 %v439
        %504 = vmatpush.xpose.msra.mxu0 %v433
        %505 = vmatmul.f32.gmra.mxu0 %v450
        %v506 = vpop.f32.mrf.mxu0
        %v507 = vadd.f32 %v487, %v506
        %508 = vdwg.mxu0
        %509 = vmatpush.xpose.msra.mxu0 0.0
        %510 = vmatpush.xpose.msra.mxu0 0.0
        %511 = vmatpush.xpose.msra.mxu0 0.0
        %512 = vmatpush.xpose.msra.mxu0 0.0
        %513 = vmatpush.xpose.msra.mxu0 0.0
        %514 = vmatpush.xpose.msra.mxu0 0.0
        %515 = vmatpush.xpose.msra.mxu0 0.0
        %516 = vmatpush.xpose.msra.mxu0 0.0
        %517 = vmatpush.xpose.msra.mxu0 0.0
        %518 = vmatpush.xpose.msra.mxu0 0.0
        %519 = vmatpush.xpose.msra.mxu0 0.0
        %520 = vmatpush.xpose.msra.mxu0 0.0
        %521 = vmatpush.xpose.msra.mxu0 0.0
        %522 = vmatpush.xpose.msra.mxu0 0.0
        %523 = vmatpush.xpose.msra.mxu0 %v440
        %524 = vmatpush.xpose.msra.mxu0 %v434
        %525 = vmatmul.f32.gmra.mxu0 %v451
        %v526 = vpop.f32.mrf.mxu0
        %v527 = vadd.f32 %v507, %v526
        %528 = vdwg.mxu0
        %529 = vmatpush.xpose.msra.mxu0 0.0
        %530 = vmatpush.xpose.msra.mxu0 0.0
        %531 = vmatpush.xpose.msra.mxu0 0.0
        %532 = vmatpush.xpose.msra.mxu0 0.0
        %533 = vmatpush.xpose.msra.mxu0 0.0
        %534 = vmatpush.xpose.msra.mxu0 0.0
        %535 = vmatpush.xpose.msra.mxu0 0.0
        %536 = vmatpush.xpose.msra.mxu0 0.0
        %537 = vmatpush.xpose.msra.mxu0 0.0
        %538 = vmatpush.xpose.msra.mxu0 0.0
        %539 = vmatpush.xpose.msra.mxu0 0.0
        %540 = vmatpush.xpose.msra.mxu0 0.0
        %541 = vmatpush.xpose.msra.mxu0 0.0
        %542 = vmatpush.xpose.msra.mxu0 0.0
        %543 = vmatpush.xpose.msra.mxu0 %v441
        %544 = vmatpush.xpose.msra.mxu0 %v435
        %545 = vmatmul.f32.gmra.mxu0 %v452
        %v546 = vpop.f32.mrf.mxu0
        %v547 = vadd.f32 %v527, %v546
        %548 = vdwg.mxu0
        %549 = vmatpush.xpose.msra.mxu0 0.0
        %550 = vmatpush.xpose.msra.mxu0 0.0
        %551 = vmatpush.xpose.msra.mxu0 0.0
        %552 = vmatpush.xpose.msra.mxu0 0.0
        %553 = vmatpush.xpose.msra.mxu0 0.0
        %554 = vmatpush.xpose.msra.mxu0 0.0
        %555 = vmatpush.xpose.msra.mxu0 0.0
        %556 = vmatpush.xpose.msra.mxu0 0.0
        %557 = vmatpush.xpose.msra.mxu0 0.0
        %558 = vmatpush.xpose.msra.mxu0 0.0
        %559 = vmatpush.xpose.msra.mxu0 0.0
        %560 = vmatpush.xpose.msra.mxu0 0.0
        %561 = vmatpush.xpose.msra.mxu0 0.0
        %562 = vmatpush.xpose.msra.mxu0 0.0
        %563 = vmatpush.xpose.msra.mxu0 %v442
        %564 = vmatpush.xpose.msra.mxu0 %v436
        %565 = vmatmul.f32.gmra.mxu0 %v453
        %v566 = vpop.f32.mrf.mxu0
        %v567 = vadd.f32 %v547, %v566
        %568 = vdwg.mxu0
        %569 = vmatpush.xpose.msra.mxu0 0.0
        %570 = vmatpush.xpose.msra.mxu0 0.0
        %571 = vmatpush.xpose.msra.mxu0 0.0
        %572 = vmatpush.xpose.msra.mxu0 0.0
        %573 = vmatpush.xpose.msra.mxu0 0.0
        %574 = vmatpush.xpose.msra.mxu0 0.0
        %575 = vmatpush.xpose.msra.mxu0 0.0
        %576 = vmatpush.xpose.msra.mxu0 0.0
        %577 = vmatpush.xpose.msra.mxu0 0.0
        %578 = vmatpush.xpose.msra.mxu0 0.0
        %579 = vmatpush.xpose.msra.mxu0 0.0
        %580 = vmatpush.xpose.msra.mxu0 0.0
        %581 = vmatpush.xpose.msra.mxu0 0.0
        %582 = vmatpush.xpose.msra.mxu0 0.0
        %583 = vmatpush.xpose.msra.mxu0 %v467
        %584 = vmatpush.xpose.msra.mxu0 %v464
        %585 = vmatmul.f32.gmra.mxu0 %v461
        %v586 = vpop.f32.mrf.mxu0
        %v587 = vadd.f32 %v567, %v586
        %588 = vdwg.mxu0
        %591 = vst [vmem:[#allocation1] ss:$4 sm:$0xff] %v349
        %s592 = scalar_lea.vmem [#allocation1], 32
        %593 = vst [vmem:[%s592] ss:$4 sm:$0xff] %v350
        %v594 = vld.sshfl [vmem:[#allocation1] sm:$0xff pattern:$0x73625140]
        %v595 = vld.sshfl [vmem:[#allocation1 + $0x8] sm:$0xff pattern:$0x73625140]
        %v596 = vld.sshfl [vmem:[#allocation1 + $0x10] sm:$0xff pattern:$0x73625140]
        %v597 = vld.sshfl [vmem:[#allocation1 + $0x18] sm:$0xff pattern:$0x73625140]
        %v598 = vld.sshfl [vmem:[#allocation1 + $0x20] sm:$0xff pattern:$0x73625140]
        %v599 = vld.sshfl [vmem:[#allocation1 + $0x28] sm:$0xff pattern:$0x73625140]
        %v605 = vsel %vm460, %v599, 0
        %v608 = vsel %vm460, %v356, 0
        %v611 = vsel %vm460, %v362, 0
        %613 = vmatpush.xpose.msra.mxu0 0.0
        %614 = vmatpush.xpose.msra.mxu0 0.0
        %615 = vmatpush.xpose.msra.mxu0 0.0
        %616 = vmatpush.xpose.msra.mxu0 0.0
        %617 = vmatpush.xpose.msra.mxu0 0.0
        %618 = vmatpush.xpose.msra.mxu0 0.0
        %619 = vmatpush.xpose.msra.mxu0 0.0
        %620 = vmatpush.xpose.msra.mxu0 0.0
        %621 = vmatpush.xpose.msra.mxu0 0.0
        %622 = vmatpush.xpose.msra.mxu0 0.0
        %623 = vmatpush.xpose.msra.mxu0 0.0
        %624 = vmatpush.xpose.msra.mxu0 0.0
        %625 = vmatpush.xpose.msra.mxu0 0.0
        %626 = vmatpush.xpose.msra.mxu0 0.0
        %627 = vmatpush.xpose.msra.mxu0 %v357
        %628 = vmatpush.xpose.msra.mxu0 %v351
        %629 = vmatmul.f32.gmra.mxu0 %v594
        %v630 = vpop.f32.mrf.mxu0
        %v631 = vadd.f32 %v587, %v630
        %632 = vdwg.mxu0
        %633 = vmatpush.xpose.msra.mxu0 0.0
        %634 = vmatpush.xpose.msra.mxu0 0.0
        %635 = vmatpush.xpose.msra.mxu0 0.0
        %636 = vmatpush.xpose.msra.mxu0 0.0
        %637 = vmatpush.xpose.msra.mxu0 0.0
        %638 = vmatpush.xpose.msra.mxu0 0.0
        %639 = vmatpush.xpose.msra.mxu0 0.0
        %640 = vmatpush.xpose.msra.mxu0 0.0
        %641 = vmatpush.xpose.msra.mxu0 0.0
        %642 = vmatpush.xpose.msra.mxu0 0.0
        %643 = vmatpush.xpose.msra.mxu0 0.0
        %644 = vmatpush.xpose.msra.mxu0 0.0
        %645 = vmatpush.xpose.msra.mxu0 0.0
        %646 = vmatpush.xpose.msra.mxu0 0.0
        %647 = vmatpush.xpose.msra.mxu0 %v358
        %648 = vmatpush.xpose.msra.mxu0 %v352
        %649 = vmatmul.f32.gmra.mxu0 %v595
        %v650 = vpop.f32.mrf.mxu0
        %v651 = vadd.f32 %v631, %v650
        %652 = vdwg.mxu0
        %653 = vmatpush.xpose.msra.mxu0 0.0
        %654 = vmatpush.xpose.msra.mxu0 0.0
        %655 = vmatpush.xpose.msra.mxu0 0.0
        %656 = vmatpush.xpose.msra.mxu0 0.0
        %657 = vmatpush.xpose.msra.mxu0 0.0
        %658 = vmatpush.xpose.msra.mxu0 0.0
        %659 = vmatpush.xpose.msra.mxu0 0.0
        %660 = vmatpush.xpose.msra.mxu0 0.0
        %661 = vmatpush.xpose.msra.mxu0 0.0
        %662 = vmatpush.xpose.msra.mxu0 0.0
        %663 = vmatpush.xpose.msra.mxu0 0.0
        %664 = vmatpush.xpose.msra.mxu0 0.0
        %665 = vmatpush.xpose.msra.mxu0 0.0
        %666 = vmatpush.xpose.msra.mxu0 0.0
        %667 = vmatpush.xpose.msra.mxu0 %v359
        %668 = vmatpush.xpose.msra.mxu0 %v353
        %669 = vmatmul.f32.gmra.mxu0 %v596
        %v670 = vpop.f32.mrf.mxu0
        %v671 = vadd.f32 %v651, %v670
        %672 = vdwg.mxu0
        %673 = vmatpush.xpose.msra.mxu0 0.0
        %674 = vmatpush.xpose.msra.mxu0 0.0
        %675 = vmatpush.xpose.msra.mxu0 0.0
        %676 = vmatpush.xpose.msra.mxu0 0.0
        %677 = vmatpush.xpose.msra.mxu0 0.0
        %678 = vmatpush.xpose.msra.mxu0 0.0
        %679 = vmatpush.xpose.msra.mxu0 0.0
        %680 = vmatpush.xpose.msra.mxu0 0.0
        %681 = vmatpush.xpose.msra.mxu0 0.0
        %682 = vmatpush.xpose.msra.mxu0 0.0
        %683 = vmatpush.xpose.msra.mxu0 0.0
        %684 = vmatpush.xpose.msra.mxu0 0.0
        %685 = vmatpush.xpose.msra.mxu0 0.0
        %686 = vmatpush.xpose.msra.mxu0 0.0
        %687 = vmatpush.xpose.msra.mxu0 %v360
        %688 = vmatpush.xpose.msra.mxu0 %v354
        %689 = vmatmul.f32.gmra.mxu0 %v597
        %v690 = vpop.f32.mrf.mxu0
        %v691 = vadd.f32 %v671, %v690
        %692 = vdwg.mxu0
        %693 = vmatpush.xpose.msra.mxu0 0.0
        %694 = vmatpush.xpose.msra.mxu0 0.0
        %695 = vmatpush.xpose.msra.mxu0 0.0
        %696 = vmatpush.xpose.msra.mxu0 0.0
        %697 = vmatpush.xpose.msra.mxu0 0.0
        %698 = vmatpush.xpose.msra.mxu0 0.0
        %699 = vmatpush.xpose.msra.mxu0 0.0
        %700 = vmatpush.xpose.msra.mxu0 0.0
        %701 = vmatpush.xpose.msra.mxu0 0.0
        %702 = vmatpush.xpose.msra.mxu0 0.0
        %703 = vmatpush.xpose.msra.mxu0 0.0
        %704 = vmatpush.xpose.msra.mxu0 0.0
        %705 = vmatpush.xpose.msra.mxu0 0.0
        %706 = vmatpush.xpose.msra.mxu0 0.0
        %707 = vmatpush.xpose.msra.mxu0 %v361
        %708 = vmatpush.xpose.msra.mxu0 %v355
        %709 = vmatmul.f32.gmra.mxu0 %v598
        %v710 = vpop.f32.mrf.mxu0
        %v711 = vadd.f32 %v691, %v710
        %712 = vdwg.mxu0
        %713 = vmatpush.xpose.msra.mxu0 0.0
        %714 = vmatpush.xpose.msra.mxu0 0.0
        %715 = vmatpush.xpose.msra.mxu0 0.0
        %716 = vmatpush.xpose.msra.mxu0 0.0
        %717 = vmatpush.xpose.msra.mxu0 0.0
        %718 = vmatpush.xpose.msra.mxu0 0.0
        %719 = vmatpush.xpose.msra.mxu0 0.0
        %720 = vmatpush.xpose.msra.mxu0 0.0
        %721 = vmatpush.xpose.msra.mxu0 0.0
        %722 = vmatpush.xpose.msra.mxu0 0.0
        %723 = vmatpush.xpose.msra.mxu0 0.0
        %724 = vmatpush.xpose.msra.mxu0 0.0
        %725 = vmatpush.xpose.msra.mxu0 0.0
        %726 = vmatpush.xpose.msra.mxu0 0.0
        %727 = vmatpush.xpose.msra.mxu0 %v611
        %728 = vmatpush.xpose.msra.mxu0 %v608
        %729 = vmatmul.f32.gmra.mxu0 %v605
        %v730 = vpop.f32.mrf.mxu0
        %v731 = vadd.f32 %v711, %v730
        %732 = vdwg.mxu0
        %s733 = sadd.s32 %s257, 2
        %s734 = smul.u32 %s733, 128
        %s735 = sld [smem:[#allocation2 + %s734]]
        %v736 = vstv %s735
        %v737 = vmul.f32 %v736, %v260
        %v738 = vmul.f32 %v736, %v261
        %s739 = sadd.s32 %s734, 1
        %s740 = sld [smem:[#allocation2 + %s739]]
        %v741 = vstv %s740
        %v742 = vmul.f32 %v741, %v268
        %v743 = vmul.f32 %v741, %v269
        %v744 = vadd.f32 %v737, %v742
        %v745 = vadd.f32 %v738, %v743
        %s746 = sadd.s32 %s734, 2
        %s747 = sld [smem:[#allocation2 + %s746]]
        %v748 = vstv %s747
        %v749 = vmul.f32 %v748, %v278
        %v750 = vmul.f32 %v748, %v279
        %v751 = vadd.f32 %v744, %v749
        %v752 = vadd.f32 %v745, %v750
        %s753 = sadd.s32 %s734, 3
        %s754 = sld [smem:[#allocation2 + %s753]]
        %v755 = vstv %s754
        %v756 = vmul.f32 %v755, %v288
        %v757 = vmul.f32 %v755, %v289
        %v758 = vadd.f32 %v751, %v756
        %v759 = vadd.f32 %v752, %v757
        %s760 = sadd.s32 %s734, 4
        %s761 = sld [smem:[#allocation2 + %s760]]
        %v762 = vstv %s761
        %v763 = vmul.f32 %v762, %v298
        %v764 = vmul.f32 %v762, %v299
        %v765 = vadd.f32 %v758, %v763
        %v766 = vadd.f32 %v759, %v764
        %s767 = sadd.s32 %s734, 5
        %s768 = sld [smem:[#allocation2 + %s767]]
        %v769 = vstv %s768
        %v770 = vmul.f32 %v769, %v308
        %v771 = vmul.f32 %v769, %v309
        %v772 = vadd.f32 %v765, %v770
        %v773 = vadd.f32 %v766, %v771
        %s774 = sadd.s32 %s734, 6
        %s775 = sld [smem:[#allocation2 + %s774]]
        %v776 = vstv %s775
        %v777 = vmul.f32 %v776, %v318
        %v778 = vmul.f32 %v776, %v319
        %v779 = vadd.f32 %v772, %v777
        %v780 = vadd.f32 %v773, %v778
        %s781 = sadd.s32 %s734, 7
        %s782 = sld [smem:[#allocation2 + %s781]]
        %v783 = vstv %s782
        %v784 = vmul.f32 %v783, %v328
        %v785 = vmul.f32 %v783, %v329
        %v786 = vadd.f32 %v779, %v784
        %v787 = vadd.f32 %v780, %v785
        %s788 = sadd.s32 %s734, 8
        %s789 = sld [smem:[#allocation2 + %s788]]
        %v790 = vstv %s789
        %v791 = vmul.f32 %v790, %v338
        %v792 = vmul.f32 %v790, %v339
        %v793 = vadd.f32 %v786, %v791
        %v794 = vadd.f32 %v787, %v792
        %s795 = sld [smem:[#allocation4 + %s733]]
        %v796 = vstv %s795
        %v797 = vadd.f32 %v793, %v796
        %v798 = vadd.f32 %v794, %v796
        %v799 = vmax.f32 %v797, 0.0
        %v800 = vmax.f32 %v798, 0.0
        %s801 = scalar_lea.vmem %s251, 192
        %v802 = vld [vmem:[%s801] sm:$0xff]
        %v803 = vld [vmem:[%s801 + $0x8] sm:$0xff]
        %v804 = vld [vmem:[%s801 + $0x10] sm:$0xff]
        %v805 = vld [vmem:[%s801 + $0x18] sm:$0xff]
        %v806 = vld [vmem:[%s801 + $0x20] sm:$0xff]
        %v807 = vld [vmem:[%s801 + $0x28] sm:$0xff]
        %v808 = vld [vmem:[%s801 + $0x30] sm:$0x3]
        %v809 = vld [vmem:[%s801 + $0x38] sm:$0x3]
        %v810 = vld [vmem:[%s801 + $0x40] sm:$0x3]
        %v811 = vld [vmem:[%s801 + $0x48] sm:$0x3]
        %v812 = vld [vmem:[%s801 + $0x50] sm:$0x3]
        %v813 = vld [vmem:[%s801 + $0x58] sm:$0x3]
        %816 = vst [vmem:[#allocation1] ss:$4 sm:$0xff] %v799
        %s817 = scalar_lea.vmem [#allocation1], 32
        %818 = vst [vmem:[%s817] ss:$4 sm:$0xff] %v800
        %v819 = vld.sshfl [vmem:[#allocation1] sm:$0xff pattern:$0x73625140]
        %v820 = vld.sshfl [vmem:[#allocation1 + $0x8] sm:$0xff pattern:$0x73625140]
        %v821 = vld.sshfl [vmem:[#allocation1 + $0x10] sm:$0xff pattern:$0x73625140]
        %v822 = vld.sshfl [vmem:[#allocation1 + $0x18] sm:$0xff pattern:$0x73625140]
        %v823 = vld.sshfl [vmem:[#allocation1 + $0x20] sm:$0xff pattern:$0x73625140]
        %v824 = vld.sshfl [vmem:[#allocation1 + $0x28] sm:$0xff pattern:$0x73625140]
        %v830 = vsel %vm460, %v824, 0
        %v833 = vsel %vm460, %v807, 0
        %v836 = vsel %vm460, %v813, 0
        %838 = vmatpush.xpose.msra.mxu0 0.0
        %839 = vmatpush.xpose.msra.mxu0 0.0
        %840 = vmatpush.xpose.msra.mxu0 0.0
        %841 = vmatpush.xpose.msra.mxu0 0.0
        %842 = vmatpush.xpose.msra.mxu0 0.0
        %843 = vmatpush.xpose.msra.mxu0 0.0
        %844 = vmatpush.xpose.msra.mxu0 0.0
        %845 = vmatpush.xpose.msra.mxu0 0.0
        %846 = vmatpush.xpose.msra.mxu0 0.0
        %847 = vmatpush.xpose.msra.mxu0 0.0
        %848 = vmatpush.xpose.msra.mxu0 0.0
        %849 = vmatpush.xpose.msra.mxu0 0.0
        %850 = vmatpush.xpose.msra.mxu0 0.0
        %851 = vmatpush.xpose.msra.mxu0 0.0
        %852 = vmatpush.xpose.msra.mxu0 %v808
        %853 = vmatpush.xpose.msra.mxu0 %v802
        %854 = vmatmul.f32.gmra.mxu0 %v819
        %v855 = vpop.f32.mrf.mxu0
        %v856 = vadd.f32 0.0, %v855
        %857 = vdwg.mxu0
        %858 = vmatpush.xpose.msra.mxu0 0.0
        %859 = vmatpush.xpose.msra.mxu0 0.0
        %860 = vmatpush.xpose.msra.mxu0 0.0
        %861 = vmatpush.xpose.msra.mxu0 0.0
        %862 = vmatpush.xpose.msra.mxu0 0.0
        %863 = vmatpush.xpose.msra.mxu0 0.0
        %864 = vmatpush.xpose.msra.mxu0 0.0
        %865 = vmatpush.xpose.msra.mxu0 0.0
        %866 = vmatpush.xpose.msra.mxu0 0.0
        %867 = vmatpush.xpose.msra.mxu0 0.0
        %868 = vmatpush.xpose.msra.mxu0 0.0
        %869 = vmatpush.xpose.msra.mxu0 0.0
        %870 = vmatpush.xpose.msra.mxu0 0.0
        %871 = vmatpush.xpose.msra.mxu0 0.0
        %872 = vmatpush.xpose.msra.mxu0 %v809
        %873 = vmatpush.xpose.msra.mxu0 %v803
        %874 = vmatmul.f32.gmra.mxu0 %v820
        %v875 = vpop.f32.mrf.mxu0
        %v876 = vadd.f32 %v856, %v875
        %877 = vdwg.mxu0
        %878 = vmatpush.xpose.msra.mxu0 0.0
        %879 = vmatpush.xpose.msra.mxu0 0.0
        %880 = vmatpush.xpose.msra.mxu0 0.0
        %881 = vmatpush.xpose.msra.mxu0 0.0
        %882 = vmatpush.xpose.msra.mxu0 0.0
        %883 = vmatpush.xpose.msra.mxu0 0.0
        %884 = vmatpush.xpose.msra.mxu0 0.0
        %885 = vmatpush.xpose.msra.mxu0 0.0
        %886 = vmatpush.xpose.msra.mxu0 0.0
        %887 = vmatpush.xpose.msra.mxu0 0.0
        %888 = vmatpush.xpose.msra.mxu0 0.0
        %889 = vmatpush.xpose.msra.mxu0 0.0
        %890 = vmatpush.xpose.msra.mxu0 0.0
        %891 = vmatpush.xpose.msra.mxu0 0.0
        %892 = vmatpush.xpose.msra.mxu0 %v810
        %893 = vmatpush.xpose.msra.mxu0 %v804
        %894 = vmatmul.f32.gmra.mxu0 %v821
        %v895 = vpop.f32.mrf.mxu0
        %v896 = vadd.f32 %v876, %v895
        %897 = vdwg.mxu0
        %898 = vmatpush.xpose.msra.mxu0 0.0
        %899 = vmatpush.xpose.msra.mxu0 0.0
        %900 = vmatpush.xpose.msra.mxu0 0.0
        %901 = vmatpush.xpose.msra.mxu0 0.0
        %902 = vmatpush.xpose.msra.mxu0 0.0
        %903 = vmatpush.xpose.msra.mxu0 0.0
        %904 = vmatpush.xpose.msra.mxu0 0.0
        %905 = vmatpush.xpose.msra.mxu0 0.0
        %906 = vmatpush.xpose.msra.mxu0 0.0
        %907 = vmatpush.xpose.msra.mxu0 0.0
        %908 = vmatpush.xpose.msra.mxu0 0.0
        %909 = vmatpush.xpose.msra.mxu0 0.0
        %910 = vmatpush.xpose.msra.mxu0 0.0
        %911 = vmatpush.xpose.msra.mxu0 0.0
        %912 = vmatpush.xpose.msra.mxu0 %v811
        %913 = vmatpush.xpose.msra.mxu0 %v805
        %914 = vmatmul.f32.gmra.mxu0 %v822
        %v915 = vpop.f32.mrf.mxu0
        %v916 = vadd.f32 %v896, %v915
        %917 = vdwg.mxu0
        %918 = vmatpush.xpose.msra.mxu0 0.0
        %919 = vmatpush.xpose.msra.mxu0 0.0
        %920 = vmatpush.xpose.msra.mxu0 0.0
        %921 = vmatpush.xpose.msra.mxu0 0.0
        %922 = vmatpush.xpose.msra.mxu0 0.0
        %923 = vmatpush.xpose.msra.mxu0 0.0
        %924 = vmatpush.xpose.msra.mxu0 0.0
        %925 = vmatpush.xpose.msra.mxu0 0.0
        %926 = vmatpush.xpose.msra.mxu0 0.0
        %927 = vmatpush.xpose.msra.mxu0 0.0
        %928 = vmatpush.xpose.msra.mxu0 0.0
        %929 = vmatpush.xpose.msra.mxu0 0.0
        %930 = vmatpush.xpose.msra.mxu0 0.0
        %931 = vmatpush.xpose.msra.mxu0 0.0
        %932 = vmatpush.xpose.msra.mxu0 %v812
        %933 = vmatpush.xpose.msra.mxu0 %v806
        %934 = vmatmul.f32.gmra.mxu0 %v823
        %v935 = vpop.f32.mrf.mxu0
        %v936 = vadd.f32 %v916, %v935
        %937 = vdwg.mxu0
        %938 = vmatpush.xpose.msra.mxu0 0.0
        %939 = vmatpush.xpose.msra.mxu0 0.0
        %940 = vmatpush.xpose.msra.mxu0 0.0
        %941 = vmatpush.xpose.msra.mxu0 0.0
        %942 = vmatpush.xpose.msra.mxu0 0.0
        %943 = vmatpush.xpose.msra.mxu0 0.0
        %944 = vmatpush.xpose.msra.mxu0 0.0
        %945 = vmatpush.xpose.msra.mxu0 0.0
        %946 = vmatpush.xpose.msra.mxu0 0.0
        %947 = vmatpush.xpose.msra.mxu0 0.0
        %948 = vmatpush.xpose.msra.mxu0 0.0
        %949 = vmatpush.xpose.msra.mxu0 0.0
        %950 = vmatpush.xpose.msra.mxu0 0.0
        %951 = vmatpush.xpose.msra.mxu0 0.0
        %952 = vmatpush.xpose.msra.mxu0 %v836
        %953 = vmatpush.xpose.msra.mxu0 %v833
        %954 = vmatmul.f32.gmra.mxu0 %v830
        %v955 = vpop.f32.mrf.mxu0
        %v956 = vadd.f32 %v936, %v955
        %957 = vdwg.mxu0
        %v958 = vadd.f32 %v731, %v956
        %s959 = sadd.s32 %s257, 3
        %s960 = smul.u32 %s959, 128
        %s961 = sld [smem:[#allocation2 + %s960]]
        %v962 = vstv %s961
        %v963 = vmul.f32 %v962, %v260
        %v964 = vmul.f32 %v962, %v261
        %s965 = sadd.s32 %s960, 1
        %s966 = sld [smem:[#allocation2 + %s965]]
        %v967 = vstv %s966
        %v968 = vmul.f32 %v967, %v268
        %v969 = vmul.f32 %v967, %v269
        %v970 = vadd.f32 %v963, %v968
        %v971 = vadd.f32 %v964, %v969
        %s972 = sadd.s32 %s960, 2
        %s973 = sld [smem:[#allocation2 + %s972]]
        %v974 = vstv %s973
        %v975 = vmul.f32 %v974, %v278
        %v976 = vmul.f32 %v974, %v279
        %v977 = vadd.f32 %v970, %v975
        %v978 = vadd.f32 %v971, %v976
        %s979 = sadd.s32 %s960, 3
        %s980 = sld [smem:[#allocation2 + %s979]]
        %v981 = vstv %s980
        %v982 = vmul.f32 %v981, %v288
        %v983 = vmul.f32 %v981, %v289
        %v984 = vadd.f32 %v977, %v982
        %v985 = vadd.f32 %v978, %v983
        %s986 = sadd.s32 %s960, 4
        %s987 = sld [smem:[#allocation2 + %s986]]
        %v988 = vstv %s987
        %v989 = vmul.f32 %v988, %v298
        %v990 = vmul.f32 %v988, %v299
        %v991 = vadd.f32 %v984, %v989
        %v992 = vadd.f32 %v985, %v990
        %s993 = sadd.s32 %s960, 5
        %s994 = sld [smem:[#allocation2 + %s993]]
        %v995 = vstv %s994
        %v996 = vmul.f32 %v995, %v308
        %v997 = vmul.f32 %v995, %v309
        %v998 = vadd.f32 %v991, %v996
        %v999 = vadd.f32 %v992, %v997
        %s1000 = sadd.s32 %s960, 6
        %s1001 = sld [smem:[#allocation2 + %s1000]]
        %v1002 = vstv %s1001
        %v1003 = vmul.f32 %v1002, %v318
        %v1004 = vmul.f32 %v1002, %v319
        %v1005 = vadd.f32 %v998, %v1003
        %v1006 = vadd.f32 %v999, %v1004
        %s1007 = sadd.s32 %s960, 7
        %s1008 = sld [smem:[#allocation2 + %s1007]]
        %v1009 = vstv %s1008
        %v1010 = vmul.f32 %v1009, %v328
        %v1011 = vmul.f32 %v1009, %v329
        %v1012 = vadd.f32 %v1005, %v1010
        %v1013 = vadd.f32 %v1006, %v1011
        %s1014 = sadd.s32 %s960, 8
        %s1015 = sld [smem:[#allocation2 + %s1014]]
        %v1016 = vstv %s1015
        %v1017 = vmul.f32 %v1016, %v338
        %v1018 = vmul.f32 %v1016, %v339
        %v1019 = vadd.f32 %v1012, %v1017
        %v1020 = vadd.f32 %v1013, %v1018
        %s1021 = sld [smem:[#allocation4 + %s959]]
        %v1022 = vstv %s1021
        %v1023 = vadd.f32 %v1019, %v1022
        %v1024 = vadd.f32 %v1020, %v1022
        %v1025 = vmax.f32 %v1023, 0.0
        %v1026 = vmax.f32 %v1024, 0.0
        %s1027 = scalar_lea.vmem %s251, 288
        %v1028 = vld [vmem:[%s1027] sm:$0xff]
        %v1029 = vld [vmem:[%s1027 + $0x8] sm:$0xff]
        %v1030 = vld [vmem:[%s1027 + $0x10] sm:$0xff]
        %v1031 = vld [vmem:[%s1027 + $0x18] sm:$0xff]
        %v1032 = vld [vmem:[%s1027 + $0x20] sm:$0xff]
        %v1033 = vld [vmem:[%s1027 + $0x28] sm:$0xff]
        %v1034 = vld [vmem:[%s1027 + $0x30] sm:$0x3]
        %v1035 = vld [vmem:[%s1027 + $0x38] sm:$0x3]
        %v1036 = vld [vmem:[%s1027 + $0x40] sm:$0x3]
        %v1037 = vld [vmem:[%s1027 + $0x48] sm:$0x3]
        %v1038 = vld [vmem:[%s1027 + $0x50] sm:$0x3]
        %v1039 = vld [vmem:[%s1027 + $0x58] sm:$0x3]
        %1042 = vst [vmem:[#allocation1] ss:$4 sm:$0xff] %v1025
        %s1043 = scalar_lea.vmem [#allocation1], 32
        %1044 = vst [vmem:[%s1043] ss:$4 sm:$0xff] %v1026
        %v1045 = vld.sshfl [vmem:[#allocation1] sm:$0xff pattern:$0x73625140]
        %v1046 = vld.sshfl [vmem:[#allocation1 + $0x8] sm:$0xff pattern:$0x73625140]
        %v1047 = vld.sshfl [vmem:[#allocation1 + $0x10] sm:$0xff pattern:$0x73625140]
        %v1048 = vld.sshfl [vmem:[#allocation1 + $0x18] sm:$0xff pattern:$0x73625140]
        %v1049 = vld.sshfl [vmem:[#allocation1 + $0x20] sm:$0xff pattern:$0x73625140]
        %v1050 = vld.sshfl [vmem:[#allocation1 + $0x28] sm:$0xff pattern:$0x73625140]
        %v1056 = vsel %vm460, %v1050, 0
        %v1059 = vsel %vm460, %v1033, 0
        %v1062 = vsel %vm460, %v1039, 0
        %1064 = vmatpush.xpose.msra.mxu0 0.0
        %1065 = vmatpush.xpose.msra.mxu0 0.0
        %1066 = vmatpush.xpose.msra.mxu0 0.0
        %1067 = vmatpush.xpose.msra.mxu0 0.0
        %1068 = vmatpush.xpose.msra.mxu0 0.0
        %1069 = vmatpush.xpose.msra.mxu0 0.0
        %1070 = vmatpush.xpose.msra.mxu0 0.0
        %1071 = vmatpush.xpose.msra.mxu0 0.0
        %1072 = vmatpush.xpose.msra.mxu0 0.0
        %1073 = vmatpush.xpose.msra.mxu0 0.0
        %1074 = vmatpush.xpose.msra.mxu0 0.0
        %1075 = vmatpush.xpose.msra.mxu0 0.0
        %1076 = vmatpush.xpose.msra.mxu0 0.0
        %1077 = vmatpush.xpose.msra.mxu0 0.0
        %1078 = vmatpush.xpose.msra.mxu0 %v1034
        %1079 = vmatpush.xpose.msra.mxu0 %v1028
        %1080 = vmatmul.f32.gmra.mxu0 %v1045
        %v1081 = vpop.f32.mrf.mxu0
        %v1082 = vadd.f32 0.0, %v1081
        %1083 = vdwg.mxu0
        %1084 = vmatpush.xpose.msra.mxu0 0.0
        %1085 = vmatpush.xpose.msra.mxu0 0.0
        %1086 = vmatpush.xpose.msra.mxu0 0.0
        %1087 = vmatpush.xpose.msra.mxu0 0.0
        %1088 = vmatpush.xpose.msra.mxu0 0.0
        %1089 = vmatpush.xpose.msra.mxu0 0.0
        %1090 = vmatpush.xpose.msra.mxu0 0.0
        %1091 = vmatpush.xpose.msra.mxu0 0.0
        %1092 = vmatpush.xpose.msra.mxu0 0.0
        %1093 = vmatpush.xpose.msra.mxu0 0.0
        %1094 = vmatpush.xpose.msra.mxu0 0.0
        %1095 = vmatpush.xpose.msra.mxu0 0.0
        %1096 = vmatpush.xpose.msra.mxu0 0.0
        %1097 = vmatpush.xpose.msra.mxu0 0.0
        %1098 = vmatpush.xpose.msra.mxu0 %v1035
        %1099 = vmatpush.xpose.msra.mxu0 %v1029
        %1100 = vmatmul.f32.gmra.mxu0 %v1046
        %v1101 = vpop.f32.mrf.mxu0
        %v1102 = vadd.f32 %v1082, %v1101
        %1103 = vdwg.mxu0
        %1104 = vmatpush.xpose.msra.mxu0 0.0
        %1105 = vmatpush.xpose.msra.mxu0 0.0
        %1106 = vmatpush.xpose.msra.mxu0 0.0
        %1107 = vmatpush.xpose.msra.mxu0 0.0
        %1108 = vmatpush.xpose.msra.mxu0 0.0
        %1109 = vmatpush.xpose.msra.mxu0 0.0
        %1110 = vmatpush.xpose.msra.mxu0 0.0
        %1111 = vmatpush.xpose.msra.mxu0 0.0
        %1112 = vmatpush.xpose.msra.mxu0 0.0
        %1113 = vmatpush.xpose.msra.mxu0 0.0
        %1114 = vmatpush.xpose.msra.mxu0 0.0
        %1115 = vmatpush.xpose.msra.mxu0 0.0
        %1116 = vmatpush.xpose.msra.mxu0 0.0
        %1117 = vmatpush.xpose.msra.mxu0 0.0
        %1118 = vmatpush.xpose.msra.mxu0 %v1036
        %1119 = vmatpush.xpose.msra.mxu0 %v1030
        %1120 = vmatmul.f32.gmra.mxu0 %v1047
        %v1121 = vpop.f32.mrf.mxu0
        %v1122 = vadd.f32 %v1102, %v1121
        %1123 = vdwg.mxu0
        %1124 = vmatpush.xpose.msra.mxu0 0.0
        %1125 = vmatpush.xpose.msra.mxu0 0.0
        %1126 = vmatpush.xpose.msra.mxu0 0.0
        %1127 = vmatpush.xpose.msra.mxu0 0.0
        %1128 = vmatpush.xpose.msra.mxu0 0.0
        %1129 = vmatpush.xpose.msra.mxu0 0.0
        %1130 = vmatpush.xpose.msra.mxu0 0.0
        %1131 = vmatpush.xpose.msra.mxu0 0.0
        %1132 = vmatpush.xpose.msra.mxu0 0.0
        %1133 = vmatpush.xpose.msra.mxu0 0.0
        %1134 = vmatpush.xpose.msra.mxu0 0.0
        %1135 = vmatpush.xpose.msra.mxu0 0.0
        %1136 = vmatpush.xpose.msra.mxu0 0.0
        %1137 = vmatpush.xpose.msra.mxu0 0.0
        %1138 = vmatpush.xpose.msra.mxu0 %v1037
        %1139 = vmatpush.xpose.msra.mxu0 %v1031
        %1140 = vmatmul.f32.gmra.mxu0 %v1048
        %v1141 = vpop.f32.mrf.mxu0
        %v1142 = vadd.f32 %v1122, %v1141
        %1143 = vdwg.mxu0
        %1144 = vmatpush.xpose.msra.mxu0 0.0
        %1145 = vmatpush.xpose.msra.mxu0 0.0
        %1146 = vmatpush.xpose.msra.mxu0 0.0
        %1147 = vmatpush.xpose.msra.mxu0 0.0
        %1148 = vmatpush.xpose.msra.mxu0 0.0
        %1149 = vmatpush.xpose.msra.mxu0 0.0
        %1150 = vmatpush.xpose.msra.mxu0 0.0
        %1151 = vmatpush.xpose.msra.mxu0 0.0
        %1152 = vmatpush.xpose.msra.mxu0 0.0
        %1153 = vmatpush.xpose.msra.mxu0 0.0
        %1154 = vmatpush.xpose.msra.mxu0 0.0
        %1155 = vmatpush.xpose.msra.mxu0 0.0
        %1156 = vmatpush.xpose.msra.mxu0 0.0
        %1157 = vmatpush.xpose.msra.mxu0 0.0
        %1158 = vmatpush.xpose.msra.mxu0 %v1038
        %1159 = vmatpush.xpose.msra.mxu0 %v1032
        %1160 = vmatmul.f32.gmra.mxu0 %v1049
        %v1161 = vpop.f32.mrf.mxu0
        %v1162 = vadd.f32 %v1142, %v1161
        %1163 = vdwg.mxu0
        %1164 = vmatpush.xpose.msra.mxu0 0.0
        %1165 = vmatpush.xpose.msra.mxu0 0.0
        %1166 = vmatpush.xpose.msra.mxu0 0.0
        %1167 = vmatpush.xpose.msra.mxu0 0.0
        %1168 = vmatpush.xpose.msra.mxu0 0.0
        %1169 = vmatpush.xpose.msra.mxu0 0.0
        %1170 = vmatpush.xpose.msra.mxu0 0.0
        %1171 = vmatpush.xpose.msra.mxu0 0.0
        %1172 = vmatpush.xpose.msra.mxu0 0.0
        %1173 = vmatpush.xpose.msra.mxu0 0.0
        %1174 = vmatpush.xpose.msra.mxu0 0.0
        %1175 = vmatpush.xpose.msra.mxu0 0.0
        %1176 = vmatpush.xpose.msra.mxu0 0.0
        %1177 = vmatpush.xpose.msra.mxu0 0.0
        %1178 = vmatpush.xpose.msra.mxu0 %v1062
        %1179 = vmatpush.xpose.msra.mxu0 %v1059
        %1180 = vmatmul.f32.gmra.mxu0 %v1056
        %v1181 = vpop.f32.mrf.mxu0
        %v1182 = vadd.f32 %v1162, %v1181
        %1183 = vdwg.mxu0
        %v1184 = vadd.f32 %v958, %v1182
        %s1185 = sadd.s32 %s257, 4
        %s1186 = smul.u32 %s1185, 128
        %s1187 = sld [smem:[#allocation2 + %s1186]]
        %v1188 = vstv %s1187
        %v1189 = vmul.f32 %v1188, %v260
        %v1190 = vmul.f32 %v1188, %v261
        %s1191 = sadd.s32 %s1186, 1
        %s1192 = sld [smem:[#allocation2 + %s1191]]
        %v1193 = vstv %s1192
        %v1194 = vmul.f32 %v1193, %v268
        %v1195 = vmul.f32 %v1193, %v269
        %v1196 = vadd.f32 %v1189, %v1194
        %v1197 = vadd.f32 %v1190, %v1195
        %s1198 = sadd.s32 %s1186, 2
        %s1199 = sld [smem:[#allocation2 + %s1198]]
        %v1200 = vstv %s1199
        %v1201 = vmul.f32 %v1200, %v278
        %v1202 = vmul.f32 %v1200, %v279
        %v1203 = vadd.f32 %v1196, %v1201
        %v1204 = vadd.f32 %v1197, %v1202
        %s1205 = sadd.s32 %s1186, 3
        %s1206 = sld [smem:[#allocation2 + %s1205]]
        %v1207 = vstv %s1206
        %v1208 = vmul.f32 %v1207, %v288
        %v1209 = vmul.f32 %v1207, %v289
        %v1210 = vadd.f32 %v1203, %v1208
        %v1211 = vadd.f32 %v1204, %v1209
        %s1212 = sadd.s32 %s1186, 4
        %s1213 = sld [smem:[#allocation2 + %s1212]]
        %v1214 = vstv %s1213
        %v1215 = vmul.f32 %v1214, %v298
        %v1216 = vmul.f32 %v1214, %v299
        %v1217 = vadd.f32 %v1210, %v1215
        %v1218 = vadd.f32 %v1211, %v1216
        %s1219 = sadd.s32 %s1186, 5
        %s1220 = sld [smem:[#allocation2 + %s1219]]
        %v1221 = vstv %s1220
        %v1222 = vmul.f32 %v1221, %v308
        %v1223 = vmul.f32 %v1221, %v309
        %v1224 = vadd.f32 %v1217, %v1222
        %v1225 = vadd.f32 %v1218, %v1223
        %s1226 = sadd.s32 %s1186, 6
        %s1227 = sld [smem:[#allocation2 + %s1226]]
        %v1228 = vstv %s1227
        %v1229 = vmul.f32 %v1228, %v318
        %v1230 = vmul.f32 %v1228, %v319
        %v1231 = vadd.f32 %v1224, %v1229
        %v1232 = vadd.f32 %v1225, %v1230
        %s1233 = sadd.s32 %s1186, 7
        %s1234 = sld [smem:[#allocation2 + %s1233]]
        %v1235 = vstv %s1234
        %v1236 = vmul.f32 %v1235, %v328
        %v1237 = vmul.f32 %v1235, %v329
        %v1238 = vadd.f32 %v1231, %v1236
        %v1239 = vadd.f32 %v1232, %v1237
        %s1240 = sadd.s32 %s1186, 8
        %s1241 = sld [smem:[#allocation2 + %s1240]]
        %v1242 = vstv %s1241
        %v1243 = vmul.f32 %v1242, %v338
        %v1244 = vmul.f32 %v1242, %v339
        %v1245 = vadd.f32 %v1238, %v1243
        %v1246 = vadd.f32 %v1239, %v1244
        %s1247 = sld [smem:[#allocation4 + %s1185]]
        %v1248 = vstv %s1247
        %v1249 = vadd.f32 %v1245, %v1248
        %v1250 = vadd.f32 %v1246, %v1248
        %v1251 = vmax.f32 %v1249, 0.0
        %v1252 = vmax.f32 %v1250, 0.0
        %s1253 = scalar_lea.vmem %s251, 384
        %v1254 = vld [vmem:[%s1253] sm:$0xff]
        %v1255 = vld [vmem:[%s1253 + $0x8] sm:$0xff]
        %v1256 = vld [vmem:[%s1253 + $0x10] sm:$0xff]
        %v1257 = vld [vmem:[%s1253 + $0x18] sm:$0xff]
        %v1258 = vld [vmem:[%s1253 + $0x20] sm:$0xff]
        %v1259 = vld [vmem:[%s1253 + $0x28] sm:$0xff]
        %v1260 = vld [vmem:[%s1253 + $0x30] sm:$0x3]
        %v1261 = vld [vmem:[%s1253 + $0x38] sm:$0x3]
        %v1262 = vld [vmem:[%s1253 + $0x40] sm:$0x3]
        %v1263 = vld [vmem:[%s1253 + $0x48] sm:$0x3]
        %v1264 = vld [vmem:[%s1253 + $0x50] sm:$0x3]
        %v1265 = vld [vmem:[%s1253 + $0x58] sm:$0x3]
        %1268 = vst [vmem:[#allocation1] ss:$4 sm:$0xff] %v1251
        %s1269 = scalar_lea.vmem [#allocation1], 32
        %1270 = vst [vmem:[%s1269] ss:$4 sm:$0xff] %v1252
        %v1271 = vld.sshfl [vmem:[#allocation1] sm:$0xff pattern:$0x73625140]
        %v1272 = vld.sshfl [vmem:[#allocation1 + $0x8] sm:$0xff pattern:$0x73625140]
        %v1273 = vld.sshfl [vmem:[#allocation1 + $0x10] sm:$0xff pattern:$0x73625140]
        %v1274 = vld.sshfl [vmem:[#allocation1 + $0x18] sm:$0xff pattern:$0x73625140]
        %v1275 = vld.sshfl [vmem:[#allocation1 + $0x20] sm:$0xff pattern:$0x73625140]
        %v1276 = vld.sshfl [vmem:[#allocation1 + $0x28] sm:$0xff pattern:$0x73625140]
        %v1282 = vsel %vm460, %v1276, 0
        %v1285 = vsel %vm460, %v1259, 0
        %v1288 = vsel %vm460, %v1265, 0
        %1290 = vmatpush.xpose.msra.mxu0 0.0
        %1291 = vmatpush.xpose.msra.mxu0 0.0
        %1292 = vmatpush.xpose.msra.mxu0 0.0
        %1293 = vmatpush.xpose.msra.mxu0 0.0
        %1294 = vmatpush.xpose.msra.mxu0 0.0
        %1295 = vmatpush.xpose.msra.mxu0 0.0
        %1296 = vmatpush.xpose.msra.mxu0 0.0
        %1297 = vmatpush.xpose.msra.mxu0 0.0
        %1298 = vmatpush.xpose.msra.mxu0 0.0
        %1299 = vmatpush.xpose.msra.mxu0 0.0
        %1300 = vmatpush.xpose.msra.mxu0 0.0
        %1301 = vmatpush.xpose.msra.mxu0 0.0
        %1302 = vmatpush.xpose.msra.mxu0 0.0
        %1303 = vmatpush.xpose.msra.mxu0 0.0
        %1304 = vmatpush.xpose.msra.mxu0 %v1260
        %1305 = vmatpush.xpose.msra.mxu0 %v1254
        %1306 = vmatmul.f32.gmra.mxu0 %v1271
        %v1307 = vpop.f32.mrf.mxu0
        %v1308 = vadd.f32 0.0, %v1307
        %1309 = vdwg.mxu0
        %1310 = vmatpush.xpose.msra.mxu0 0.0
        %1311 = vmatpush.xpose.msra.mxu0 0.0
        %1312 = vmatpush.xpose.msra.mxu0 0.0
        %1313 = vmatpush.xpose.msra.mxu0 0.0
        %1314 = vmatpush.xpose.msra.mxu0 0.0
        %1315 = vmatpush.xpose.msra.mxu0 0.0
        %1316 = vmatpush.xpose.msra.mxu0 0.0
        %1317 = vmatpush.xpose.msra.mxu0 0.0
        %1318 = vmatpush.xpose.msra.mxu0 0.0
        %1319 = vmatpush.xpose.msra.mxu0 0.0
        %1320 = vmatpush.xpose.msra.mxu0 0.0
        %1321 = vmatpush.xpose.msra.mxu0 0.0
        %1322 = vmatpush.xpose.msra.mxu0 0.0
        %1323 = vmatpush.xpose.msra.mxu0 0.0
        %1324 = vmatpush.xpose.msra.mxu0 %v1261
        %1325 = vmatpush.xpose.msra.mxu0 %v1255
        %1326 = vmatmul.f32.gmra.mxu0 %v1272
        %v1327 = vpop.f32.mrf.mxu0
        %v1328 = vadd.f32 %v1308, %v1327
        %1329 = vdwg.mxu0
        %1330 = vmatpush.xpose.msra.mxu0 0.0
        %1331 = vmatpush.xpose.msra.mxu0 0.0
        %1332 = vmatpush.xpose.msra.mxu0 0.0
        %1333 = vmatpush.xpose.msra.mxu0 0.0
        %1334 = vmatpush.xpose.msra.mxu0 0.0
        %1335 = vmatpush.xpose.msra.mxu0 0.0
        %1336 = vmatpush.xpose.msra.mxu0 0.0
        %1337 = vmatpush.xpose.msra.mxu0 0.0
        %1338 = vmatpush.xpose.msra.mxu0 0.0
        %1339 = vmatpush.xpose.msra.mxu0 0.0
        %1340 = vmatpush.xpose.msra.mxu0 0.0
        %1341 = vmatpush.xpose.msra.mxu0 0.0
        %1342 = vmatpush.xpose.msra.mxu0 0.0
        %1343 = vmatpush.xpose.msra.mxu0 0.0
        %1344 = vmatpush.xpose.msra.mxu0 %v1262
        %1345 = vmatpush.xpose.msra.mxu0 %v1256
        %1346 = vmatmul.f32.gmra.mxu0 %v1273
        %v1347 = vpop.f32.mrf.mxu0
        %v1348 = vadd.f32 %v1328, %v1347
        %1349 = vdwg.mxu0
        %1350 = vmatpush.xpose.msra.mxu0 0.0
        %1351 = vmatpush.xpose.msra.mxu0 0.0
        %1352 = vmatpush.xpose.msra.mxu0 0.0
        %1353 = vmatpush.xpose.msra.mxu0 0.0
        %1354 = vmatpush.xpose.msra.mxu0 0.0
        %1355 = vmatpush.xpose.msra.mxu0 0.0
        %1356 = vmatpush.xpose.msra.mxu0 0.0
        %1357 = vmatpush.xpose.msra.mxu0 0.0
        %1358 = vmatpush.xpose.msra.mxu0 0.0
        %1359 = vmatpush.xpose.msra.mxu0 0.0
        %1360 = vmatpush.xpose.msra.mxu0 0.0
        %1361 = vmatpush.xpose.msra.mxu0 0.0
        %1362 = vmatpush.xpose.msra.mxu0 0.0
        %1363 = vmatpush.xpose.msra.mxu0 0.0
        %1364 = vmatpush.xpose.msra.mxu0 %v1263
        %1365 = vmatpush.xpose.msra.mxu0 %v1257
        %1366 = vmatmul.f32.gmra.mxu0 %v1274
        %v1367 = vpop.f32.mrf.mxu0
        %v1368 = vadd.f32 %v1348, %v1367
        %1369 = vdwg.mxu0
        %1370 = vmatpush.xpose.msra.mxu0 0.0
        %1371 = vmatpush.xpose.msra.mxu0 0.0
        %1372 = vmatpush.xpose.msra.mxu0 0.0
        %1373 = vmatpush.xpose.msra.mxu0 0.0
        %1374 = vmatpush.xpose.msra.mxu0 0.0
        %1375 = vmatpush.xpose.msra.mxu0 0.0
        %1376 = vmatpush.xpose.msra.mxu0 0.0
        %1377 = vmatpush.xpose.msra.mxu0 0.0
        %1378 = vmatpush.xpose.msra.mxu0 0.0
        %1379 = vmatpush.xpose.msra.mxu0 0.0
        %1380 = vmatpush.xpose.msra.mxu0 0.0
        %1381 = vmatpush.xpose.msra.mxu0 0.0
        %1382 = vmatpush.xpose.msra.mxu0 0.0
        %1383 = vmatpush.xpose.msra.mxu0 0.0
        %1384 = vmatpush.xpose.msra.mxu0 %v1264
        %1385 = vmatpush.xpose.msra.mxu0 %v1258
        %1386 = vmatmul.f32.gmra.mxu0 %v1275
        %v1387 = vpop.f32.mrf.mxu0
        %v1388 = vadd.f32 %v1368, %v1387
        %1389 = vdwg.mxu0
        %1390 = vmatpush.xpose.msra.mxu0 0.0
        %1391 = vmatpush.xpose.msra.mxu0 0.0
        %1392 = vmatpush.xpose.msra.mxu0 0.0
        %1393 = vmatpush.xpose.msra.mxu0 0.0
        %1394 = vmatpush.xpose.msra.mxu0 0.0
        %1395 = vmatpush.xpose.msra.mxu0 0.0
        %1396 = vmatpush.xpose.msra.mxu0 0.0
        %1397 = vmatpush.xpose.msra.mxu0 0.0
        %1398 = vmatpush.xpose.msra.mxu0 0.0
        %1399 = vmatpush.xpose.msra.mxu0 0.0
        %1400 = vmatpush.xpose.msra.mxu0 0.0
        %1401 = vmatpush.xpose.msra.mxu0 0.0
        %1402 = vmatpush.xpose.msra.mxu0 0.0
        %1403 = vmatpush.xpose.msra.mxu0 0.0
        %1404 = vmatpush.xpose.msra.mxu0 %v1288
        %1405 = vmatpush.xpose.msra.mxu0 %v1285
        %1406 = vmatmul.f32.gmra.mxu0 %v1282
        %v1407 = vpop.f32.mrf.mxu0
        %v1408 = vadd.f32 %v1388, %v1407
        %1409 = vdwg.mxu0
        %v1410 = vadd.f32 %v1184, %v1408
        %s1411 = sadd.s32 %s257, 5
        %s1412 = smul.u32 %s1411, 128
        %s1413 = sld [smem:[#allocation2 + %s1412]]
        %v1414 = vstv %s1413
        %v1415 = vmul.f32 %v1414, %v260
        %v1416 = vmul.f32 %v1414, %v261
        %s1417 = sadd.s32 %s1412, 1
        %s1418 = sld [smem:[#allocation2 + %s1417]]
        %v1419 = vstv %s1418
        %v1420 = vmul.f32 %v1419, %v268
        %v1421 = vmul.f32 %v1419, %v269
        %v1422 = vadd.f32 %v1415, %v1420
        %v1423 = vadd.f32 %v1416, %v1421
        %s1424 = sadd.s32 %s1412, 2
        %s1425 = sld [smem:[#allocation2 + %s1424]]
        %v1426 = vstv %s1425
        %v1427 = vmul.f32 %v1426, %v278
        %v1428 = vmul.f32 %v1426, %v279
        %v1429 = vadd.f32 %v1422, %v1427
        %v1430 = vadd.f32 %v1423, %v1428
        %s1431 = sadd.s32 %s1412, 3
        %s1432 = sld [smem:[#allocation2 + %s1431]]
        %v1433 = vstv %s1432
        %v1434 = vmul.f32 %v1433, %v288
        %v1435 = vmul.f32 %v1433, %v289
        %v1436 = vadd.f32 %v1429, %v1434
        %v1437 = vadd.f32 %v1430, %v1435
        %s1438 = sadd.s32 %s1412, 4
        %s1439 = sld [smem:[#allocation2 + %s1438]]
        %v1440 = vstv %s1439
        %v1441 = vmul.f32 %v1440, %v298
        %v1442 = vmul.f32 %v1440, %v299
        %v1443 = vadd.f32 %v1436, %v1441
        %v1444 = vadd.f32 %v1437, %v1442
        %s1445 = sadd.s32 %s1412, 5
        %s1446 = sld [smem:[#allocation2 + %s1445]]
        %v1447 = vstv %s1446
        %v1448 = vmul.f32 %v1447, %v308
        %v1449 = vmul.f32 %v1447, %v309
        %v1450 = vadd.f32 %v1443, %v1448
        %v1451 = vadd.f32 %v1444, %v1449
        %s1452 = sadd.s32 %s1412, 6
        %s1453 = sld [smem:[#allocation2 + %s1452]]
        %v1454 = vstv %s1453
        %v1455 = vmul.f32 %v1454, %v318
        %v1456 = vmul.f32 %v1454, %v319
        %v1457 = vadd.f32 %v1450, %v1455
        %v1458 = vadd.f32 %v1451, %v1456
        %s1459 = sadd.s32 %s1412, 7
        %s1460 = sld [smem:[#allocation2 + %s1459]]
        %v1461 = vstv %s1460
        %v1462 = vmul.f32 %v1461, %v328
        %v1463 = vmul.f32 %v1461, %v329
        %v1464 = vadd.f32 %v1457, %v1462
        %v1465 = vadd.f32 %v1458, %v1463
        %s1466 = sadd.s32 %s1412, 8
        %s1467 = sld [smem:[#allocation2 + %s1466]]
        %v1468 = vstv %s1467
        %v1469 = vmul.f32 %v1468, %v338
        %v1470 = vmul.f32 %v1468, %v339
        %v1471 = vadd.f32 %v1464, %v1469
        %v1472 = vadd.f32 %v1465, %v1470
        %s1473 = sld [smem:[#allocation4 + %s1411]]
        %v1474 = vstv %s1473
        %v1475 = vadd.f32 %v1471, %v1474
        %v1476 = vadd.f32 %v1472, %v1474
        %v1477 = vmax.f32 %v1475, 0.0
        %v1478 = vmax.f32 %v1476, 0.0
        %s1479 = scalar_lea.vmem %s251, 480
        %v1480 = vld [vmem:[%s1479] sm:$0xff]
        %v1481 = vld [vmem:[%s1479 + $0x8] sm:$0xff]
        %v1482 = vld [vmem:[%s1479 + $0x10] sm:$0xff]
        %v1483 = vld [vmem:[%s1479 + $0x18] sm:$0xff]
        %v1484 = vld [vmem:[%s1479 + $0x20] sm:$0xff]
        %v1485 = vld [vmem:[%s1479 + $0x28] sm:$0xff]
        %v1486 = vld [vmem:[%s1479 + $0x30] sm:$0x3]
        %v1487 = vld [vmem:[%s1479 + $0x38] sm:$0x3]
        %v1488 = vld [vmem:[%s1479 + $0x40] sm:$0x3]
        %v1489 = vld [vmem:[%s1479 + $0x48] sm:$0x3]
        %v1490 = vld [vmem:[%s1479 + $0x50] sm:$0x3]
        %v1491 = vld [vmem:[%s1479 + $0x58] sm:$0x3]
        %1494 = vst [vmem:[#allocation1] ss:$4 sm:$0xff] %v1477
        %s1495 = scalar_lea.vmem [#allocation1], 32
        %1496 = vst [vmem:[%s1495] ss:$4 sm:$0xff] %v1478
        %v1497 = vld.sshfl [vmem:[#allocation1] sm:$0xff pattern:$0x73625140]
        %v1498 = vld.sshfl [vmem:[#allocation1 + $0x8] sm:$0xff pattern:$0x73625140]
        %v1499 = vld.sshfl [vmem:[#allocation1 + $0x10] sm:$0xff pattern:$0x73625140]
        %v1500 = vld.sshfl [vmem:[#allocation1 + $0x18] sm:$0xff pattern:$0x73625140]
        %v1501 = vld.sshfl [vmem:[#allocation1 + $0x20] sm:$0xff pattern:$0x73625140]
        %v1502 = vld.sshfl [vmem:[#allocation1 + $0x28] sm:$0xff pattern:$0x73625140]
        %v1508 = vsel %vm460, %v1502, 0
        %v1511 = vsel %vm460, %v1485, 0
        %v1514 = vsel %vm460, %v1491, 0
        %1516 = vmatpush.xpose.msra.mxu0 0.0
        %1517 = vmatpush.xpose.msra.mxu0 0.0
        %1518 = vmatpush.xpose.msra.mxu0 0.0
        %1519 = vmatpush.xpose.msra.mxu0 0.0
        %1520 = vmatpush.xpose.msra.mxu0 0.0
        %1521 = vmatpush.xpose.msra.mxu0 0.0
        %1522 = vmatpush.xpose.msra.mxu0 0.0
        %1523 = vmatpush.xpose.msra.mxu0 0.0
        %1524 = vmatpush.xpose.msra.mxu0 0.0
        %1525 = vmatpush.xpose.msra.mxu0 0.0
        %1526 = vmatpush.xpose.msra.mxu0 0.0
        %1527 = vmatpush.xpose.msra.mxu0 0.0
        %1528 = vmatpush.xpose.msra.mxu0 0.0
        %1529 = vmatpush.xpose.msra.mxu0 0.0
        %1530 = vmatpush.xpose.msra.mxu0 %v1486
        %1531 = vmatpush.xpose.msra.mxu0 %v1480
        %1532 = vmatmul.f32.gmra.mxu0 %v1497
        %v1533 = vpop.f32.mrf.mxu0
        %v1534 = vadd.f32 0.0, %v1533
        %1535 = vdwg.mxu0
        %1536 = vmatpush.xpose.msra.mxu0 0.0
        %1537 = vmatpush.xpose.msra.mxu0 0.0
        %1538 = vmatpush.xpose.msra.mxu0 0.0
        %1539 = vmatpush.xpose.msra.mxu0 0.0
        %1540 = vmatpush.xpose.msra.mxu0 0.0
        %1541 = vmatpush.xpose.msra.mxu0 0.0
        %1542 = vmatpush.xpose.msra.mxu0 0.0
        %1543 = vmatpush.xpose.msra.mxu0 0.0
        %1544 = vmatpush.xpose.msra.mxu0 0.0
        %1545 = vmatpush.xpose.msra.mxu0 0.0
        %1546 = vmatpush.xpose.msra.mxu0 0.0
        %1547 = vmatpush.xpose.msra.mxu0 0.0
        %1548 = vmatpush.xpose.msra.mxu0 0.0
        %1549 = vmatpush.xpose.msra.mxu0 0.0
        %1550 = vmatpush.xpose.msra.mxu0 %v1487
        %1551 = vmatpush.xpose.msra.mxu0 %v1481
        %1552 = vmatmul.f32.gmra.mxu0 %v1498
        %v1553 = vpop.f32.mrf.mxu0
        %v1554 = vadd.f32 %v1534, %v1553
        %1555 = vdwg.mxu0
        %1556 = vmatpush.xpose.msra.mxu0 0.0
        %1557 = vmatpush.xpose.msra.mxu0 0.0
        %1558 = vmatpush.xpose.msra.mxu0 0.0
        %1559 = vmatpush.xpose.msra.mxu0 0.0
        %1560 = vmatpush.xpose.msra.mxu0 0.0
        %1561 = vmatpush.xpose.msra.mxu0 0.0
        %1562 = vmatpush.xpose.msra.mxu0 0.0
        %1563 = vmatpush.xpose.msra.mxu0 0.0
        %1564 = vmatpush.xpose.msra.mxu0 0.0
        %1565 = vmatpush.xpose.msra.mxu0 0.0
        %1566 = vmatpush.xpose.msra.mxu0 0.0
        %1567 = vmatpush.xpose.msra.mxu0 0.0
        %1568 = vmatpush.xpose.msra.mxu0 0.0
        %1569 = vmatpush.xpose.msra.mxu0 0.0
        %1570 = vmatpush.xpose.msra.mxu0 %v1488
        %1571 = vmatpush.xpose.msra.mxu0 %v1482
        %1572 = vmatmul.f32.gmra.mxu0 %v1499
        %v1573 = vpop.f32.mrf.mxu0
        %v1574 = vadd.f32 %v1554, %v1573
        %1575 = vdwg.mxu0
        %1576 = vmatpush.xpose.msra.mxu0 0.0
        %1577 = vmatpush.xpose.msra.mxu0 0.0
        %1578 = vmatpush.xpose.msra.mxu0 0.0
        %1579 = vmatpush.xpose.msra.mxu0 0.0
        %1580 = vmatpush.xpose.msra.mxu0 0.0
        %1581 = vmatpush.xpose.msra.mxu0 0.0
        %1582 = vmatpush.xpose.msra.mxu0 0.0
        %1583 = vmatpush.xpose.msra.mxu0 0.0
        %1584 = vmatpush.xpose.msra.mxu0 0.0
        %1585 = vmatpush.xpose.msra.mxu0 0.0
        %1586 = vmatpush.xpose.msra.mxu0 0.0
        %1587 = vmatpush.xpose.msra.mxu0 0.0
        %1588 = vmatpush.xpose.msra.mxu0 0.0
        %1589 = vmatpush.xpose.msra.mxu0 0.0
        %1590 = vmatpush.xpose.msra.mxu0 %v1489
        %1591 = vmatpush.xpose.msra.mxu0 %v1483
        %1592 = vmatmul.f32.gmra.mxu0 %v1500
        %v1593 = vpop.f32.mrf.mxu0
        %v1594 = vadd.f32 %v1574, %v1593
        %1595 = vdwg.mxu0
        %1596 = vmatpush.xpose.msra.mxu0 0.0
        %1597 = vmatpush.xpose.msra.mxu0 0.0
        %1598 = vmatpush.xpose.msra.mxu0 0.0
        %1599 = vmatpush.xpose.msra.mxu0 0.0
        %1600 = vmatpush.xpose.msra.mxu0 0.0
        %1601 = vmatpush.xpose.msra.mxu0 0.0
        %1602 = vmatpush.xpose.msra.mxu0 0.0
        %1603 = vmatpush.xpose.msra.mxu0 0.0
        %1604 = vmatpush.xpose.msra.mxu0 0.0
        %1605 = vmatpush.xpose.msra.mxu0 0.0
        %1606 = vmatpush.xpose.msra.mxu0 0.0
        %1607 = vmatpush.xpose.msra.mxu0 0.0
        %1608 = vmatpush.xpose.msra.mxu0 0.0
        %1609 = vmatpush.xpose.msra.mxu0 0.0
        %1610 = vmatpush.xpose.msra.mxu0 %v1490
        %1611 = vmatpush.xpose.msra.mxu0 %v1484
        %1612 = vmatmul.f32.gmra.mxu0 %v1501
        %v1613 = vpop.f32.mrf.mxu0
        %v1614 = vadd.f32 %v1594, %v1613
        %1615 = vdwg.mxu0
        %1616 = vmatpush.xpose.msra.mxu0 0.0
        %1617 = vmatpush.xpose.msra.mxu0 0.0
        %1618 = vmatpush.xpose.msra.mxu0 0.0
        %1619 = vmatpush.xpose.msra.mxu0 0.0
        %1620 = vmatpush.xpose.msra.mxu0 0.0
        %1621 = vmatpush.xpose.msra.mxu0 0.0
        %1622 = vmatpush.xpose.msra.mxu0 0.0
        %1623 = vmatpush.xpose.msra.mxu0 0.0
        %1624 = vmatpush.xpose.msra.mxu0 0.0
        %1625 = vmatpush.xpose.msra.mxu0 0.0
        %1626 = vmatpush.xpose.msra.mxu0 0.0
        %1627 = vmatpush.xpose.msra.mxu0 0.0
        %1628 = vmatpush.xpose.msra.mxu0 0.0
        %1629 = vmatpush.xpose.msra.mxu0 0.0
        %1630 = vmatpush.xpose.msra.mxu0 %v1514
        %1631 = vmatpush.xpose.msra.mxu0 %v1511
        %1632 = vmatmul.f32.gmra.mxu0 %v1508
        %v1633 = vpop.f32.mrf.mxu0
        %v1634 = vadd.f32 %v1614, %v1633
        %1635 = vdwg.mxu0
        %v1636 = vadd.f32 %v1410, %v1634
        %s1637 = sadd.s32 %s257, 6
        %s1638 = smul.u32 %s1637, 128
        %s1639 = sld [smem:[#allocation2 + %s1638]]
        %v1640 = vstv %s1639
        %v1641 = vmul.f32 %v1640, %v260
        %v1642 = vmul.f32 %v1640, %v261
        %s1643 = sadd.s32 %s1638, 1
        %s1644 = sld [smem:[#allocation2 + %s1643]]
        %v1645 = vstv %s1644
        %v1646 = vmul.f32 %v1645, %v268
        %v1647 = vmul.f32 %v1645, %v269
        %v1648 = vadd.f32 %v1641, %v1646
        %v1649 = vadd.f32 %v1642, %v1647
        %s1650 = sadd.s32 %s1638, 2
        %s1651 = sld [smem:[#allocation2 + %s1650]]
        %v1652 = vstv %s1651
        %v1653 = vmul.f32 %v1652, %v278
        %v1654 = vmul.f32 %v1652, %v279
        %v1655 = vadd.f32 %v1648, %v1653
        %v1656 = vadd.f32 %v1649, %v1654
        %s1657 = sadd.s32 %s1638, 3
        %s1658 = sld [smem:[#allocation2 + %s1657]]
        %v1659 = vstv %s1658
        %v1660 = vmul.f32 %v1659, %v288
        %v1661 = vmul.f32 %v1659, %v289
        %v1662 = vadd.f32 %v1655, %v1660
        %v1663 = vadd.f32 %v1656, %v1661
        %s1664 = sadd.s32 %s1638, 4
        %s1665 = sld [smem:[#allocation2 + %s1664]]
        %v1666 = vstv %s1665
        %v1667 = vmul.f32 %v1666, %v298
        %v1668 = vmul.f32 %v1666, %v299
        %v1669 = vadd.f32 %v1662, %v1667
        %v1670 = vadd.f32 %v1663, %v1668
        %s1671 = sadd.s32 %s1638, 5
        %s1672 = sld [smem:[#allocation2 + %s1671]]
        %v1673 = vstv %s1672
        %v1674 = vmul.f32 %v1673, %v308
        %v1675 = vmul.f32 %v1673, %v309
        %v1676 = vadd.f32 %v1669, %v1674
        %v1677 = vadd.f32 %v1670, %v1675
        %s1678 = sadd.s32 %s1638, 6
        %s1679 = sld [smem:[#allocation2 + %s1678]]
        %v1680 = vstv %s1679
        %v1681 = vmul.f32 %v1680, %v318
        %v1682 = vmul.f32 %v1680, %v319
        %v1683 = vadd.f32 %v1676, %v1681
        %v1684 = vadd.f32 %v1677, %v1682
        %s1685 = sadd.s32 %s1638, 7
        %s1686 = sld [smem:[#allocation2 + %s1685]]
        %v1687 = vstv %s1686
        %v1688 = vmul.f32 %v1687, %v328
        %v1689 = vmul.f32 %v1687, %v329
        %v1690 = vadd.f32 %v1683, %v1688
        %v1691 = vadd.f32 %v1684, %v1689
        %s1692 = sadd.s32 %s1638, 8
        %s1693 = sld [smem:[#allocation2 + %s1692]]
        %v1694 = vstv %s1693
        %v1695 = vmul.f32 %v1694, %v338
        %v1696 = vmul.f32 %v1694, %v339
        %v1697 = vadd.f32 %v1690, %v1695
        %v1698 = vadd.f32 %v1691, %v1696
        %s1699 = sld [smem:[#allocation4 + %s1637]]
        %v1700 = vstv %s1699
        %v1701 = vadd.f32 %v1697, %v1700
        %v1702 = vadd.f32 %v1698, %v1700
        %v1703 = vmax.f32 %v1701, 0.0
        %v1704 = vmax.f32 %v1702, 0.0
        %s1705 = scalar_lea.vmem %s251, 576
        %v1706 = vld [vmem:[%s1705] sm:$0xff]
        %v1707 = vld [vmem:[%s1705 + $0x8] sm:$0xff]
        %v1708 = vld [vmem:[%s1705 + $0x10] sm:$0xff]
        %v1709 = vld [vmem:[%s1705 + $0x18] sm:$0xff]
        %v1710 = vld [vmem:[%s1705 + $0x20] sm:$0xff]
        %v1711 = vld [vmem:[%s1705 + $0x28] sm:$0xff]
        %v1712 = vld [vmem:[%s1705 + $0x30] sm:$0x3]
        %v1713 = vld [vmem:[%s1705 + $0x38] sm:$0x3]
        %v1714 = vld [vmem:[%s1705 + $0x40] sm:$0x3]
        %v1715 = vld [vmem:[%s1705 + $0x48] sm:$0x3]
        %v1716 = vld [vmem:[%s1705 + $0x50] sm:$0x3]
        %v1717 = vld [vmem:[%s1705 + $0x58] sm:$0x3]
        %1720 = vst [vmem:[#allocation1] ss:$4 sm:$0xff] %v1703
        %s1721 = scalar_lea.vmem [#allocation1], 32
        %1722 = vst [vmem:[%s1721] ss:$4 sm:$0xff] %v1704
        %v1723 = vld.sshfl [vmem:[#allocation1] sm:$0xff pattern:$0x73625140]
        %v1724 = vld.sshfl [vmem:[#allocation1 + $0x8] sm:$0xff pattern:$0x73625140]
        %v1725 = vld.sshfl [vmem:[#allocation1 + $0x10] sm:$0xff pattern:$0x73625140]
        %v1726 = vld.sshfl [vmem:[#allocation1 + $0x18] sm:$0xff pattern:$0x73625140]
        %v1727 = vld.sshfl [vmem:[#allocation1 + $0x20] sm:$0xff pattern:$0x73625140]
        %v1728 = vld.sshfl [vmem:[#allocation1 + $0x28] sm:$0xff pattern:$0x73625140]
        %v1734 = vsel %vm460, %v1728, 0
        %v1737 = vsel %vm460, %v1711, 0
        %v1740 = vsel %vm460, %v1717, 0
        %1742 = vmatpush.xpose.msra.mxu0 0.0
        %1743 = vmatpush.xpose.msra.mxu0 0.0
        %1744 = vmatpush.xpose.msra.mxu0 0.0
        %1745 = vmatpush.xpose.msra.mxu0 0.0
        %1746 = vmatpush.xpose.msra.mxu0 0.0
        %1747 = vmatpush.xpose.msra.mxu0 0.0
        %1748 = vmatpush.xpose.msra.mxu0 0.0
        %1749 = vmatpush.xpose.msra.mxu0 0.0
        %1750 = vmatpush.xpose.msra.mxu0 0.0
        %1751 = vmatpush.xpose.msra.mxu0 0.0
        %1752 = vmatpush.xpose.msra.mxu0 0.0
        %1753 = vmatpush.xpose.msra.mxu0 0.0
        %1754 = vmatpush.xpose.msra.mxu0 0.0
        %1755 = vmatpush.xpose.msra.mxu0 0.0
        %1756 = vmatpush.xpose.msra.mxu0 %v1712
        %1757 = vmatpush.xpose.msra.mxu0 %v1706
        %1758 = vmatmul.f32.gmra.mxu0 %v1723
        %v1759 = vpop.f32.mrf.mxu0
        %v1760 = vadd.f32 0.0, %v1759
        %1761 = vdwg.mxu0
        %1762 = vmatpush.xpose.msra.mxu0 0.0
        %1763 = vmatpush.xpose.msra.mxu0 0.0
        %1764 = vmatpush.xpose.msra.mxu0 0.0
        %1765 = vmatpush.xpose.msra.mxu0 0.0
        %1766 = vmatpush.xpose.msra.mxu0 0.0
        %1767 = vmatpush.xpose.msra.mxu0 0.0
        %1768 = vmatpush.xpose.msra.mxu0 0.0
        %1769 = vmatpush.xpose.msra.mxu0 0.0
        %1770 = vmatpush.xpose.msra.mxu0 0.0
        %1771 = vmatpush.xpose.msra.mxu0 0.0
        %1772 = vmatpush.xpose.msra.mxu0 0.0
        %1773 = vmatpush.xpose.msra.mxu0 0.0
        %1774 = vmatpush.xpose.msra.mxu0 0.0
        %1775 = vmatpush.xpose.msra.mxu0 0.0
        %1776 = vmatpush.xpose.msra.mxu0 %v1713
        %1777 = vmatpush.xpose.msra.mxu0 %v1707
        %1778 = vmatmul.f32.gmra.mxu0 %v1724
        %v1779 = vpop.f32.mrf.mxu0
        %v1780 = vadd.f32 %v1760, %v1779
        %1781 = vdwg.mxu0
        %1782 = vmatpush.xpose.msra.mxu0 0.0
        %1783 = vmatpush.xpose.msra.mxu0 0.0
        %1784 = vmatpush.xpose.msra.mxu0 0.0
        %1785 = vmatpush.xpose.msra.mxu0 0.0
        %1786 = vmatpush.xpose.msra.mxu0 0.0
        %1787 = vmatpush.xpose.msra.mxu0 0.0
        %1788 = vmatpush.xpose.msra.mxu0 0.0
        %1789 = vmatpush.xpose.msra.mxu0 0.0
        %1790 = vmatpush.xpose.msra.mxu0 0.0
        %1791 = vmatpush.xpose.msra.mxu0 0.0
        %1792 = vmatpush.xpose.msra.mxu0 0.0
        %1793 = vmatpush.xpose.msra.mxu0 0.0
        %1794 = vmatpush.xpose.msra.mxu0 0.0
        %1795 = vmatpush.xpose.msra.mxu0 0.0
        %1796 = vmatpush.xpose.msra.mxu0 %v1714
        %1797 = vmatpush.xpose.msra.mxu0 %v1708
        %1798 = vmatmul.f32.gmra.mxu0 %v1725
        %v1799 = vpop.f32.mrf.mxu0
        %v1800 = vadd.f32 %v1780, %v1799
        %1801 = vdwg.mxu0
        %1802 = vmatpush.xpose.msra.mxu0 0.0
        %1803 = vmatpush.xpose.msra.mxu0 0.0
        %1804 = vmatpush.xpose.msra.mxu0 0.0
        %1805 = vmatpush.xpose.msra.mxu0 0.0
        %1806 = vmatpush.xpose.msra.mxu0 0.0
        %1807 = vmatpush.xpose.msra.mxu0 0.0
        %1808 = vmatpush.xpose.msra.mxu0 0.0
        %1809 = vmatpush.xpose.msra.mxu0 0.0
        %1810 = vmatpush.xpose.msra.mxu0 0.0
        %1811 = vmatpush.xpose.msra.mxu0 0.0
        %1812 = vmatpush.xpose.msra.mxu0 0.0
        %1813 = vmatpush.xpose.msra.mxu0 0.0
        %1814 = vmatpush.xpose.msra.mxu0 0.0
        %1815 = vmatpush.xpose.msra.mxu0 0.0
        %1816 = vmatpush.xpose.msra.mxu0 %v1715
        %1817 = vmatpush.xpose.msra.mxu0 %v1709
        %1818 = vmatmul.f32.gmra.mxu0 %v1726
        %v1819 = vpop.f32.mrf.mxu0
        %v1820 = vadd.f32 %v1800, %v1819
        %1821 = vdwg.mxu0
        %1822 = vmatpush.xpose.msra.mxu0 0.0
        %1823 = vmatpush.xpose.msra.mxu0 0.0
        %1824 = vmatpush.xpose.msra.mxu0 0.0
        %1825 = vmatpush.xpose.msra.mxu0 0.0
        %1826 = vmatpush.xpose.msra.mxu0 0.0
        %1827 = vmatpush.xpose.msra.mxu0 0.0
        %1828 = vmatpush.xpose.msra.mxu0 0.0
        %1829 = vmatpush.xpose.msra.mxu0 0.0
        %1830 = vmatpush.xpose.msra.mxu0 0.0
        %1831 = vmatpush.xpose.msra.mxu0 0.0
        %1832 = vmatpush.xpose.msra.mxu0 0.0
        %1833 = vmatpush.xpose.msra.mxu0 0.0
        %1834 = vmatpush.xpose.msra.mxu0 0.0
        %1835 = vmatpush.xpose.msra.mxu0 0.0
        %1836 = vmatpush.xpose.msra.mxu0 %v1716
        %1837 = vmatpush.xpose.msra.mxu0 %v1710
        %1838 = vmatmul.f32.gmra.mxu0 %v1727
        %v1839 = vpop.f32.mrf.mxu0
        %v1840 = vadd.f32 %v1820, %v1839
        %1841 = vdwg.mxu0
        %1842 = vmatpush.xpose.msra.mxu0 0.0
        %1843 = vmatpush.xpose.msra.mxu0 0.0
        %1844 = vmatpush.xpose.msra.mxu0 0.0
        %1845 = vmatpush.xpose.msra.mxu0 0.0
        %1846 = vmatpush.xpose.msra.mxu0 0.0
        %1847 = vmatpush.xpose.msra.mxu0 0.0
        %1848 = vmatpush.xpose.msra.mxu0 0.0
        %1849 = vmatpush.xpose.msra.mxu0 0.0
        %1850 = vmatpush.xpose.msra.mxu0 0.0
        %1851 = vmatpush.xpose.msra.mxu0 0.0
        %1852 = vmatpush.xpose.msra.mxu0 0.0
        %1853 = vmatpush.xpose.msra.mxu0 0.0
        %1854 = vmatpush.xpose.msra.mxu0 0.0
        %1855 = vmatpush.xpose.msra.mxu0 0.0
        %1856 = vmatpush.xpose.msra.mxu0 %v1740
        %1857 = vmatpush.xpose.msra.mxu0 %v1737
        %1858 = vmatmul.f32.gmra.mxu0 %v1734
        %v1859 = vpop.f32.mrf.mxu0
        %v1860 = vadd.f32 %v1840, %v1859
        %1861 = vdwg.mxu0
        %v1862 = vadd.f32 %v1636, %v1860
        %s1863 = sadd.s32 %s257, 7
        %s1864 = smul.u32 %s1863, 128
        %s1865 = sld [smem:[#allocation2 + %s1864]]
        %v1866 = vstv %s1865
        %v1867 = vmul.f32 %v1866, %v260
        %v1868 = vmul.f32 %v1866, %v261
        %s1869 = sadd.s32 %s1864, 1
        %s1870 = sld [smem:[#allocation2 + %s1869]]
        %v1871 = vstv %s1870
        %v1872 = vmul.f32 %v1871, %v268
        %v1873 = vmul.f32 %v1871, %v269
        %v1874 = vadd.f32 %v1867, %v1872
        %v1875 = vadd.f32 %v1868, %v1873
        %s1876 = sadd.s32 %s1864, 2
        %s1877 = sld [smem:[#allocation2 + %s1876]]
        %v1878 = vstv %s1877
        %v1879 = vmul.f32 %v1878, %v278
        %v1880 = vmul.f32 %v1878, %v279
        %v1881 = vadd.f32 %v1874, %v1879
        %v1882 = vadd.f32 %v1875, %v1880
        %s1883 = sadd.s32 %s1864, 3
        %s1884 = sld [smem:[#allocation2 + %s1883]]
        %v1885 = vstv %s1884
        %v1886 = vmul.f32 %v1885, %v288
        %v1887 = vmul.f32 %v1885, %v289
        %v1888 = vadd.f32 %v1881, %v1886
        %v1889 = vadd.f32 %v1882, %v1887
        %s1890 = sadd.s32 %s1864, 4
        %s1891 = sld [smem:[#allocation2 + %s1890]]
        %v1892 = vstv %s1891
        %v1893 = vmul.f32 %v1892, %v298
        %v1894 = vmul.f32 %v1892, %v299
        %v1895 = vadd.f32 %v1888, %v1893
        %v1896 = vadd.f32 %v1889, %v1894
        %s1897 = sadd.s32 %s1864, 5
        %s1898 = sld [smem:[#allocation2 + %s1897]]
        %v1899 = vstv %s1898
        %v1900 = vmul.f32 %v1899, %v308
        %v1901 = vmul.f32 %v1899, %v309
        %v1902 = vadd.f32 %v1895, %v1900
        %v1903 = vadd.f32 %v1896, %v1901
        %s1904 = sadd.s32 %s1864, 6
        %s1905 = sld [smem:[#allocation2 + %s1904]]
        %v1906 = vstv %s1905
        %v1907 = vmul.f32 %v1906, %v318
        %v1908 = vmul.f32 %v1906, %v319
        %v1909 = vadd.f32 %v1902, %v1907
        %v1910 = vadd.f32 %v1903, %v1908
        %s1911 = sadd.s32 %s1864, 7
        %s1912 = sld [smem:[#allocation2 + %s1911]]
        %v1913 = vstv %s1912
        %v1914 = vmul.f32 %v1913, %v328
        %v1915 = vmul.f32 %v1913, %v329
        %v1916 = vadd.f32 %v1909, %v1914
        %v1917 = vadd.f32 %v1910, %v1915
        %s1918 = sadd.s32 %s1864, 8
        %s1919 = sld [smem:[#allocation2 + %s1918]]
        %v1920 = vstv %s1919
        %v1921 = vmul.f32 %v1920, %v338
        %v1922 = vmul.f32 %v1920, %v339
        %v1923 = vadd.f32 %v1916, %v1921
        %v1924 = vadd.f32 %v1917, %v1922
        %s1925 = sld [smem:[#allocation4 + %s1863]]
        %v1926 = vstv %s1925
        %v1927 = vadd.f32 %v1923, %v1926
        %v1928 = vadd.f32 %v1924, %v1926
        %v1929 = vmax.f32 %v1927, 0.0
        %v1930 = vmax.f32 %v1928, 0.0
        %s1931 = scalar_lea.vmem %s251, 672
        %v1932 = vld [vmem:[%s1931] sm:$0xff]
        %v1933 = vld [vmem:[%s1931 + $0x8] sm:$0xff]
        %v1934 = vld [vmem:[%s1931 + $0x10] sm:$0xff]
        %v1935 = vld [vmem:[%s1931 + $0x18] sm:$0xff]
        %v1936 = vld [vmem:[%s1931 + $0x20] sm:$0xff]
        %v1937 = vld [vmem:[%s1931 + $0x28] sm:$0xff]
        %v1938 = vld [vmem:[%s1931 + $0x30] sm:$0x3]
        %v1939 = vld [vmem:[%s1931 + $0x38] sm:$0x3]
        %v1940 = vld [vmem:[%s1931 + $0x40] sm:$0x3]
        %v1941 = vld [vmem:[%s1931 + $0x48] sm:$0x3]
        %v1942 = vld [vmem:[%s1931 + $0x50] sm:$0x3]
        %v1943 = vld [vmem:[%s1931 + $0x58] sm:$0x3]
        %1946 = vst [vmem:[#allocation1] ss:$4 sm:$0xff] %v1929
        %s1947 = scalar_lea.vmem [#allocation1], 32
        %1948 = vst [vmem:[%s1947] ss:$4 sm:$0xff] %v1930
        %v1949 = vld.sshfl [vmem:[#allocation1] sm:$0xff pattern:$0x73625140]
        %v1950 = vld.sshfl [vmem:[#allocation1 + $0x8] sm:$0xff pattern:$0x73625140]
        %v1951 = vld.sshfl [vmem:[#allocation1 + $0x10] sm:$0xff pattern:$0x73625140]
        %v1952 = vld.sshfl [vmem:[#allocation1 + $0x18] sm:$0xff pattern:$0x73625140]
        %v1953 = vld.sshfl [vmem:[#allocation1 + $0x20] sm:$0xff pattern:$0x73625140]
        %v1954 = vld.sshfl [vmem:[#allocation1 + $0x28] sm:$0xff pattern:$0x73625140]
        %v1960 = vsel %vm460, %v1954, 0
        %v1963 = vsel %vm460, %v1937, 0
        %v1966 = vsel %vm460, %v1943, 0
        %1968 = vmatpush.xpose.msra.mxu0 0.0
        %1969 = vmatpush.xpose.msra.mxu0 0.0
        %1970 = vmatpush.xpose.msra.mxu0 0.0
        %1971 = vmatpush.xpose.msra.mxu0 0.0
        %1972 = vmatpush.xpose.msra.mxu0 0.0
        %1973 = vmatpush.xpose.msra.mxu0 0.0
        %1974 = vmatpush.xpose.msra.mxu0 0.0
        %1975 = vmatpush.xpose.msra.mxu0 0.0
        %1976 = vmatpush.xpose.msra.mxu0 0.0
        %1977 = vmatpush.xpose.msra.mxu0 0.0
        %1978 = vmatpush.xpose.msra.mxu0 0.0
        %1979 = vmatpush.xpose.msra.mxu0 0.0
        %1980 = vmatpush.xpose.msra.mxu0 0.0
        %1981 = vmatpush.xpose.msra.mxu0 0.0
        %1982 = vmatpush.xpose.msra.mxu0 %v1938
        %1983 = vmatpush.xpose.msra.mxu0 %v1932
        %1984 = vmatmul.f32.gmra.mxu0 %v1949
        %v1985 = vpop.f32.mrf.mxu0
        %v1986 = vadd.f32 0.0, %v1985
        %1987 = vdwg.mxu0
        %1988 = vmatpush.xpose.msra.mxu0 0.0
        %1989 = vmatpush.xpose.msra.mxu0 0.0
        %1990 = vmatpush.xpose.msra.mxu0 0.0
        %1991 = vmatpush.xpose.msra.mxu0 0.0
        %1992 = vmatpush.xpose.msra.mxu0 0.0
        %1993 = vmatpush.xpose.msra.mxu0 0.0
        %1994 = vmatpush.xpose.msra.mxu0 0.0
        %1995 = vmatpush.xpose.msra.mxu0 0.0
        %1996 = vmatpush.xpose.msra.mxu0 0.0
        %1997 = vmatpush.xpose.msra.mxu0 0.0
        %1998 = vmatpush.xpose.msra.mxu0 0.0
        %1999 = vmatpush.xpose.msra.mxu0 0.0
        %2000 = vmatpush.xpose.msra.mxu0 0.0
        %2001 = vmatpush.xpose.msra.mxu0 0.0
        %2002 = vmatpush.xpose.msra.mxu0 %v1939
        %2003 = vmatpush.xpose.msra.mxu0 %v1933
        %2004 = vmatmul.f32.gmra.mxu0 %v1950
        %v2005 = vpop.f32.mrf.mxu0
        %v2006 = vadd.f32 %v1986, %v2005
        %2007 = vdwg.mxu0
        %2008 = vmatpush.xpose.msra.mxu0 0.0
        %2009 = vmatpush.xpose.msra.mxu0 0.0
        %2010 = vmatpush.xpose.msra.mxu0 0.0
        %2011 = vmatpush.xpose.msra.mxu0 0.0
        %2012 = vmatpush.xpose.msra.mxu0 0.0
        %2013 = vmatpush.xpose.msra.mxu0 0.0
        %2014 = vmatpush.xpose.msra.mxu0 0.0
        %2015 = vmatpush.xpose.msra.mxu0 0.0
        %2016 = vmatpush.xpose.msra.mxu0 0.0
        %2017 = vmatpush.xpose.msra.mxu0 0.0
        %2018 = vmatpush.xpose.msra.mxu0 0.0
        %2019 = vmatpush.xpose.msra.mxu0 0.0
        %2020 = vmatpush.xpose.msra.mxu0 0.0
        %2021 = vmatpush.xpose.msra.mxu0 0.0
        %2022 = vmatpush.xpose.msra.mxu0 %v1940
        %2023 = vmatpush.xpose.msra.mxu0 %v1934
        %2024 = vmatmul.f32.gmra.mxu0 %v1951
        %v2025 = vpop.f32.mrf.mxu0
        %v2026 = vadd.f32 %v2006, %v2025
        %2027 = vdwg.mxu0
        %2028 = vmatpush.xpose.msra.mxu0 0.0
        %2029 = vmatpush.xpose.msra.mxu0 0.0
        %2030 = vmatpush.xpose.msra.mxu0 0.0
        %2031 = vmatpush.xpose.msra.mxu0 0.0
        %2032 = vmatpush.xpose.msra.mxu0 0.0
        %2033 = vmatpush.xpose.msra.mxu0 0.0
        %2034 = vmatpush.xpose.msra.mxu0 0.0
        %2035 = vmatpush.xpose.msra.mxu0 0.0
        %2036 = vmatpush.xpose.msra.mxu0 0.0
        %2037 = vmatpush.xpose.msra.mxu0 0.0
        %2038 = vmatpush.xpose.msra.mxu0 0.0
        %2039 = vmatpush.xpose.msra.mxu0 0.0
        %2040 = vmatpush.xpose.msra.mxu0 0.0
        %2041 = vmatpush.xpose.msra.mxu0 0.0
        %2042 = vmatpush.xpose.msra.mxu0 %v1941
        %2043 = vmatpush.xpose.msra.mxu0 %v1935
        %2044 = vmatmul.f32.gmra.mxu0 %v1952
        %v2045 = vpop.f32.mrf.mxu0
        %v2046 = vadd.f32 %v2026, %v2045
        %2047 = vdwg.mxu0
        %2048 = vmatpush.xpose.msra.mxu0 0.0
        %2049 = vmatpush.xpose.msra.mxu0 0.0
        %2050 = vmatpush.xpose.msra.mxu0 0.0
        %2051 = vmatpush.xpose.msra.mxu0 0.0
        %2052 = vmatpush.xpose.msra.mxu0 0.0
        %2053 = vmatpush.xpose.msra.mxu0 0.0
        %2054 = vmatpush.xpose.msra.mxu0 0.0
        %2055 = vmatpush.xpose.msra.mxu0 0.0
        %2056 = vmatpush.xpose.msra.mxu0 0.0
        %2057 = vmatpush.xpose.msra.mxu0 0.0
        %2058 = vmatpush.xpose.msra.mxu0 0.0
        %2059 = vmatpush.xpose.msra.mxu0 0.0
        %2060 = vmatpush.xpose.msra.mxu0 0.0
        %2061 = vmatpush.xpose.msra.mxu0 0.0
        %2062 = vmatpush.xpose.msra.mxu0 %v1942
        %2063 = vmatpush.xpose.msra.mxu0 %v1936
        %2064 = vmatmul.f32.gmra.mxu0 %v1953
        %v2065 = vpop.f32.mrf.mxu0
        %v2066 = vadd.f32 %v2046, %v2065
        %2067 = vdwg.mxu0
        %2068 = vmatpush.xpose.msra.mxu0 0.0
        %2069 = vmatpush.xpose.msra.mxu0 0.0
        %2070 = vmatpush.xpose.msra.mxu0 0.0
        %2071 = vmatpush.xpose.msra.mxu0 0.0
        %2072 = vmatpush.xpose.msra.mxu0 0.0
        %2073 = vmatpush.xpose.msra.mxu0 0.0
        %2074 = vmatpush.xpose.msra.mxu0 0.0
        %2075 = vmatpush.xpose.msra.mxu0 0.0
        %2076 = vmatpush.xpose.msra.mxu0 0.0
        %2077 = vmatpush.xpose.msra.mxu0 0.0
        %2078 = vmatpush.xpose.msra.mxu0 0.0
        %2079 = vmatpush.xpose.msra.mxu0 0.0
        %2080 = vmatpush.xpose.msra.mxu0 0.0
        %2081 = vmatpush.xpose.msra.mxu0 0.0
        %2082 = vmatpush.xpose.msra.mxu0 %v1966
        %2083 = vmatpush.xpose.msra.mxu0 %v1963
        %2084 = vmatmul.f32.gmra.mxu0 %v1960
        %v2085 = vpop.f32.mrf.mxu0
        %v2086 = vadd.f32 %v2066, %v2085
        %2087 = vdwg.mxu0
        %v2088 = vadd.f32 %v1862, %v2086
        %s2089 = sadd.s32 %s257, 8
        %s2090 = smul.u32 %s2089, 128
        %s2091 = sld [smem:[#allocation2 + %s2090]]
        %v2092 = vstv %s2091
        %v2093 = vmul.f32 %v2092, %v260
        %v2094 = vmul.f32 %v2092, %v261
        %s2095 = sadd.s32 %s2090, 1
        %s2096 = sld [smem:[#allocation2 + %s2095]]
        %v2097 = vstv %s2096
        %v2098 = vmul.f32 %v2097, %v268
        %v2099 = vmul.f32 %v2097, %v269
        %v2100 = vadd.f32 %v2093, %v2098
        %v2101 = vadd.f32 %v2094, %v2099
        %s2102 = sadd.s32 %s2090, 2
        %s2103 = sld [smem:[#allocation2 + %s2102]]
        %v2104 = vstv %s2103
        %v2105 = vmul.f32 %v2104, %v278
        %v2106 = vmul.f32 %v2104, %v279
        %v2107 = vadd.f32 %v2100, %v2105
        %v2108 = vadd.f32 %v2101, %v2106
        %s2109 = sadd.s32 %s2090, 3
        %s2110 = sld [smem:[#allocation2 + %s2109]]
        %v2111 = vstv %s2110
        %v2112 = vmul.f32 %v2111, %v288
        %v2113 = vmul.f32 %v2111, %v289
        %v2114 = vadd.f32 %v2107, %v2112
        %v2115 = vadd.f32 %v2108, %v2113
        %s2116 = sadd.s32 %s2090, 4
        %s2117 = sld [smem:[#allocation2 + %s2116]]
        %v2118 = vstv %s2117
        %v2119 = vmul.f32 %v2118, %v298
        %v2120 = vmul.f32 %v2118, %v299
        %v2121 = vadd.f32 %v2114, %v2119
        %v2122 = vadd.f32 %v2115, %v2120
        %s2123 = sadd.s32 %s2090, 5
        %s2124 = sld [smem:[#allocation2 + %s2123]]
        %v2125 = vstv %s2124
        %v2126 = vmul.f32 %v2125, %v308
        %v2127 = vmul.f32 %v2125, %v309
        %v2128 = vadd.f32 %v2121, %v2126
        %v2129 = vadd.f32 %v2122, %v2127
        %s2130 = sadd.s32 %s2090, 6
        %s2131 = sld [smem:[#allocation2 + %s2130]]
        %v2132 = vstv %s2131
        %v2133 = vmul.f32 %v2132, %v318
        %v2134 = vmul.f32 %v2132, %v319
        %v2135 = vadd.f32 %v2128, %v2133
        %v2136 = vadd.f32 %v2129, %v2134
        %s2137 = sadd.s32 %s2090, 7
        %s2138 = sld [smem:[#allocation2 + %s2137]]
        %v2139 = vstv %s2138
        %v2140 = vmul.f32 %v2139, %v328
        %v2141 = vmul.f32 %v2139, %v329
        %v2142 = vadd.f32 %v2135, %v2140
        %v2143 = vadd.f32 %v2136, %v2141
        %s2144 = sadd.s32 %s2090, 8
        %s2145 = sld [smem:[#allocation2 + %s2144]]
        %v2146 = vstv %s2145
        %v2147 = vmul.f32 %v2146, %v338
        %v2148 = vmul.f32 %v2146, %v339
        %v2149 = vadd.f32 %v2142, %v2147
        %v2150 = vadd.f32 %v2143, %v2148
        %s2151 = sld [smem:[#allocation4 + %s2089]]
        %v2152 = vstv %s2151
        %v2153 = vadd.f32 %v2149, %v2152
        %v2154 = vadd.f32 %v2150, %v2152
        %v2155 = vmax.f32 %v2153, 0.0
        %v2156 = vmax.f32 %v2154, 0.0
        %s2157 = scalar_lea.vmem %s251, 768
        %v2158 = vld [vmem:[%s2157] sm:$0xff]
        %v2159 = vld [vmem:[%s2157 + $0x8] sm:$0xff]
        %v2160 = vld [vmem:[%s2157 + $0x10] sm:$0xff]
        %v2161 = vld [vmem:[%s2157 + $0x18] sm:$0xff]
        %v2162 = vld [vmem:[%s2157 + $0x20] sm:$0xff]
        %v2163 = vld [vmem:[%s2157 + $0x28] sm:$0xff]
        %v2164 = vld [vmem:[%s2157 + $0x30] sm:$0x3]
        %v2165 = vld [vmem:[%s2157 + $0x38] sm:$0x3]
        %v2166 = vld [vmem:[%s2157 + $0x40] sm:$0x3]
        %v2167 = vld [vmem:[%s2157 + $0x48] sm:$0x3]
        %v2168 = vld [vmem:[%s2157 + $0x50] sm:$0x3]
        %v2169 = vld [vmem:[%s2157 + $0x58] sm:$0x3]
        %2172 = vst [vmem:[#allocation1] ss:$4 sm:$0xff] %v2155
        %s2173 = scalar_lea.vmem [#allocation1], 32
        %2174 = vst [vmem:[%s2173] ss:$4 sm:$0xff] %v2156
        %v2175 = vld.sshfl [vmem:[#allocation1] sm:$0xff pattern:$0x73625140]
        %v2176 = vld.sshfl [vmem:[#allocation1 + $0x8] sm:$0xff pattern:$0x73625140]
        %v2177 = vld.sshfl [vmem:[#allocation1 + $0x10] sm:$0xff pattern:$0x73625140]
        %v2178 = vld.sshfl [vmem:[#allocation1 + $0x18] sm:$0xff pattern:$0x73625140]
        %v2179 = vld.sshfl [vmem:[#allocation1 + $0x20] sm:$0xff pattern:$0x73625140]
        %v2180 = vld.sshfl [vmem:[#allocation1 + $0x28] sm:$0xff pattern:$0x73625140]
        %v2186 = vsel %vm460, %v2180, 0
        %v2189 = vsel %vm460, %v2163, 0
        %v2192 = vsel %vm460, %v2169, 0
        %2194 = vmatpush.xpose.msra.mxu0 0.0
        %2195 = vmatpush.xpose.msra.mxu0 0.0
        %2196 = vmatpush.xpose.msra.mxu0 0.0
        %2197 = vmatpush.xpose.msra.mxu0 0.0
        %2198 = vmatpush.xpose.msra.mxu0 0.0
        %2199 = vmatpush.xpose.msra.mxu0 0.0
        %2200 = vmatpush.xpose.msra.mxu0 0.0
        %2201 = vmatpush.xpose.msra.mxu0 0.0
        %2202 = vmatpush.xpose.msra.mxu0 0.0
        %2203 = vmatpush.xpose.msra.mxu0 0.0
        %2204 = vmatpush.xpose.msra.mxu0 0.0
        %2205 = vmatpush.xpose.msra.mxu0 0.0
        %2206 = vmatpush.xpose.msra.mxu0 0.0
        %2207 = vmatpush.xpose.msra.mxu0 0.0
        %2208 = vmatpush.xpose.msra.mxu0 %v2164
        %2209 = vmatpush.xpose.msra.mxu0 %v2158
        %2210 = vmatmul.f32.gmra.mxu0 %v2175
        %v2211 = vpop.f32.mrf.mxu0
        %v2212 = vadd.f32 0.0, %v2211
        %2213 = vdwg.mxu0
        %2214 = vmatpush.xpose.msra.mxu0 0.0
        %2215 = vmatpush.xpose.msra.mxu0 0.0
        %2216 = vmatpush.xpose.msra.mxu0 0.0
        %2217 = vmatpush.xpose.msra.mxu0 0.0
        %2218 = vmatpush.xpose.msra.mxu0 0.0
        %2219 = vmatpush.xpose.msra.mxu0 0.0
        %2220 = vmatpush.xpose.msra.mxu0 0.0
        %2221 = vmatpush.xpose.msra.mxu0 0.0
        %2222 = vmatpush.xpose.msra.mxu0 0.0
        %2223 = vmatpush.xpose.msra.mxu0 0.0
        %2224 = vmatpush.xpose.msra.mxu0 0.0
        %2225 = vmatpush.xpose.msra.mxu0 0.0
        %2226 = vmatpush.xpose.msra.mxu0 0.0
        %2227 = vmatpush.xpose.msra.mxu0 0.0
        %2228 = vmatpush.xpose.msra.mxu0 %v2165
        %2229 = vmatpush.xpose.msra.mxu0 %v2159
        %2230 = vmatmul.f32.gmra.mxu0 %v2176
        %v2231 = vpop.f32.mrf.mxu0
        %v2232 = vadd.f32 %v2212, %v2231
        %2233 = vdwg.mxu0
        %2234 = vmatpush.xpose.msra.mxu0 0.0
        %2235 = vmatpush.xpose.msra.mxu0 0.0
        %2236 = vmatpush.xpose.msra.mxu0 0.0
        %2237 = vmatpush.xpose.msra.mxu0 0.0
        %2238 = vmatpush.xpose.msra.mxu0 0.0
        %2239 = vmatpush.xpose.msra.mxu0 0.0
        %2240 = vmatpush.xpose.msra.mxu0 0.0
        %2241 = vmatpush.xpose.msra.mxu0 0.0
        %2242 = vmatpush.xpose.msra.mxu0 0.0
        %2243 = vmatpush.xpose.msra.mxu0 0.0
        %2244 = vmatpush.xpose.msra.mxu0 0.0
        %2245 = vmatpush.xpose.msra.mxu0 0.0
        %2246 = vmatpush.xpose.msra.mxu0 0.0
        %2247 = vmatpush.xpose.msra.mxu0 0.0
        %2248 = vmatpush.xpose.msra.mxu0 %v2166
        %2249 = vmatpush.xpose.msra.mxu0 %v2160
        %2250 = vmatmul.f32.gmra.mxu0 %v2177
        %v2251 = vpop.f32.mrf.mxu0
        %v2252 = vadd.f32 %v2232, %v2251
        %2253 = vdwg.mxu0
        %2254 = vmatpush.xpose.msra.mxu0 0.0
        %2255 = vmatpush.xpose.msra.mxu0 0.0
        %2256 = vmatpush.xpose.msra.mxu0 0.0
        %2257 = vmatpush.xpose.msra.mxu0 0.0
        %2258 = vmatpush.xpose.msra.mxu0 0.0
        %2259 = vmatpush.xpose.msra.mxu0 0.0
        %2260 = vmatpush.xpose.msra.mxu0 0.0
        %2261 = vmatpush.xpose.msra.mxu0 0.0
        %2262 = vmatpush.xpose.msra.mxu0 0.0
        %2263 = vmatpush.xpose.msra.mxu0 0.0
        %2264 = vmatpush.xpose.msra.mxu0 0.0
        %2265 = vmatpush.xpose.msra.mxu0 0.0
        %2266 = vmatpush.xpose.msra.mxu0 0.0
        %2267 = vmatpush.xpose.msra.mxu0 0.0
        %2268 = vmatpush.xpose.msra.mxu0 %v2167
        %2269 = vmatpush.xpose.msra.mxu0 %v2161
        %2270 = vmatmul.f32.gmra.mxu0 %v2178
        %v2271 = vpop.f32.mrf.mxu0
        %v2272 = vadd.f32 %v2252, %v2271
        %2273 = vdwg.mxu0
        %2274 = vmatpush.xpose.msra.mxu0 0.0
        %2275 = vmatpush.xpose.msra.mxu0 0.0
        %2276 = vmatpush.xpose.msra.mxu0 0.0
        %2277 = vmatpush.xpose.msra.mxu0 0.0
        %2278 = vmatpush.xpose.msra.mxu0 0.0
        %2279 = vmatpush.xpose.msra.mxu0 0.0
        %2280 = vmatpush.xpose.msra.mxu0 0.0
        %2281 = vmatpush.xpose.msra.mxu0 0.0
        %2282 = vmatpush.xpose.msra.mxu0 0.0
        %2283 = vmatpush.xpose.msra.mxu0 0.0
        %2284 = vmatpush.xpose.msra.mxu0 0.0
        %2285 = vmatpush.xpose.msra.mxu0 0.0
        %2286 = vmatpush.xpose.msra.mxu0 0.0
        %2287 = vmatpush.xpose.msra.mxu0 0.0
        %2288 = vmatpush.xpose.msra.mxu0 %v2168
        %2289 = vmatpush.xpose.msra.mxu0 %v2162
        %2290 = vmatmul.f32.gmra.mxu0 %v2179
        %v2291 = vpop.f32.mrf.mxu0
        %v2292 = vadd.f32 %v2272, %v2291
        %2293 = vdwg.mxu0
        %2294 = vmatpush.xpose.msra.mxu0 0.0
        %2295 = vmatpush.xpose.msra.mxu0 0.0
        %2296 = vmatpush.xpose.msra.mxu0 0.0
        %2297 = vmatpush.xpose.msra.mxu0 0.0
        %2298 = vmatpush.xpose.msra.mxu0 0.0
        %2299 = vmatpush.xpose.msra.mxu0 0.0
        %2300 = vmatpush.xpose.msra.mxu0 0.0
        %2301 = vmatpush.xpose.msra.mxu0 0.0
        %2302 = vmatpush.xpose.msra.mxu0 0.0
        %2303 = vmatpush.xpose.msra.mxu0 0.0
        %2304 = vmatpush.xpose.msra.mxu0 0.0
        %2305 = vmatpush.xpose.msra.mxu0 0.0
        %2306 = vmatpush.xpose.msra.mxu0 0.0
        %2307 = vmatpush.xpose.msra.mxu0 0.0
        %2308 = vmatpush.xpose.msra.mxu0 %v2192
        %2309 = vmatpush.xpose.msra.mxu0 %v2189
        %2310 = vmatmul.f32.gmra.mxu0 %v2186
        %v2311 = vpop.f32.mrf.mxu0
        %v2312 = vadd.f32 %v2292, %v2311
        %2313 = vdwg.mxu0
        %v2314 = vadd.f32 %v2088, %v2312
        %s2315 = sadd.s32 %s257, 9
        %s2316 = smul.u32 %s2315, 128
        %s2317 = sld [smem:[#allocation2 + %s2316]]
        %v2318 = vstv %s2317
        %v2319 = vmul.f32 %v2318, %v260
        %v2320 = vmul.f32 %v2318, %v261
        %s2321 = sadd.s32 %s2316, 1
        %s2322 = sld [smem:[#allocation2 + %s2321]]
        %v2323 = vstv %s2322
        %v2324 = vmul.f32 %v2323, %v268
        %v2325 = vmul.f32 %v2323, %v269
        %v2326 = vadd.f32 %v2319, %v2324
        %v2327 = vadd.f32 %v2320, %v2325
        %s2328 = sadd.s32 %s2316, 2
        %s2329 = sld [smem:[#allocation2 + %s2328]]
        %v2330 = vstv %s2329
        %v2331 = vmul.f32 %v2330, %v278
        %v2332 = vmul.f32 %v2330, %v279
        %v2333 = vadd.f32 %v2326, %v2331
        %v2334 = vadd.f32 %v2327, %v2332
        %s2335 = sadd.s32 %s2316, 3
        %s2336 = sld [smem:[#allocation2 + %s2335]]
        %v2337 = vstv %s2336
        %v2338 = vmul.f32 %v2337, %v288
        %v2339 = vmul.f32 %v2337, %v289
        %v2340 = vadd.f32 %v2333, %v2338
        %v2341 = vadd.f32 %v2334, %v2339
        %s2342 = sadd.s32 %s2316, 4
        %s2343 = sld [smem:[#allocation2 + %s2342]]
        %v2344 = vstv %s2343
        %v2345 = vmul.f32 %v2344, %v298
        %v2346 = vmul.f32 %v2344, %v299
        %v2347 = vadd.f32 %v2340, %v2345
        %v2348 = vadd.f32 %v2341, %v2346
        %s2349 = sadd.s32 %s2316, 5
        %s2350 = sld [smem:[#allocation2 + %s2349]]
        %v2351 = vstv %s2350
        %v2352 = vmul.f32 %v2351, %v308
        %v2353 = vmul.f32 %v2351, %v309
        %v2354 = vadd.f32 %v2347, %v2352
        %v2355 = vadd.f32 %v2348, %v2353
        %s2356 = sadd.s32 %s2316, 6
        %s2357 = sld [smem:[#allocation2 + %s2356]]
        %v2358 = vstv %s2357
        %v2359 = vmul.f32 %v2358, %v318
        %v2360 = vmul.f32 %v2358, %v319
        %v2361 = vadd.f32 %v2354, %v2359
        %v2362 = vadd.f32 %v2355, %v2360
        %s2363 = sadd.s32 %s2316, 7
        %s2364 = sld [smem:[#allocation2 + %s2363]]
        %v2365 = vstv %s2364
        %v2366 = vmul.f32 %v2365, %v328
        %v2367 = vmul.f32 %v2365, %v329
        %v2368 = vadd.f32 %v2361, %v2366
        %v2369 = vadd.f32 %v2362, %v2367
        %s2370 = sadd.s32 %s2316, 8
        %s2371 = sld [smem:[#allocation2 + %s2370]]
        %v2372 = vstv %s2371
        %v2373 = vmul.f32 %v2372, %v338
        %v2374 = vmul.f32 %v2372, %v339
        %v2375 = vadd.f32 %v2368, %v2373
        %v2376 = vadd.f32 %v2369, %v2374
        %s2377 = sld [smem:[#allocation4 + %s2315]]
        %v2378 = vstv %s2377
        %v2379 = vadd.f32 %v2375, %v2378
        %v2380 = vadd.f32 %v2376, %v2378
        %v2381 = vmax.f32 %v2379, 0.0
        %v2382 = vmax.f32 %v2380, 0.0
        %s2383 = scalar_lea.vmem %s251, 864
        %v2384 = vld [vmem:[%s2383] sm:$0xff]
        %v2385 = vld [vmem:[%s2383 + $0x8] sm:$0xff]
        %v2386 = vld [vmem:[%s2383 + $0x10] sm:$0xff]
        %v2387 = vld [vmem:[%s2383 + $0x18] sm:$0xff]
        %v2388 = vld [vmem:[%s2383 + $0x20] sm:$0xff]
        %v2389 = vld [vmem:[%s2383 + $0x28] sm:$0xff]
        %v2390 = vld [vmem:[%s2383 + $0x30] sm:$0x3]
        %v2391 = vld [vmem:[%s2383 + $0x38] sm:$0x3]
        %v2392 = vld [vmem:[%s2383 + $0x40] sm:$0x3]
        %v2393 = vld [vmem:[%s2383 + $0x48] sm:$0x3]
        %v2394 = vld [vmem:[%s2383 + $0x50] sm:$0x3]
        %v2395 = vld [vmem:[%s2383 + $0x58] sm:$0x3]
        %2398 = vst [vmem:[#allocation1] ss:$4 sm:$0xff] %v2381
        %s2399 = scalar_lea.vmem [#allocation1], 32
        %2400 = vst [vmem:[%s2399] ss:$4 sm:$0xff] %v2382
        %v2401 = vld.sshfl [vmem:[#allocation1] sm:$0xff pattern:$0x73625140]
        %v2402 = vld.sshfl [vmem:[#allocation1 + $0x8] sm:$0xff pattern:$0x73625140]
        %v2403 = vld.sshfl [vmem:[#allocation1 + $0x10] sm:$0xff pattern:$0x73625140]
        %v2404 = vld.sshfl [vmem:[#allocation1 + $0x18] sm:$0xff pattern:$0x73625140]
        %v2405 = vld.sshfl [vmem:[#allocation1 + $0x20] sm:$0xff pattern:$0x73625140]
        %v2406 = vld.sshfl [vmem:[#allocation1 + $0x28] sm:$0xff pattern:$0x73625140]
        %v2412 = vsel %vm460, %v2406, 0
        %v2415 = vsel %vm460, %v2389, 0
        %v2418 = vsel %vm460, %v2395, 0
        %2420 = vmatpush.xpose.msra.mxu0 0.0
        %2421 = vmatpush.xpose.msra.mxu0 0.0
        %2422 = vmatpush.xpose.msra.mxu0 0.0
        %2423 = vmatpush.xpose.msra.mxu0 0.0
        %2424 = vmatpush.xpose.msra.mxu0 0.0
        %2425 = vmatpush.xpose.msra.mxu0 0.0
        %2426 = vmatpush.xpose.msra.mxu0 0.0
        %2427 = vmatpush.xpose.msra.mxu0 0.0
        %2428 = vmatpush.xpose.msra.mxu0 0.0
        %2429 = vmatpush.xpose.msra.mxu0 0.0
        %2430 = vmatpush.xpose.msra.mxu0 0.0
        %2431 = vmatpush.xpose.msra.mxu0 0.0
        %2432 = vmatpush.xpose.msra.mxu0 0.0
        %2433 = vmatpush.xpose.msra.mxu0 0.0
        %2434 = vmatpush.xpose.msra.mxu0 %v2390
        %2435 = vmatpush.xpose.msra.mxu0 %v2384
        %2436 = vmatmul.f32.gmra.mxu0 %v2401
        %v2437 = vpop.f32.mrf.mxu0
        %v2438 = vadd.f32 0.0, %v2437
        %2439 = vdwg.mxu0
        %2440 = vmatpush.xpose.msra.mxu0 0.0
        %2441 = vmatpush.xpose.msra.mxu0 0.0
        %2442 = vmatpush.xpose.msra.mxu0 0.0
        %2443 = vmatpush.xpose.msra.mxu0 0.0
        %2444 = vmatpush.xpose.msra.mxu0 0.0
        %2445 = vmatpush.xpose.msra.mxu0 0.0
        %2446 = vmatpush.xpose.msra.mxu0 0.0
        %2447 = vmatpush.xpose.msra.mxu0 0.0
        %2448 = vmatpush.xpose.msra.mxu0 0.0
        %2449 = vmatpush.xpose.msra.mxu0 0.0
        %2450 = vmatpush.xpose.msra.mxu0 0.0
        %2451 = vmatpush.xpose.msra.mxu0 0.0
        %2452 = vmatpush.xpose.msra.mxu0 0.0
        %2453 = vmatpush.xpose.msra.mxu0 0.0
        %2454 = vmatpush.xpose.msra.mxu0 %v2391
        %2455 = vmatpush.xpose.msra.mxu0 %v2385
        %2456 = vmatmul.f32.gmra.mxu0 %v2402
        %v2457 = vpop.f32.mrf.mxu0
        %v2458 = vadd.f32 %v2438, %v2457
        %2459 = vdwg.mxu0
        %2460 = vmatpush.xpose.msra.mxu0 0.0
        %2461 = vmatpush.xpose.msra.mxu0 0.0
        %2462 = vmatpush.xpose.msra.mxu0 0.0
        %2463 = vmatpush.xpose.msra.mxu0 0.0
        %2464 = vmatpush.xpose.msra.mxu0 0.0
        %2465 = vmatpush.xpose.msra.mxu0 0.0
        %2466 = vmatpush.xpose.msra.mxu0 0.0
        %2467 = vmatpush.xpose.msra.mxu0 0.0
        %2468 = vmatpush.xpose.msra.mxu0 0.0
        %2469 = vmatpush.xpose.msra.mxu0 0.0
        %2470 = vmatpush.xpose.msra.mxu0 0.0
        %2471 = vmatpush.xpose.msra.mxu0 0.0
        %2472 = vmatpush.xpose.msra.mxu0 0.0
        %2473 = vmatpush.xpose.msra.mxu0 0.0
        %2474 = vmatpush.xpose.msra.mxu0 %v2392
        %2475 = vmatpush.xpose.msra.mxu0 %v2386
        %2476 = vmatmul.f32.gmra.mxu0 %v2403
        %v2477 = vpop.f32.mrf.mxu0
        %v2478 = vadd.f32 %v2458, %v2477
        %2479 = vdwg.mxu0
        %2480 = vmatpush.xpose.msra.mxu0 0.0
        %2481 = vmatpush.xpose.msra.mxu0 0.0
        %2482 = vmatpush.xpose.msra.mxu0 0.0
        %2483 = vmatpush.xpose.msra.mxu0 0.0
        %2484 = vmatpush.xpose.msra.mxu0 0.0
        %2485 = vmatpush.xpose.msra.mxu0 0.0
        %2486 = vmatpush.xpose.msra.mxu0 0.0
        %2487 = vmatpush.xpose.msra.mxu0 0.0
        %2488 = vmatpush.xpose.msra.mxu0 0.0
        %2489 = vmatpush.xpose.msra.mxu0 0.0
        %2490 = vmatpush.xpose.msra.mxu0 0.0
        %2491 = vmatpush.xpose.msra.mxu0 0.0
        %2492 = vmatpush.xpose.msra.mxu0 0.0
        %2493 = vmatpush.xpose.msra.mxu0 0.0
        %2494 = vmatpush.xpose.msra.mxu0 %v2393
        %2495 = vmatpush.xpose.msra.mxu0 %v2387
        %2496 = vmatmul.f32.gmra.mxu0 %v2404
        %v2497 = vpop.f32.mrf.mxu0
        %v2498 = vadd.f32 %v2478, %v2497
        %2499 = vdwg.mxu0
        %2500 = vmatpush.xpose.msra.mxu0 0.0
        %2501 = vmatpush.xpose.msra.mxu0 0.0
        %2502 = vmatpush.xpose.msra.mxu0 0.0
        %2503 = vmatpush.xpose.msra.mxu0 0.0
        %2504 = vmatpush.xpose.msra.mxu0 0.0
        %2505 = vmatpush.xpose.msra.mxu0 0.0
        %2506 = vmatpush.xpose.msra.mxu0 0.0
        %2507 = vmatpush.xpose.msra.mxu0 0.0
        %2508 = vmatpush.xpose.msra.mxu0 0.0
        %2509 = vmatpush.xpose.msra.mxu0 0.0
        %2510 = vmatpush.xpose.msra.mxu0 0.0
        %2511 = vmatpush.xpose.msra.mxu0 0.0
        %2512 = vmatpush.xpose.msra.mxu0 0.0
        %2513 = vmatpush.xpose.msra.mxu0 0.0
        %2514 = vmatpush.xpose.msra.mxu0 %v2394
        %2515 = vmatpush.xpose.msra.mxu0 %v2388
        %2516 = vmatmul.f32.gmra.mxu0 %v2405
        %v2517 = vpop.f32.mrf.mxu0
        %v2518 = vadd.f32 %v2498, %v2517
        %2519 = vdwg.mxu0
        %2520 = vmatpush.xpose.msra.mxu0 0.0
        %2521 = vmatpush.xpose.msra.mxu0 0.0
        %2522 = vmatpush.xpose.msra.mxu0 0.0
        %2523 = vmatpush.xpose.msra.mxu0 0.0
        %2524 = vmatpush.xpose.msra.mxu0 0.0
        %2525 = vmatpush.xpose.msra.mxu0 0.0
        %2526 = vmatpush.xpose.msra.mxu0 0.0
        %2527 = vmatpush.xpose.msra.mxu0 0.0
        %2528 = vmatpush.xpose.msra.mxu0 0.0
        %2529 = vmatpush.xpose.msra.mxu0 0.0
        %2530 = vmatpush.xpose.msra.mxu0 0.0
        %2531 = vmatpush.xpose.msra.mxu0 0.0
        %2532 = vmatpush.xpose.msra.mxu0 0.0
        %2533 = vmatpush.xpose.msra.mxu0 0.0
        %2534 = vmatpush.xpose.msra.mxu0 %v2418
        %2535 = vmatpush.xpose.msra.mxu0 %v2415
        %2536 = vmatmul.f32.gmra.mxu0 %v2412
        %v2537 = vpop.f32.mrf.mxu0
        %v2538 = vadd.f32 %v2518, %v2537
        %2539 = vdwg.mxu0
        %v2540 = vadd.f32 %v2314, %v2538
        %s2541 = sadd.s32 %s257, 10
        %s2542 = smul.u32 %s2541, 128
        %s2543 = sld [smem:[#allocation2 + %s2542]]
        %v2544 = vstv %s2543
        %v2545 = vmul.f32 %v2544, %v260
        %v2546 = vmul.f32 %v2544, %v261
        %s2547 = sadd.s32 %s2542, 1
        %s2548 = sld [smem:[#allocation2 + %s2547]]
        %v2549 = vstv %s2548
        %v2550 = vmul.f32 %v2549, %v268
        %v2551 = vmul.f32 %v2549, %v269
        %v2552 = vadd.f32 %v2545, %v2550
        %v2553 = vadd.f32 %v2546, %v2551
        %s2554 = sadd.s32 %s2542, 2
        %s2555 = sld [smem:[#allocation2 + %s2554]]
        %v2556 = vstv %s2555
        %v2557 = vmul.f32 %v2556, %v278
        %v2558 = vmul.f32 %v2556, %v279
        %v2559 = vadd.f32 %v2552, %v2557
        %v2560 = vadd.f32 %v2553, %v2558
        %s2561 = sadd.s32 %s2542, 3
        %s2562 = sld [smem:[#allocation2 + %s2561]]
        %v2563 = vstv %s2562
        %v2564 = vmul.f32 %v2563, %v288
        %v2565 = vmul.f32 %v2563, %v289
        %v2566 = vadd.f32 %v2559, %v2564
        %v2567 = vadd.f32 %v2560, %v2565
        %s2568 = sadd.s32 %s2542, 4
        %s2569 = sld [smem:[#allocation2 + %s2568]]
        %v2570 = vstv %s2569
        %v2571 = vmul.f32 %v2570, %v298
        %v2572 = vmul.f32 %v2570, %v299
        %v2573 = vadd.f32 %v2566, %v2571
        %v2574 = vadd.f32 %v2567, %v2572
        %s2575 = sadd.s32 %s2542, 5
        %s2576 = sld [smem:[#allocation2 + %s2575]]
        %v2577 = vstv %s2576
        %v2578 = vmul.f32 %v2577, %v308
        %v2579 = vmul.f32 %v2577, %v309
        %v2580 = vadd.f32 %v2573, %v2578
        %v2581 = vadd.f32 %v2574, %v2579
        %s2582 = sadd.s32 %s2542, 6
        %s2583 = sld [smem:[#allocation2 + %s2582]]
        %v2584 = vstv %s2583
        %v2585 = vmul.f32 %v2584, %v318
        %v2586 = vmul.f32 %v2584, %v319
        %v2587 = vadd.f32 %v2580, %v2585
        %v2588 = vadd.f32 %v2581, %v2586
        %s2589 = sadd.s32 %s2542, 7
        %s2590 = sld [smem:[#allocation2 + %s2589]]
        %v2591 = vstv %s2590
        %v2592 = vmul.f32 %v2591, %v328
        %v2593 = vmul.f32 %v2591, %v329
        %v2594 = vadd.f32 %v2587, %v2592
        %v2595 = vadd.f32 %v2588, %v2593
        %s2596 = sadd.s32 %s2542, 8
        %s2597 = sld [smem:[#allocation2 + %s2596]]
        %v2598 = vstv %s2597
        %v2599 = vmul.f32 %v2598, %v338
        %v2600 = vmul.f32 %v2598, %v339
        %v2601 = vadd.f32 %v2594, %v2599
        %v2602 = vadd.f32 %v2595, %v2600
        %s2603 = sld [smem:[#allocation4 + %s2541]]
        %v2604 = vstv %s2603
        %v2605 = vadd.f32 %v2601, %v2604
        %v2606 = vadd.f32 %v2602, %v2604
        %v2607 = vmax.f32 %v2605, 0.0
        %v2608 = vmax.f32 %v2606, 0.0
        %s2609 = scalar_lea.vmem %s251, 960
        %v2610 = vld [vmem:[%s2609] sm:$0xff]
        %v2611 = vld [vmem:[%s2609 + $0x8] sm:$0xff]
        %v2612 = vld [vmem:[%s2609 + $0x10] sm:$0xff]
        %v2613 = vld [vmem:[%s2609 + $0x18] sm:$0xff]
        %v2614 = vld [vmem:[%s2609 + $0x20] sm:$0xff]
        %v2615 = vld [vmem:[%s2609 + $0x28] sm:$0xff]
        %v2616 = vld [vmem:[%s2609 + $0x30] sm:$0x3]
        %v2617 = vld [vmem:[%s2609 + $0x38] sm:$0x3]
        %v2618 = vld [vmem:[%s2609 + $0x40] sm:$0x3]
        %v2619 = vld [vmem:[%s2609 + $0x48] sm:$0x3]
        %v2620 = vld [vmem:[%s2609 + $0x50] sm:$0x3]
        %v2621 = vld [vmem:[%s2609 + $0x58] sm:$0x3]
        %2624 = vst [vmem:[#allocation1] ss:$4 sm:$0xff] %v2607
        %s2625 = scalar_lea.vmem [#allocation1], 32
        %2626 = vst [vmem:[%s2625] ss:$4 sm:$0xff] %v2608
        %v2627 = vld.sshfl [vmem:[#allocation1] sm:$0xff pattern:$0x73625140]
        %v2628 = vld.sshfl [vmem:[#allocation1 + $0x8] sm:$0xff pattern:$0x73625140]
        %v2629 = vld.sshfl [vmem:[#allocation1 + $0x10] sm:$0xff pattern:$0x73625140]
        %v2630 = vld.sshfl [vmem:[#allocation1 + $0x18] sm:$0xff pattern:$0x73625140]
        %v2631 = vld.sshfl [vmem:[#allocation1 + $0x20] sm:$0xff pattern:$0x73625140]
        %v2632 = vld.sshfl [vmem:[#allocation1 + $0x28] sm:$0xff pattern:$0x73625140]
        %v2638 = vsel %vm460, %v2632, 0
        %v2641 = vsel %vm460, %v2615, 0
        %v2644 = vsel %vm460, %v2621, 0
        %2646 = vmatpush.xpose.msra.mxu0 0.0
        %2647 = vmatpush.xpose.msra.mxu0 0.0
        %2648 = vmatpush.xpose.msra.mxu0 0.0
        %2649 = vmatpush.xpose.msra.mxu0 0.0
        %2650 = vmatpush.xpose.msra.mxu0 0.0
        %2651 = vmatpush.xpose.msra.mxu0 0.0
        %2652 = vmatpush.xpose.msra.mxu0 0.0
        %2653 = vmatpush.xpose.msra.mxu0 0.0
        %2654 = vmatpush.xpose.msra.mxu0 0.0
        %2655 = vmatpush.xpose.msra.mxu0 0.0
        %2656 = vmatpush.xpose.msra.mxu0 0.0
        %2657 = vmatpush.xpose.msra.mxu0 0.0
        %2658 = vmatpush.xpose.msra.mxu0 0.0
        %2659 = vmatpush.xpose.msra.mxu0 0.0
        %2660 = vmatpush.xpose.msra.mxu0 %v2616
        %2661 = vmatpush.xpose.msra.mxu0 %v2610
        %2662 = vmatmul.f32.gmra.mxu0 %v2627
        %v2663 = vpop.f32.mrf.mxu0
        %v2664 = vadd.f32 0.0, %v2663
        %2665 = vdwg.mxu0
        %2666 = vmatpush.xpose.msra.mxu0 0.0
        %2667 = vmatpush.xpose.msra.mxu0 0.0
        %2668 = vmatpush.xpose.msra.mxu0 0.0
        %2669 = vmatpush.xpose.msra.mxu0 0.0
        %2670 = vmatpush.xpose.msra.mxu0 0.0
        %2671 = vmatpush.xpose.msra.mxu0 0.0
        %2672 = vmatpush.xpose.msra.mxu0 0.0
        %2673 = vmatpush.xpose.msra.mxu0 0.0
        %2674 = vmatpush.xpose.msra.mxu0 0.0
        %2675 = vmatpush.xpose.msra.mxu0 0.0
        %2676 = vmatpush.xpose.msra.mxu0 0.0
        %2677 = vmatpush.xpose.msra.mxu0 0.0
        %2678 = vmatpush.xpose.msra.mxu0 0.0
        %2679 = vmatpush.xpose.msra.mxu0 0.0
        %2680 = vmatpush.xpose.msra.mxu0 %v2617
        %2681 = vmatpush.xpose.msra.mxu0 %v2611
        %2682 = vmatmul.f32.gmra.mxu0 %v2628
        %v2683 = vpop.f32.mrf.mxu0
        %v2684 = vadd.f32 %v2664, %v2683
        %2685 = vdwg.mxu0
        %2686 = vmatpush.xpose.msra.mxu0 0.0
        %2687 = vmatpush.xpose.msra.mxu0 0.0
        %2688 = vmatpush.xpose.msra.mxu0 0.0
        %2689 = vmatpush.xpose.msra.mxu0 0.0
        %2690 = vmatpush.xpose.msra.mxu0 0.0
        %2691 = vmatpush.xpose.msra.mxu0 0.0
        %2692 = vmatpush.xpose.msra.mxu0 0.0
        %2693 = vmatpush.xpose.msra.mxu0 0.0
        %2694 = vmatpush.xpose.msra.mxu0 0.0
        %2695 = vmatpush.xpose.msra.mxu0 0.0
        %2696 = vmatpush.xpose.msra.mxu0 0.0
        %2697 = vmatpush.xpose.msra.mxu0 0.0
        %2698 = vmatpush.xpose.msra.mxu0 0.0
        %2699 = vmatpush.xpose.msra.mxu0 0.0
        %2700 = vmatpush.xpose.msra.mxu0 %v2618
        %2701 = vmatpush.xpose.msra.mxu0 %v2612
        %2702 = vmatmul.f32.gmra.mxu0 %v2629
        %v2703 = vpop.f32.mrf.mxu0
        %v2704 = vadd.f32 %v2684, %v2703
        %2705 = vdwg.mxu0
        %2706 = vmatpush.xpose.msra.mxu0 0.0
        %2707 = vmatpush.xpose.msra.mxu0 0.0
        %2708 = vmatpush.xpose.msra.mxu0 0.0
        %2709 = vmatpush.xpose.msra.mxu0 0.0
        %2710 = vmatpush.xpose.msra.mxu0 0.0
        %2711 = vmatpush.xpose.msra.mxu0 0.0
        %2712 = vmatpush.xpose.msra.mxu0 0.0
        %2713 = vmatpush.xpose.msra.mxu0 0.0
        %2714 = vmatpush.xpose.msra.mxu0 0.0
        %2715 = vmatpush.xpose.msra.mxu0 0.0
        %2716 = vmatpush.xpose.msra.mxu0 0.0
        %2717 = vmatpush.xpose.msra.mxu0 0.0
        %2718 = vmatpush.xpose.msra.mxu0 0.0
        %2719 = vmatpush.xpose.msra.mxu0 0.0
        %2720 = vmatpush.xpose.msra.mxu0 %v2619
        %2721 = vmatpush.xpose.msra.mxu0 %v2613
        %2722 = vmatmul.f32.gmra.mxu0 %v2630
        %v2723 = vpop.f32.mrf.mxu0
        %v2724 = vadd.f32 %v2704, %v2723
        %2725 = vdwg.mxu0
        %2726 = vmatpush.xpose.msra.mxu0 0.0
        %2727 = vmatpush.xpose.msra.mxu0 0.0
        %2728 = vmatpush.xpose.msra.mxu0 0.0
        %2729 = vmatpush.xpose.msra.mxu0 0.0
        %2730 = vmatpush.xpose.msra.mxu0 0.0
        %2731 = vmatpush.xpose.msra.mxu0 0.0
        %2732 = vmatpush.xpose.msra.mxu0 0.0
        %2733 = vmatpush.xpose.msra.mxu0 0.0
        %2734 = vmatpush.xpose.msra.mxu0 0.0
        %2735 = vmatpush.xpose.msra.mxu0 0.0
        %2736 = vmatpush.xpose.msra.mxu0 0.0
        %2737 = vmatpush.xpose.msra.mxu0 0.0
        %2738 = vmatpush.xpose.msra.mxu0 0.0
        %2739 = vmatpush.xpose.msra.mxu0 0.0
        %2740 = vmatpush.xpose.msra.mxu0 %v2620
        %2741 = vmatpush.xpose.msra.mxu0 %v2614
        %2742 = vmatmul.f32.gmra.mxu0 %v2631
        %v2743 = vpop.f32.mrf.mxu0
        %v2744 = vadd.f32 %v2724, %v2743
        %2745 = vdwg.mxu0
        %2746 = vmatpush.xpose.msra.mxu0 0.0
        %2747 = vmatpush.xpose.msra.mxu0 0.0
        %2748 = vmatpush.xpose.msra.mxu0 0.0
        %2749 = vmatpush.xpose.msra.mxu0 0.0
        %2750 = vmatpush.xpose.msra.mxu0 0.0
        %2751 = vmatpush.xpose.msra.mxu0 0.0
        %2752 = vmatpush.xpose.msra.mxu0 0.0
        %2753 = vmatpush.xpose.msra.mxu0 0.0
        %2754 = vmatpush.xpose.msra.mxu0 0.0
        %2755 = vmatpush.xpose.msra.mxu0 0.0
        %2756 = vmatpush.xpose.msra.mxu0 0.0
        %2757 = vmatpush.xpose.msra.mxu0 0.0
        %2758 = vmatpush.xpose.msra.mxu0 0.0
        %2759 = vmatpush.xpose.msra.mxu0 0.0
        %2760 = vmatpush.xpose.msra.mxu0 %v2644
        %2761 = vmatpush.xpose.msra.mxu0 %v2641
        %2762 = vmatmul.f32.gmra.mxu0 %v2638
        %v2763 = vpop.f32.mrf.mxu0
        %v2764 = vadd.f32 %v2744, %v2763
        %2765 = vdwg.mxu0
        %v2766 = vadd.f32 %v2540, %v2764
        %s2767 = sadd.s32 %s257, 11
        %s2768 = smul.u32 %s2767, 128
        %s2769 = sld [smem:[#allocation2 + %s2768]]
        %v2770 = vstv %s2769
        %v2771 = vmul.f32 %v2770, %v260
        %v2772 = vmul.f32 %v2770, %v261
        %s2773 = sadd.s32 %s2768, 1
        %s2774 = sld [smem:[#allocation2 + %s2773]]
        %v2775 = vstv %s2774
        %v2776 = vmul.f32 %v2775, %v268
        %v2777 = vmul.f32 %v2775, %v269
        %v2778 = vadd.f32 %v2771, %v2776
        %v2779 = vadd.f32 %v2772, %v2777
        %s2780 = sadd.s32 %s2768, 2
        %s2781 = sld [smem:[#allocation2 + %s2780]]
        %v2782 = vstv %s2781
        %v2783 = vmul.f32 %v2782, %v278
        %v2784 = vmul.f32 %v2782, %v279
        %v2785 = vadd.f32 %v2778, %v2783
        %v2786 = vadd.f32 %v2779, %v2784
        %s2787 = sadd.s32 %s2768, 3
        %s2788 = sld [smem:[#allocation2 + %s2787]]
        %v2789 = vstv %s2788
        %v2790 = vmul.f32 %v2789, %v288
        %v2791 = vmul.f32 %v2789, %v289
        %v2792 = vadd.f32 %v2785, %v2790
        %v2793 = vadd.f32 %v2786, %v2791
        %s2794 = sadd.s32 %s2768, 4
        %s2795 = sld [smem:[#allocation2 + %s2794]]
        %v2796 = vstv %s2795
        %v2797 = vmul.f32 %v2796, %v298
        %v2798 = vmul.f32 %v2796, %v299
        %v2799 = vadd.f32 %v2792, %v2797
        %v2800 = vadd.f32 %v2793, %v2798
        %s2801 = sadd.s32 %s2768, 5
        %s2802 = sld [smem:[#allocation2 + %s2801]]
        %v2803 = vstv %s2802
        %v2804 = vmul.f32 %v2803, %v308
        %v2805 = vmul.f32 %v2803, %v309
        %v2806 = vadd.f32 %v2799, %v2804
        %v2807 = vadd.f32 %v2800, %v2805
        %s2808 = sadd.s32 %s2768, 6
        %s2809 = sld [smem:[#allocation2 + %s2808]]
        %v2810 = vstv %s2809
        %v2811 = vmul.f32 %v2810, %v318
        %v2812 = vmul.f32 %v2810, %v319
        %v2813 = vadd.f32 %v2806, %v2811
        %v2814 = vadd.f32 %v2807, %v2812
        %s2815 = sadd.s32 %s2768, 7
        %s2816 = sld [smem:[#allocation2 + %s2815]]
        %v2817 = vstv %s2816
        %v2818 = vmul.f32 %v2817, %v328
        %v2819 = vmul.f32 %v2817, %v329
        %v2820 = vadd.f32 %v2813, %v2818
        %v2821 = vadd.f32 %v2814, %v2819
        %s2822 = sadd.s32 %s2768, 8
        %s2823 = sld [smem:[#allocation2 + %s2822]]
        %v2824 = vstv %s2823
        %v2825 = vmul.f32 %v2824, %v338
        %v2826 = vmul.f32 %v2824, %v339
        %v2827 = vadd.f32 %v2820, %v2825
        %v2828 = vadd.f32 %v2821, %v2826
        %s2829 = sld [smem:[#allocation4 + %s2767]]
        %v2830 = vstv %s2829
        %v2831 = vadd.f32 %v2827, %v2830
        %v2832 = vadd.f32 %v2828, %v2830
        %v2833 = vmax.f32 %v2831, 0.0
        %v2834 = vmax.f32 %v2832, 0.0
        %s2835 = scalar_lea.vmem %s251, 1056
        %v2836 = vld [vmem:[%s2835] sm:$0xff]
        %v2837 = vld [vmem:[%s2835 + $0x8] sm:$0xff]
        %v2838 = vld [vmem:[%s2835 + $0x10] sm:$0xff]
        %v2839 = vld [vmem:[%s2835 + $0x18] sm:$0xff]
        %v2840 = vld [vmem:[%s2835 + $0x20] sm:$0xff]
        %v2841 = vld [vmem:[%s2835 + $0x28] sm:$0xff]
        %v2842 = vld [vmem:[%s2835 + $0x30] sm:$0x3]
        %v2843 = vld [vmem:[%s2835 + $0x38] sm:$0x3]
        %v2844 = vld [vmem:[%s2835 + $0x40] sm:$0x3]
        %v2845 = vld [vmem:[%s2835 + $0x48] sm:$0x3]
        %v2846 = vld [vmem:[%s2835 + $0x50] sm:$0x3]
        %v2847 = vld [vmem:[%s2835 + $0x58] sm:$0x3]
        %2850 = vst [vmem:[#allocation1] ss:$4 sm:$0xff] %v2833
        %s2851 = scalar_lea.vmem [#allocation1], 32
        %2852 = vst [vmem:[%s2851] ss:$4 sm:$0xff] %v2834
        %v2853 = vld.sshfl [vmem:[#allocation1] sm:$0xff pattern:$0x73625140]
        %v2854 = vld.sshfl [vmem:[#allocation1 + $0x8] sm:$0xff pattern:$0x73625140]
        %v2855 = vld.sshfl [vmem:[#allocation1 + $0x10] sm:$0xff pattern:$0x73625140]
        %v2856 = vld.sshfl [vmem:[#allocation1 + $0x18] sm:$0xff pattern:$0x73625140]
        %v2857 = vld.sshfl [vmem:[#allocation1 + $0x20] sm:$0xff pattern:$0x73625140]
        %v2858 = vld.sshfl [vmem:[#allocation1 + $0x28] sm:$0xff pattern:$0x73625140]
        %v2864 = vsel %vm460, %v2858, 0
        %v2867 = vsel %vm460, %v2841, 0
        %v2870 = vsel %vm460, %v2847, 0
        %2872 = vmatpush.xpose.msra.mxu0 0.0
        %2873 = vmatpush.xpose.msra.mxu0 0.0
        %2874 = vmatpush.xpose.msra.mxu0 0.0
        %2875 = vmatpush.xpose.msra.mxu0 0.0
        %2876 = vmatpush.xpose.msra.mxu0 0.0
        %2877 = vmatpush.xpose.msra.mxu0 0.0
        %2878 = vmatpush.xpose.msra.mxu0 0.0
        %2879 = vmatpush.xpose.msra.mxu0 0.0
        %2880 = vmatpush.xpose.msra.mxu0 0.0
        %2881 = vmatpush.xpose.msra.mxu0 0.0
        %2882 = vmatpush.xpose.msra.mxu0 0.0
        %2883 = vmatpush.xpose.msra.mxu0 0.0
        %2884 = vmatpush.xpose.msra.mxu0 0.0
        %2885 = vmatpush.xpose.msra.mxu0 0.0
        %2886 = vmatpush.xpose.msra.mxu0 %v2842
        %2887 = vmatpush.xpose.msra.mxu0 %v2836
        %2888 = vmatmul.f32.gmra.mxu0 %v2853
        %v2889 = vpop.f32.mrf.mxu0
        %v2890 = vadd.f32 0.0, %v2889
        %2891 = vdwg.mxu0
        %2892 = vmatpush.xpose.msra.mxu0 0.0
        %2893 = vmatpush.xpose.msra.mxu0 0.0
        %2894 = vmatpush.xpose.msra.mxu0 0.0
        %2895 = vmatpush.xpose.msra.mxu0 0.0
        %2896 = vmatpush.xpose.msra.mxu0 0.0
        %2897 = vmatpush.xpose.msra.mxu0 0.0
        %2898 = vmatpush.xpose.msra.mxu0 0.0
        %2899 = vmatpush.xpose.msra.mxu0 0.0
        %2900 = vmatpush.xpose.msra.mxu0 0.0
        %2901 = vmatpush.xpose.msra.mxu0 0.0
        %2902 = vmatpush.xpose.msra.mxu0 0.0
        %2903 = vmatpush.xpose.msra.mxu0 0.0
        %2904 = vmatpush.xpose.msra.mxu0 0.0
        %2905 = vmatpush.xpose.msra.mxu0 0.0
        %2906 = vmatpush.xpose.msra.mxu0 %v2843
        %2907 = vmatpush.xpose.msra.mxu0 %v2837
        %2908 = vmatmul.f32.gmra.mxu0 %v2854
        %v2909 = vpop.f32.mrf.mxu0
        %v2910 = vadd.f32 %v2890, %v2909
        %2911 = vdwg.mxu0
        %2912 = vmatpush.xpose.msra.mxu0 0.0
        %2913 = vmatpush.xpose.msra.mxu0 0.0
        %2914 = vmatpush.xpose.msra.mxu0 0.0
        %2915 = vmatpush.xpose.msra.mxu0 0.0
        %2916 = vmatpush.xpose.msra.mxu0 0.0
        %2917 = vmatpush.xpose.msra.mxu0 0.0
        %2918 = vmatpush.xpose.msra.mxu0 0.0
        %2919 = vmatpush.xpose.msra.mxu0 0.0
        %2920 = vmatpush.xpose.msra.mxu0 0.0
        %2921 = vmatpush.xpose.msra.mxu0 0.0
        %2922 = vmatpush.xpose.msra.mxu0 0.0
        %2923 = vmatpush.xpose.msra.mxu0 0.0
        %2924 = vmatpush.xpose.msra.mxu0 0.0
        %2925 = vmatpush.xpose.msra.mxu0 0.0
        %2926 = vmatpush.xpose.msra.mxu0 %v2844
        %2927 = vmatpush.xpose.msra.mxu0 %v2838
        %2928 = vmatmul.f32.gmra.mxu0 %v2855
        %v2929 = vpop.f32.mrf.mxu0
        %v2930 = vadd.f32 %v2910, %v2929
        %2931 = vdwg.mxu0
        %2932 = vmatpush.xpose.msra.mxu0 0.0
        %2933 = vmatpush.xpose.msra.mxu0 0.0
        %2934 = vmatpush.xpose.msra.mxu0 0.0
        %2935 = vmatpush.xpose.msra.mxu0 0.0
        %2936 = vmatpush.xpose.msra.mxu0 0.0
        %2937 = vmatpush.xpose.msra.mxu0 0.0
        %2938 = vmatpush.xpose.msra.mxu0 0.0
        %2939 = vmatpush.xpose.msra.mxu0 0.0
        %2940 = vmatpush.xpose.msra.mxu0 0.0
        %2941 = vmatpush.xpose.msra.mxu0 0.0
        %2942 = vmatpush.xpose.msra.mxu0 0.0
        %2943 = vmatpush.xpose.msra.mxu0 0.0
        %2944 = vmatpush.xpose.msra.mxu0 0.0
        %2945 = vmatpush.xpose.msra.mxu0 0.0
        %2946 = vmatpush.xpose.msra.mxu0 %v2845
        %2947 = vmatpush.xpose.msra.mxu0 %v2839
        %2948 = vmatmul.f32.gmra.mxu0 %v2856
        %v2949 = vpop.f32.mrf.mxu0
        %v2950 = vadd.f32 %v2930, %v2949
        %2951 = vdwg.mxu0
        %2952 = vmatpush.xpose.msra.mxu0 0.0
        %2953 = vmatpush.xpose.msra.mxu0 0.0
        %2954 = vmatpush.xpose.msra.mxu0 0.0
        %2955 = vmatpush.xpose.msra.mxu0 0.0
        %2956 = vmatpush.xpose.msra.mxu0 0.0
        %2957 = vmatpush.xpose.msra.mxu0 0.0
        %2958 = vmatpush.xpose.msra.mxu0 0.0
        %2959 = vmatpush.xpose.msra.mxu0 0.0
        %2960 = vmatpush.xpose.msra.mxu0 0.0
        %2961 = vmatpush.xpose.msra.mxu0 0.0
        %2962 = vmatpush.xpose.msra.mxu0 0.0
        %2963 = vmatpush.xpose.msra.mxu0 0.0
        %2964 = vmatpush.xpose.msra.mxu0 0.0
        %2965 = vmatpush.xpose.msra.mxu0 0.0
        %2966 = vmatpush.xpose.msra.mxu0 %v2846
        %2967 = vmatpush.xpose.msra.mxu0 %v2840
        %2968 = vmatmul.f32.gmra.mxu0 %v2857
        %v2969 = vpop.f32.mrf.mxu0
        %v2970 = vadd.f32 %v2950, %v2969
        %2971 = vdwg.mxu0
        %2972 = vmatpush.xpose.msra.mxu0 0.0
        %2973 = vmatpush.xpose.msra.mxu0 0.0
        %2974 = vmatpush.xpose.msra.mxu0 0.0
        %2975 = vmatpush.xpose.msra.mxu0 0.0
        %2976 = vmatpush.xpose.msra.mxu0 0.0
        %2977 = vmatpush.xpose.msra.mxu0 0.0
        %2978 = vmatpush.xpose.msra.mxu0 0.0
        %2979 = vmatpush.xpose.msra.mxu0 0.0
        %2980 = vmatpush.xpose.msra.mxu0 0.0
        %2981 = vmatpush.xpose.msra.mxu0 0.0
        %2982 = vmatpush.xpose.msra.mxu0 0.0
        %2983 = vmatpush.xpose.msra.mxu0 0.0
        %2984 = vmatpush.xpose.msra.mxu0 0.0
        %2985 = vmatpush.xpose.msra.mxu0 0.0
        %2986 = vmatpush.xpose.msra.mxu0 %v2870
        %2987 = vmatpush.xpose.msra.mxu0 %v2867
        %2988 = vmatmul.f32.gmra.mxu0 %v2864
        %v2989 = vpop.f32.mrf.mxu0
        %v2990 = vadd.f32 %v2970, %v2989
        %2991 = vdwg.mxu0
        %v2992 = vadd.f32 %v2766, %v2990
        %s2993 = sadd.s32 %s257, 12
        %s2994 = smul.u32 %s2993, 128
        %s2995 = sld [smem:[#allocation2 + %s2994]]
        %v2996 = vstv %s2995
        %v2997 = vmul.f32 %v2996, %v260
        %v2998 = vmul.f32 %v2996, %v261
        %s2999 = sadd.s32 %s2994, 1
        %s3000 = sld [smem:[#allocation2 + %s2999]]
        %v3001 = vstv %s3000
        %v3002 = vmul.f32 %v3001, %v268
        %v3003 = vmul.f32 %v3001, %v269
        %v3004 = vadd.f32 %v2997, %v3002
        %v3005 = vadd.f32 %v2998, %v3003
        %s3006 = sadd.s32 %s2994, 2
        %s3007 = sld [smem:[#allocation2 + %s3006]]
        %v3008 = vstv %s3007
        %v3009 = vmul.f32 %v3008, %v278
        %v3010 = vmul.f32 %v3008, %v279
        %v3011 = vadd.f32 %v3004, %v3009
        %v3012 = vadd.f32 %v3005, %v3010
        %s3013 = sadd.s32 %s2994, 3
        %s3014 = sld [smem:[#allocation2 + %s3013]]
        %v3015 = vstv %s3014
        %v3016 = vmul.f32 %v3015, %v288
        %v3017 = vmul.f32 %v3015, %v289
        %v3018 = vadd.f32 %v3011, %v3016
        %v3019 = vadd.f32 %v3012, %v3017
        %s3020 = sadd.s32 %s2994, 4
        %s3021 = sld [smem:[#allocation2 + %s3020]]
        %v3022 = vstv %s3021
        %v3023 = vmul.f32 %v3022, %v298
        %v3024 = vmul.f32 %v3022, %v299
        %v3025 = vadd.f32 %v3018, %v3023
        %v3026 = vadd.f32 %v3019, %v3024
        %s3027 = sadd.s32 %s2994, 5
        %s3028 = sld [smem:[#allocation2 + %s3027]]
        %v3029 = vstv %s3028
        %v3030 = vmul.f32 %v3029, %v308
        %v3031 = vmul.f32 %v3029, %v309
        %v3032 = vadd.f32 %v3025, %v3030
        %v3033 = vadd.f32 %v3026, %v3031
        %s3034 = sadd.s32 %s2994, 6
        %s3035 = sld [smem:[#allocation2 + %s3034]]
        %v3036 = vstv %s3035
        %v3037 = vmul.f32 %v3036, %v318
        %v3038 = vmul.f32 %v3036, %v319
        %v3039 = vadd.f32 %v3032, %v3037
        %v3040 = vadd.f32 %v3033, %v3038
        %s3041 = sadd.s32 %s2994, 7
        %s3042 = sld [smem:[#allocation2 + %s3041]]
        %v3043 = vstv %s3042
        %v3044 = vmul.f32 %v3043, %v328
        %v3045 = vmul.f32 %v3043, %v329
        %v3046 = vadd.f32 %v3039, %v3044
        %v3047 = vadd.f32 %v3040, %v3045
        %s3048 = sadd.s32 %s2994, 8
        %s3049 = sld [smem:[#allocation2 + %s3048]]
        %v3050 = vstv %s3049
        %v3051 = vmul.f32 %v3050, %v338
        %v3052 = vmul.f32 %v3050, %v339
        %v3053 = vadd.f32 %v3046, %v3051
        %v3054 = vadd.f32 %v3047, %v3052
        %s3055 = sld [smem:[#allocation4 + %s2993]]
        %v3056 = vstv %s3055
        %v3057 = vadd.f32 %v3053, %v3056
        %v3058 = vadd.f32 %v3054, %v3056
        %v3059 = vmax.f32 %v3057, 0.0
        %v3060 = vmax.f32 %v3058, 0.0
        %s3061 = scalar_lea.vmem %s251, 1152
        %v3062 = vld [vmem:[%s3061] sm:$0xff]
        %v3063 = vld [vmem:[%s3061 + $0x8] sm:$0xff]
        %v3064 = vld [vmem:[%s3061 + $0x10] sm:$0xff]
        %v3065 = vld [vmem:[%s3061 + $0x18] sm:$0xff]
        %v3066 = vld [vmem:[%s3061 + $0x20] sm:$0xff]
        %v3067 = vld [vmem:[%s3061 + $0x28] sm:$0xff]
        %v3068 = vld [vmem:[%s3061 + $0x30] sm:$0x3]
        %v3069 = vld [vmem:[%s3061 + $0x38] sm:$0x3]
        %v3070 = vld [vmem:[%s3061 + $0x40] sm:$0x3]
        %v3071 = vld [vmem:[%s3061 + $0x48] sm:$0x3]
        %v3072 = vld [vmem:[%s3061 + $0x50] sm:$0x3]
        %v3073 = vld [vmem:[%s3061 + $0x58] sm:$0x3]
        %3076 = vst [vmem:[#allocation1] ss:$4 sm:$0xff] %v3059
        %s3077 = scalar_lea.vmem [#allocation1], 32
        %3078 = vst [vmem:[%s3077] ss:$4 sm:$0xff] %v3060
        %v3079 = vld.sshfl [vmem:[#allocation1] sm:$0xff pattern:$0x73625140]
        %v3080 = vld.sshfl [vmem:[#allocation1 + $0x8] sm:$0xff pattern:$0x73625140]
        %v3081 = vld.sshfl [vmem:[#allocation1 + $0x10] sm:$0xff pattern:$0x73625140]
        %v3082 = vld.sshfl [vmem:[#allocation1 + $0x18] sm:$0xff pattern:$0x73625140]
        %v3083 = vld.sshfl [vmem:[#allocation1 + $0x20] sm:$0xff pattern:$0x73625140]
        %v3084 = vld.sshfl [vmem:[#allocation1 + $0x28] sm:$0xff pattern:$0x73625140]
        %v3090 = vsel %vm460, %v3084, 0
        %v3093 = vsel %vm460, %v3067, 0
        %v3096 = vsel %vm460, %v3073, 0
        %3098 = vmatpush.xpose.msra.mxu0 0.0
        %3099 = vmatpush.xpose.msra.mxu0 0.0
        %3100 = vmatpush.xpose.msra.mxu0 0.0
        %3101 = vmatpush.xpose.msra.mxu0 0.0
        %3102 = vmatpush.xpose.msra.mxu0 0.0
        %3103 = vmatpush.xpose.msra.mxu0 0.0
        %3104 = vmatpush.xpose.msra.mxu0 0.0
        %3105 = vmatpush.xpose.msra.mxu0 0.0
        %3106 = vmatpush.xpose.msra.mxu0 0.0
        %3107 = vmatpush.xpose.msra.mxu0 0.0
        %3108 = vmatpush.xpose.msra.mxu0 0.0
        %3109 = vmatpush.xpose.msra.mxu0 0.0
        %3110 = vmatpush.xpose.msra.mxu0 0.0
        %3111 = vmatpush.xpose.msra.mxu0 0.0
        %3112 = vmatpush.xpose.msra.mxu0 %v3068
        %3113 = vmatpush.xpose.msra.mxu0 %v3062
        %3114 = vmatmul.f32.gmra.mxu0 %v3079
        %v3115 = vpop.f32.mrf.mxu0
        %v3116 = vadd.f32 0.0, %v3115
        %3117 = vdwg.mxu0
        %3118 = vmatpush.xpose.msra.mxu0 0.0
        %3119 = vmatpush.xpose.msra.mxu0 0.0
        %3120 = vmatpush.xpose.msra.mxu0 0.0
        %3121 = vmatpush.xpose.msra.mxu0 0.0
        %3122 = vmatpush.xpose.msra.mxu0 0.0
        %3123 = vmatpush.xpose.msra.mxu0 0.0
        %3124 = vmatpush.xpose.msra.mxu0 0.0
        %3125 = vmatpush.xpose.msra.mxu0 0.0
        %3126 = vmatpush.xpose.msra.mxu0 0.0
        %3127 = vmatpush.xpose.msra.mxu0 0.0
        %3128 = vmatpush.xpose.msra.mxu0 0.0
        %3129 = vmatpush.xpose.msra.mxu0 0.0
        %3130 = vmatpush.xpose.msra.mxu0 0.0
        %3131 = vmatpush.xpose.msra.mxu0 0.0
        %3132 = vmatpush.xpose.msra.mxu0 %v3069
        %3133 = vmatpush.xpose.msra.mxu0 %v3063
        %3134 = vmatmul.f32.gmra.mxu0 %v3080
        %v3135 = vpop.f32.mrf.mxu0
        %v3136 = vadd.f32 %v3116, %v3135
        %3137 = vdwg.mxu0
        %3138 = vmatpush.xpose.msra.mxu0 0.0
        %3139 = vmatpush.xpose.msra.mxu0 0.0
        %3140 = vmatpush.xpose.msra.mxu0 0.0
        %3141 = vmatpush.xpose.msra.mxu0 0.0
        %3142 = vmatpush.xpose.msra.mxu0 0.0
        %3143 = vmatpush.xpose.msra.mxu0 0.0
        %3144 = vmatpush.xpose.msra.mxu0 0.0
        %3145 = vmatpush.xpose.msra.mxu0 0.0
        %3146 = vmatpush.xpose.msra.mxu0 0.0
        %3147 = vmatpush.xpose.msra.mxu0 0.0
        %3148 = vmatpush.xpose.msra.mxu0 0.0
        %3149 = vmatpush.xpose.msra.mxu0 0.0
        %3150 = vmatpush.xpose.msra.mxu0 0.0
        %3151 = vmatpush.xpose.msra.mxu0 0.0
        %3152 = vmatpush.xpose.msra.mxu0 %v3070
        %3153 = vmatpush.xpose.msra.mxu0 %v3064
        %3154 = vmatmul.f32.gmra.mxu0 %v3081
        %v3155 = vpop.f32.mrf.mxu0
        %v3156 = vadd.f32 %v3136, %v3155
        %3157 = vdwg.mxu0
        %3158 = vmatpush.xpose.msra.mxu0 0.0
        %3159 = vmatpush.xpose.msra.mxu0 0.0
        %3160 = vmatpush.xpose.msra.mxu0 0.0
        %3161 = vmatpush.xpose.msra.mxu0 0.0
        %3162 = vmatpush.xpose.msra.mxu0 0.0
        %3163 = vmatpush.xpose.msra.mxu0 0.0
        %3164 = vmatpush.xpose.msra.mxu0 0.0
        %3165 = vmatpush.xpose.msra.mxu0 0.0
        %3166 = vmatpush.xpose.msra.mxu0 0.0
        %3167 = vmatpush.xpose.msra.mxu0 0.0
        %3168 = vmatpush.xpose.msra.mxu0 0.0
        %3169 = vmatpush.xpose.msra.mxu0 0.0
        %3170 = vmatpush.xpose.msra.mxu0 0.0
        %3171 = vmatpush.xpose.msra.mxu0 0.0
        %3172 = vmatpush.xpose.msra.mxu0 %v3071
        %3173 = vmatpush.xpose.msra.mxu0 %v3065
        %3174 = vmatmul.f32.gmra.mxu0 %v3082
        %v3175 = vpop.f32.mrf.mxu0
        %v3176 = vadd.f32 %v3156, %v3175
        %3177 = vdwg.mxu0
        %3178 = vmatpush.xpose.msra.mxu0 0.0
        %3179 = vmatpush.xpose.msra.mxu0 0.0
        %3180 = vmatpush.xpose.msra.mxu0 0.0
        %3181 = vmatpush.xpose.msra.mxu0 0.0
        %3182 = vmatpush.xpose.msra.mxu0 0.0
        %3183 = vmatpush.xpose.msra.mxu0 0.0
        %3184 = vmatpush.xpose.msra.mxu0 0.0
        %3185 = vmatpush.xpose.msra.mxu0 0.0
        %3186 = vmatpush.xpose.msra.mxu0 0.0
        %3187 = vmatpush.xpose.msra.mxu0 0.0
        %3188 = vmatpush.xpose.msra.mxu0 0.0
        %3189 = vmatpush.xpose.msra.mxu0 0.0
        %3190 = vmatpush.xpose.msra.mxu0 0.0
        %3191 = vmatpush.xpose.msra.mxu0 0.0
        %3192 = vmatpush.xpose.msra.mxu0 %v3072
        %3193 = vmatpush.xpose.msra.mxu0 %v3066
        %3194 = vmatmul.f32.gmra.mxu0 %v3083
        %v3195 = vpop.f32.mrf.mxu0
        %v3196 = vadd.f32 %v3176, %v3195
        %3197 = vdwg.mxu0
        %3198 = vmatpush.xpose.msra.mxu0 0.0
        %3199 = vmatpush.xpose.msra.mxu0 0.0
        %3200 = vmatpush.xpose.msra.mxu0 0.0
        %3201 = vmatpush.xpose.msra.mxu0 0.0
        %3202 = vmatpush.xpose.msra.mxu0 0.0
        %3203 = vmatpush.xpose.msra.mxu0 0.0
        %3204 = vmatpush.xpose.msra.mxu0 0.0
        %3205 = vmatpush.xpose.msra.mxu0 0.0
        %3206 = vmatpush.xpose.msra.mxu0 0.0
        %3207 = vmatpush.xpose.msra.mxu0 0.0
        %3208 = vmatpush.xpose.msra.mxu0 0.0
        %3209 = vmatpush.xpose.msra.mxu0 0.0
        %3210 = vmatpush.xpose.msra.mxu0 0.0
        %3211 = vmatpush.xpose.msra.mxu0 0.0
        %3212 = vmatpush.xpose.msra.mxu0 %v3096
        %3213 = vmatpush.xpose.msra.mxu0 %v3093
        %3214 = vmatmul.f32.gmra.mxu0 %v3090
        %v3215 = vpop.f32.mrf.mxu0
        %v3216 = vadd.f32 %v3196, %v3215
        %3217 = vdwg.mxu0
        %v3218 = vadd.f32 %v2992, %v3216
        %s3219 = sadd.s32 %s257, 13
        %s3220 = smul.u32 %s3219, 128
        %s3221 = sld [smem:[#allocation2 + %s3220]]
        %v3222 = vstv %s3221
        %v3223 = vmul.f32 %v3222, %v260
        %v3224 = vmul.f32 %v3222, %v261
        %s3225 = sadd.s32 %s3220, 1
        %s3226 = sld [smem:[#allocation2 + %s3225]]
        %v3227 = vstv %s3226
        %v3228 = vmul.f32 %v3227, %v268
        %v3229 = vmul.f32 %v3227, %v269
        %v3230 = vadd.f32 %v3223, %v3228
        %v3231 = vadd.f32 %v3224, %v3229
        %s3232 = sadd.s32 %s3220, 2
        %s3233 = sld [smem:[#allocation2 + %s3232]]
        %v3234 = vstv %s3233
        %v3235 = vmul.f32 %v3234, %v278
        %v3236 = vmul.f32 %v3234, %v279
        %v3237 = vadd.f32 %v3230, %v3235
        %v3238 = vadd.f32 %v3231, %v3236
        %s3239 = sadd.s32 %s3220, 3
        %s3240 = sld [smem:[#allocation2 + %s3239]]
        %v3241 = vstv %s3240
        %v3242 = vmul.f32 %v3241, %v288
        %v3243 = vmul.f32 %v3241, %v289
        %v3244 = vadd.f32 %v3237, %v3242
        %v3245 = vadd.f32 %v3238, %v3243
        %s3246 = sadd.s32 %s3220, 4
        %s3247 = sld [smem:[#allocation2 + %s3246]]
        %v3248 = vstv %s3247
        %v3249 = vmul.f32 %v3248, %v298
        %v3250 = vmul.f32 %v3248, %v299
        %v3251 = vadd.f32 %v3244, %v3249
        %v3252 = vadd.f32 %v3245, %v3250
        %s3253 = sadd.s32 %s3220, 5
        %s3254 = sld [smem:[#allocation2 + %s3253]]
        %v3255 = vstv %s3254
        %v3256 = vmul.f32 %v3255, %v308
        %v3257 = vmul.f32 %v3255, %v309
        %v3258 = vadd.f32 %v3251, %v3256
        %v3259 = vadd.f32 %v3252, %v3257
        %s3260 = sadd.s32 %s3220, 6
        %s3261 = sld [smem:[#allocation2 + %s3260]]
        %v3262 = vstv %s3261
        %v3263 = vmul.f32 %v3262, %v318
        %v3264 = vmul.f32 %v3262, %v319
        %v3265 = vadd.f32 %v3258, %v3263
        %v3266 = vadd.f32 %v3259, %v3264
        %s3267 = sadd.s32 %s3220, 7
        %s3268 = sld [smem:[#allocation2 + %s3267]]
        %v3269 = vstv %s3268
        %v3270 = vmul.f32 %v3269, %v328
        %v3271 = vmul.f32 %v3269, %v329
        %v3272 = vadd.f32 %v3265, %v3270
        %v3273 = vadd.f32 %v3266, %v3271
        %s3274 = sadd.s32 %s3220, 8
        %s3275 = sld [smem:[#allocation2 + %s3274]]
        %v3276 = vstv %s3275
        %v3277 = vmul.f32 %v3276, %v338
        %v3278 = vmul.f32 %v3276, %v339
        %v3279 = vadd.f32 %v3272, %v3277
        %v3280 = vadd.f32 %v3273, %v3278
        %s3281 = sld [smem:[#allocation4 + %s3219]]
        %v3282 = vstv %s3281
        %v3283 = vadd.f32 %v3279, %v3282
        %v3284 = vadd.f32 %v3280, %v3282
        %v3285 = vmax.f32 %v3283, 0.0
        %v3286 = vmax.f32 %v3284, 0.0
        %s3287 = scalar_lea.vmem %s251, 1248
        %v3288 = vld [vmem:[%s3287] sm:$0xff]
        %v3289 = vld [vmem:[%s3287 + $0x8] sm:$0xff]
        %v3290 = vld [vmem:[%s3287 + $0x10] sm:$0xff]
        %v3291 = vld [vmem:[%s3287 + $0x18] sm:$0xff]
        %v3292 = vld [vmem:[%s3287 + $0x20] sm:$0xff]
        %v3293 = vld [vmem:[%s3287 + $0x28] sm:$0xff]
        %v3294 = vld [vmem:[%s3287 + $0x30] sm:$0x3]
        %v3295 = vld [vmem:[%s3287 + $0x38] sm:$0x3]
        %v3296 = vld [vmem:[%s3287 + $0x40] sm:$0x3]
        %v3297 = vld [vmem:[%s3287 + $0x48] sm:$0x3]
        %v3298 = vld [vmem:[%s3287 + $0x50] sm:$0x3]
        %v3299 = vld [vmem:[%s3287 + $0x58] sm:$0x3]
        %3302 = vst [vmem:[#allocation1] ss:$4 sm:$0xff] %v3285
        %s3303 = scalar_lea.vmem [#allocation1], 32
        %3304 = vst [vmem:[%s3303] ss:$4 sm:$0xff] %v3286
        %v3305 = vld.sshfl [vmem:[#allocation1] sm:$0xff pattern:$0x73625140]
        %v3306 = vld.sshfl [vmem:[#allocation1 + $0x8] sm:$0xff pattern:$0x73625140]
        %v3307 = vld.sshfl [vmem:[#allocation1 + $0x10] sm:$0xff pattern:$0x73625140]
        %v3308 = vld.sshfl [vmem:[#allocation1 + $0x18] sm:$0xff pattern:$0x73625140]
        %v3309 = vld.sshfl [vmem:[#allocation1 + $0x20] sm:$0xff pattern:$0x73625140]
        %v3310 = vld.sshfl [vmem:[#allocation1 + $0x28] sm:$0xff pattern:$0x73625140]
        %v3316 = vsel %vm460, %v3310, 0
        %v3319 = vsel %vm460, %v3293, 0
        %v3322 = vsel %vm460, %v3299, 0
        %3324 = vmatpush.xpose.msra.mxu0 0.0
        %3325 = vmatpush.xpose.msra.mxu0 0.0
        %3326 = vmatpush.xpose.msra.mxu0 0.0
        %3327 = vmatpush.xpose.msra.mxu0 0.0
        %3328 = vmatpush.xpose.msra.mxu0 0.0
        %3329 = vmatpush.xpose.msra.mxu0 0.0
        %3330 = vmatpush.xpose.msra.mxu0 0.0
        %3331 = vmatpush.xpose.msra.mxu0 0.0
        %3332 = vmatpush.xpose.msra.mxu0 0.0
        %3333 = vmatpush.xpose.msra.mxu0 0.0
        %3334 = vmatpush.xpose.msra.mxu0 0.0
        %3335 = vmatpush.xpose.msra.mxu0 0.0
        %3336 = vmatpush.xpose.msra.mxu0 0.0
        %3337 = vmatpush.xpose.msra.mxu0 0.0
        %3338 = vmatpush.xpose.msra.mxu0 %v3294
        %3339 = vmatpush.xpose.msra.mxu0 %v3288
        %3340 = vmatmul.f32.gmra.mxu0 %v3305
        %v3341 = vpop.f32.mrf.mxu0
        %v3342 = vadd.f32 0.0, %v3341
        %3343 = vdwg.mxu0
        %3344 = vmatpush.xpose.msra.mxu0 0.0
        %3345 = vmatpush.xpose.msra.mxu0 0.0
        %3346 = vmatpush.xpose.msra.mxu0 0.0
        %3347 = vmatpush.xpose.msra.mxu0 0.0
        %3348 = vmatpush.xpose.msra.mxu0 0.0
        %3349 = vmatpush.xpose.msra.mxu0 0.0
        %3350 = vmatpush.xpose.msra.mxu0 0.0
        %3351 = vmatpush.xpose.msra.mxu0 0.0
        %3352 = vmatpush.xpose.msra.mxu0 0.0
        %3353 = vmatpush.xpose.msra.mxu0 0.0
        %3354 = vmatpush.xpose.msra.mxu0 0.0
        %3355 = vmatpush.xpose.msra.mxu0 0.0
        %3356 = vmatpush.xpose.msra.mxu0 0.0
        %3357 = vmatpush.xpose.msra.mxu0 0.0
        %3358 = vmatpush.xpose.msra.mxu0 %v3295
        %3359 = vmatpush.xpose.msra.mxu0 %v3289
        %3360 = vmatmul.f32.gmra.mxu0 %v3306
        %v3361 = vpop.f32.mrf.mxu0
        %v3362 = vadd.f32 %v3342, %v3361
        %3363 = vdwg.mxu0
        %3364 = vmatpush.xpose.msra.mxu0 0.0
        %3365 = vmatpush.xpose.msra.mxu0 0.0
        %3366 = vmatpush.xpose.msra.mxu0 0.0
        %3367 = vmatpush.xpose.msra.mxu0 0.0
        %3368 = vmatpush.xpose.msra.mxu0 0.0
        %3369 = vmatpush.xpose.msra.mxu0 0.0
        %3370 = vmatpush.xpose.msra.mxu0 0.0
        %3371 = vmatpush.xpose.msra.mxu0 0.0
        %3372 = vmatpush.xpose.msra.mxu0 0.0
        %3373 = vmatpush.xpose.msra.mxu0 0.0
        %3374 = vmatpush.xpose.msra.mxu0 0.0
        %3375 = vmatpush.xpose.msra.mxu0 0.0
        %3376 = vmatpush.xpose.msra.mxu0 0.0
        %3377 = vmatpush.xpose.msra.mxu0 0.0
        %3378 = vmatpush.xpose.msra.mxu0 %v3296
        %3379 = vmatpush.xpose.msra.mxu0 %v3290
        %3380 = vmatmul.f32.gmra.mxu0 %v3307
        %v3381 = vpop.f32.mrf.mxu0
        %v3382 = vadd.f32 %v3362, %v3381
        %3383 = vdwg.mxu0
        %3384 = vmatpush.xpose.msra.mxu0 0.0
        %3385 = vmatpush.xpose.msra.mxu0 0.0
        %3386 = vmatpush.xpose.msra.mxu0 0.0
        %3387 = vmatpush.xpose.msra.mxu0 0.0
        %3388 = vmatpush.xpose.msra.mxu0 0.0
        %3389 = vmatpush.xpose.msra.mxu0 0.0
        %3390 = vmatpush.xpose.msra.mxu0 0.0
        %3391 = vmatpush.xpose.msra.mxu0 0.0
        %3392 = vmatpush.xpose.msra.mxu0 0.0
        %3393 = vmatpush.xpose.msra.mxu0 0.0
        %3394 = vmatpush.xpose.msra.mxu0 0.0
        %3395 = vmatpush.xpose.msra.mxu0 0.0
        %3396 = vmatpush.xpose.msra.mxu0 0.0
        %3397 = vmatpush.xpose.msra.mxu0 0.0
        %3398 = vmatpush.xpose.msra.mxu0 %v3297
        %3399 = vmatpush.xpose.msra.mxu0 %v3291
        %3400 = vmatmul.f32.gmra.mxu0 %v3308
        %v3401 = vpop.f32.mrf.mxu0
        %v3402 = vadd.f32 %v3382, %v3401
        %3403 = vdwg.mxu0
        %3404 = vmatpush.xpose.msra.mxu0 0.0
        %3405 = vmatpush.xpose.msra.mxu0 0.0
        %3406 = vmatpush.xpose.msra.mxu0 0.0
        %3407 = vmatpush.xpose.msra.mxu0 0.0
        %3408 = vmatpush.xpose.msra.mxu0 0.0
        %3409 = vmatpush.xpose.msra.mxu0 0.0
        %3410 = vmatpush.xpose.msra.mxu0 0.0
        %3411 = vmatpush.xpose.msra.mxu0 0.0
        %3412 = vmatpush.xpose.msra.mxu0 0.0
        %3413 = vmatpush.xpose.msra.mxu0 0.0
        %3414 = vmatpush.xpose.msra.mxu0 0.0
        %3415 = vmatpush.xpose.msra.mxu0 0.0
        %3416 = vmatpush.xpose.msra.mxu0 0.0
        %3417 = vmatpush.xpose.msra.mxu0 0.0
        %3418 = vmatpush.xpose.msra.mxu0 %v3298
        %3419 = vmatpush.xpose.msra.mxu0 %v3292
        %3420 = vmatmul.f32.gmra.mxu0 %v3309
        %v3421 = vpop.f32.mrf.mxu0
        %v3422 = vadd.f32 %v3402, %v3421
        %3423 = vdwg.mxu0
        %3424 = vmatpush.xpose.msra.mxu0 0.0
        %3425 = vmatpush.xpose.msra.mxu0 0.0
        %3426 = vmatpush.xpose.msra.mxu0 0.0
        %3427 = vmatpush.xpose.msra.mxu0 0.0
        %3428 = vmatpush.xpose.msra.mxu0 0.0
        %3429 = vmatpush.xpose.msra.mxu0 0.0
        %3430 = vmatpush.xpose.msra.mxu0 0.0
        %3431 = vmatpush.xpose.msra.mxu0 0.0
        %3432 = vmatpush.xpose.msra.mxu0 0.0
        %3433 = vmatpush.xpose.msra.mxu0 0.0
        %3434 = vmatpush.xpose.msra.mxu0 0.0
        %3435 = vmatpush.xpose.msra.mxu0 0.0
        %3436 = vmatpush.xpose.msra.mxu0 0.0
        %3437 = vmatpush.xpose.msra.mxu0 0.0
        %3438 = vmatpush.xpose.msra.mxu0 %v3322
        %3439 = vmatpush.xpose.msra.mxu0 %v3319
        %3440 = vmatmul.f32.gmra.mxu0 %v3316
        %v3441 = vpop.f32.mrf.mxu0
        %v3442 = vadd.f32 %v3422, %v3441
        %3443 = vdwg.mxu0
        %v3444 = vadd.f32 %v3218, %v3442
        %s3445 = sadd.s32 %s257, 14
        %s3446 = smul.u32 %s3445, 128
        %s3447 = sld [smem:[#allocation2 + %s3446]]
        %v3448 = vstv %s3447
        %v3449 = vmul.f32 %v3448, %v260
        %v3450 = vmul.f32 %v3448, %v261
        %s3451 = sadd.s32 %s3446, 1
        %s3452 = sld [smem:[#allocation2 + %s3451]]
        %v3453 = vstv %s3452
        %v3454 = vmul.f32 %v3453, %v268
        %v3455 = vmul.f32 %v3453, %v269
        %v3456 = vadd.f32 %v3449, %v3454
        %v3457 = vadd.f32 %v3450, %v3455
        %s3458 = sadd.s32 %s3446, 2
        %s3459 = sld [smem:[#allocation2 + %s3458]]
        %v3460 = vstv %s3459
        %v3461 = vmul.f32 %v3460, %v278
        %v3462 = vmul.f32 %v3460, %v279
        %v3463 = vadd.f32 %v3456, %v3461
        %v3464 = vadd.f32 %v3457, %v3462
        %s3465 = sadd.s32 %s3446, 3
        %s3466 = sld [smem:[#allocation2 + %s3465]]
        %v3467 = vstv %s3466
        %v3468 = vmul.f32 %v3467, %v288
        %v3469 = vmul.f32 %v3467, %v289
        %v3470 = vadd.f32 %v3463, %v3468
        %v3471 = vadd.f32 %v3464, %v3469
        %s3472 = sadd.s32 %s3446, 4
        %s3473 = sld [smem:[#allocation2 + %s3472]]
        %v3474 = vstv %s3473
        %v3475 = vmul.f32 %v3474, %v298
        %v3476 = vmul.f32 %v3474, %v299
        %v3477 = vadd.f32 %v3470, %v3475
        %v3478 = vadd.f32 %v3471, %v3476
        %s3479 = sadd.s32 %s3446, 5
        %s3480 = sld [smem:[#allocation2 + %s3479]]
        %v3481 = vstv %s3480
        %v3482 = vmul.f32 %v3481, %v308
        %v3483 = vmul.f32 %v3481, %v309
        %v3484 = vadd.f32 %v3477, %v3482
        %v3485 = vadd.f32 %v3478, %v3483
        %s3486 = sadd.s32 %s3446, 6
        %s3487 = sld [smem:[#allocation2 + %s3486]]
        %v3488 = vstv %s3487
        %v3489 = vmul.f32 %v3488, %v318
        %v3490 = vmul.f32 %v3488, %v319
        %v3491 = vadd.f32 %v3484, %v3489
        %v3492 = vadd.f32 %v3485, %v3490
        %s3493 = sadd.s32 %s3446, 7
        %s3494 = sld [smem:[#allocation2 + %s3493]]
        %v3495 = vstv %s3494
        %v3496 = vmul.f32 %v3495, %v328
        %v3497 = vmul.f32 %v3495, %v329
        %v3498 = vadd.f32 %v3491, %v3496
        %v3499 = vadd.f32 %v3492, %v3497
        %s3500 = sadd.s32 %s3446, 8
        %s3501 = sld [smem:[#allocation2 + %s3500]]
        %v3502 = vstv %s3501
        %v3503 = vmul.f32 %v3502, %v338
        %v3504 = vmul.f32 %v3502, %v339
        %v3505 = vadd.f32 %v3498, %v3503
        %v3506 = vadd.f32 %v3499, %v3504
        %s3507 = sld [smem:[#allocation4 + %s3445]]
        %v3508 = vstv %s3507
        %v3509 = vadd.f32 %v3505, %v3508
        %v3510 = vadd.f32 %v3506, %v3508
        %v3511 = vmax.f32 %v3509, 0.0
        %v3512 = vmax.f32 %v3510, 0.0
        %s3513 = scalar_lea.vmem %s251, 1344
        %v3514 = vld [vmem:[%s3513] sm:$0xff]
        %v3515 = vld [vmem:[%s3513 + $0x8] sm:$0xff]
        %v3516 = vld [vmem:[%s3513 + $0x10] sm:$0xff]
        %v3517 = vld [vmem:[%s3513 + $0x18] sm:$0xff]
        %v3518 = vld [vmem:[%s3513 + $0x20] sm:$0xff]
        %v3519 = vld [vmem:[%s3513 + $0x28] sm:$0xff]
        %v3520 = vld [vmem:[%s3513 + $0x30] sm:$0x3]
        %v3521 = vld [vmem:[%s3513 + $0x38] sm:$0x3]
        %v3522 = vld [vmem:[%s3513 + $0x40] sm:$0x3]
        %v3523 = vld [vmem:[%s3513 + $0x48] sm:$0x3]
        %v3524 = vld [vmem:[%s3513 + $0x50] sm:$0x3]
        %v3525 = vld [vmem:[%s3513 + $0x58] sm:$0x3]
        %3528 = vst [vmem:[#allocation1] ss:$4 sm:$0xff] %v3511
        %s3529 = scalar_lea.vmem [#allocation1], 32
        %3530 = vst [vmem:[%s3529] ss:$4 sm:$0xff] %v3512
        %v3531 = vld.sshfl [vmem:[#allocation1] sm:$0xff pattern:$0x73625140]
        %v3532 = vld.sshfl [vmem:[#allocation1 + $0x8] sm:$0xff pattern:$0x73625140]
        %v3533 = vld.sshfl [vmem:[#allocation1 + $0x10] sm:$0xff pattern:$0x73625140]
        %v3534 = vld.sshfl [vmem:[#allocation1 + $0x18] sm:$0xff pattern:$0x73625140]
        %v3535 = vld.sshfl [vmem:[#allocation1 + $0x20] sm:$0xff pattern:$0x73625140]
        %v3536 = vld.sshfl [vmem:[#allocation1 + $0x28] sm:$0xff pattern:$0x73625140]
        %v3542 = vsel %vm460, %v3536, 0
        %v3545 = vsel %vm460, %v3519, 0
        %v3548 = vsel %vm460, %v3525, 0
        %3550 = vmatpush.xpose.msra.mxu0 0.0
        %3551 = vmatpush.xpose.msra.mxu0 0.0
        %3552 = vmatpush.xpose.msra.mxu0 0.0
        %3553 = vmatpush.xpose.msra.mxu0 0.0
        %3554 = vmatpush.xpose.msra.mxu0 0.0
        %3555 = vmatpush.xpose.msra.mxu0 0.0
        %3556 = vmatpush.xpose.msra.mxu0 0.0
        %3557 = vmatpush.xpose.msra.mxu0 0.0
        %3558 = vmatpush.xpose.msra.mxu0 0.0
        %3559 = vmatpush.xpose.msra.mxu0 0.0
        %3560 = vmatpush.xpose.msra.mxu0 0.0
        %3561 = vmatpush.xpose.msra.mxu0 0.0
        %3562 = vmatpush.xpose.msra.mxu0 0.0
        %3563 = vmatpush.xpose.msra.mxu0 0.0
        %3564 = vmatpush.xpose.msra.mxu0 %v3520
        %3565 = vmatpush.xpose.msra.mxu0 %v3514
        %3566 = vmatmul.f32.gmra.mxu0 %v3531
        %v3567 = vpop.f32.mrf.mxu0
        %v3568 = vadd.f32 0.0, %v3567
        %3569 = vdwg.mxu0
        %3570 = vmatpush.xpose.msra.mxu0 0.0
        %3571 = vmatpush.xpose.msra.mxu0 0.0
        %3572 = vmatpush.xpose.msra.mxu0 0.0
        %3573 = vmatpush.xpose.msra.mxu0 0.0
        %3574 = vmatpush.xpose.msra.mxu0 0.0
        %3575 = vmatpush.xpose.msra.mxu0 0.0
        %3576 = vmatpush.xpose.msra.mxu0 0.0
        %3577 = vmatpush.xpose.msra.mxu0 0.0
        %3578 = vmatpush.xpose.msra.mxu0 0.0
        %3579 = vmatpush.xpose.msra.mxu0 0.0
        %3580 = vmatpush.xpose.msra.mxu0 0.0
        %3581 = vmatpush.xpose.msra.mxu0 0.0
        %3582 = vmatpush.xpose.msra.mxu0 0.0
        %3583 = vmatpush.xpose.msra.mxu0 0.0
        %3584 = vmatpush.xpose.msra.mxu0 %v3521
        %3585 = vmatpush.xpose.msra.mxu0 %v3515
        %3586 = vmatmul.f32.gmra.mxu0 %v3532
        %v3587 = vpop.f32.mrf.mxu0
        %v3588 = vadd.f32 %v3568, %v3587
        %3589 = vdwg.mxu0
        %3590 = vmatpush.xpose.msra.mxu0 0.0
        %3591 = vmatpush.xpose.msra.mxu0 0.0
        %3592 = vmatpush.xpose.msra.mxu0 0.0
        %3593 = vmatpush.xpose.msra.mxu0 0.0
        %3594 = vmatpush.xpose.msra.mxu0 0.0
        %3595 = vmatpush.xpose.msra.mxu0 0.0
        %3596 = vmatpush.xpose.msra.mxu0 0.0
        %3597 = vmatpush.xpose.msra.mxu0 0.0
        %3598 = vmatpush.xpose.msra.mxu0 0.0
        %3599 = vmatpush.xpose.msra.mxu0 0.0
        %3600 = vmatpush.xpose.msra.mxu0 0.0
        %3601 = vmatpush.xpose.msra.mxu0 0.0
        %3602 = vmatpush.xpose.msra.mxu0 0.0
        %3603 = vmatpush.xpose.msra.mxu0 0.0
        %3604 = vmatpush.xpose.msra.mxu0 %v3522
        %3605 = vmatpush.xpose.msra.mxu0 %v3516
        %3606 = vmatmul.f32.gmra.mxu0 %v3533
        %v3607 = vpop.f32.mrf.mxu0
        %v3608 = vadd.f32 %v3588, %v3607
        %3609 = vdwg.mxu0
        %3610 = vmatpush.xpose.msra.mxu0 0.0
        %3611 = vmatpush.xpose.msra.mxu0 0.0
        %3612 = vmatpush.xpose.msra.mxu0 0.0
        %3613 = vmatpush.xpose.msra.mxu0 0.0
        %3614 = vmatpush.xpose.msra.mxu0 0.0
        %3615 = vmatpush.xpose.msra.mxu0 0.0
        %3616 = vmatpush.xpose.msra.mxu0 0.0
        %3617 = vmatpush.xpose.msra.mxu0 0.0
        %3618 = vmatpush.xpose.msra.mxu0 0.0
        %3619 = vmatpush.xpose.msra.mxu0 0.0
        %3620 = vmatpush.xpose.msra.mxu0 0.0
        %3621 = vmatpush.xpose.msra.mxu0 0.0
        %3622 = vmatpush.xpose.msra.mxu0 0.0
        %3623 = vmatpush.xpose.msra.mxu0 0.0
        %3624 = vmatpush.xpose.msra.mxu0 %v3523
        %3625 = vmatpush.xpose.msra.mxu0 %v3517
        %3626 = vmatmul.f32.gmra.mxu0 %v3534
        %v3627 = vpop.f32.mrf.mxu0
        %v3628 = vadd.f32 %v3608, %v3627
        %3629 = vdwg.mxu0
        %3630 = vmatpush.xpose.msra.mxu0 0.0
        %3631 = vmatpush.xpose.msra.mxu0 0.0
        %3632 = vmatpush.xpose.msra.mxu0 0.0
        %3633 = vmatpush.xpose.msra.mxu0 0.0
        %3634 = vmatpush.xpose.msra.mxu0 0.0
        %3635 = vmatpush.xpose.msra.mxu0 0.0
        %3636 = vmatpush.xpose.msra.mxu0 0.0
        %3637 = vmatpush.xpose.msra.mxu0 0.0
        %3638 = vmatpush.xpose.msra.mxu0 0.0
        %3639 = vmatpush.xpose.msra.mxu0 0.0
        %3640 = vmatpush.xpose.msra.mxu0 0.0
        %3641 = vmatpush.xpose.msra.mxu0 0.0
        %3642 = vmatpush.xpose.msra.mxu0 0.0
        %3643 = vmatpush.xpose.msra.mxu0 0.0
        %3644 = vmatpush.xpose.msra.mxu0 %v3524
        %3645 = vmatpush.xpose.msra.mxu0 %v3518
        %3646 = vmatmul.f32.gmra.mxu0 %v3535
        %v3647 = vpop.f32.mrf.mxu0
        %v3648 = vadd.f32 %v3628, %v3647
        %3649 = vdwg.mxu0
        %3650 = vmatpush.xpose.msra.mxu0 0.0
        %3651 = vmatpush.xpose.msra.mxu0 0.0
        %3652 = vmatpush.xpose.msra.mxu0 0.0
        %3653 = vmatpush.xpose.msra.mxu0 0.0
        %3654 = vmatpush.xpose.msra.mxu0 0.0
        %3655 = vmatpush.xpose.msra.mxu0 0.0
        %3656 = vmatpush.xpose.msra.mxu0 0.0
        %3657 = vmatpush.xpose.msra.mxu0 0.0
        %3658 = vmatpush.xpose.msra.mxu0 0.0
        %3659 = vmatpush.xpose.msra.mxu0 0.0
        %3660 = vmatpush.xpose.msra.mxu0 0.0
        %3661 = vmatpush.xpose.msra.mxu0 0.0
        %3662 = vmatpush.xpose.msra.mxu0 0.0
        %3663 = vmatpush.xpose.msra.mxu0 0.0
        %3664 = vmatpush.xpose.msra.mxu0 %v3548
        %3665 = vmatpush.xpose.msra.mxu0 %v3545
        %3666 = vmatmul.f32.gmra.mxu0 %v3542
        %v3667 = vpop.f32.mrf.mxu0
        %v3668 = vadd.f32 %v3648, %v3667
        %3669 = vdwg.mxu0
        %v3670 = vadd.f32 %v3444, %v3668
        %s3671 = sadd.s32 %s257, 15
        %s3672 = smul.u32 %s3671, 128
        %s3673 = sld [smem:[#allocation2 + %s3672]]
        %v3674 = vstv %s3673
        %v3675 = vmul.f32 %v3674, %v260
        %v3676 = vmul.f32 %v3674, %v261
        %s3677 = sadd.s32 %s3672, 1
        %s3678 = sld [smem:[#allocation2 + %s3677]]
        %v3679 = vstv %s3678
        %v3680 = vmul.f32 %v3679, %v268
        %v3681 = vmul.f32 %v3679, %v269
        %v3682 = vadd.f32 %v3675, %v3680
        %v3683 = vadd.f32 %v3676, %v3681
        %s3684 = sadd.s32 %s3672, 2
        %s3685 = sld [smem:[#allocation2 + %s3684]]
        %v3686 = vstv %s3685
        %v3687 = vmul.f32 %v3686, %v278
        %v3688 = vmul.f32 %v3686, %v279
        %v3689 = vadd.f32 %v3682, %v3687
        %v3690 = vadd.f32 %v3683, %v3688
        %s3691 = sadd.s32 %s3672, 3
        %s3692 = sld [smem:[#allocation2 + %s3691]]
        %v3693 = vstv %s3692
        %v3694 = vmul.f32 %v3693, %v288
        %v3695 = vmul.f32 %v3693, %v289
        %v3696 = vadd.f32 %v3689, %v3694
        %v3697 = vadd.f32 %v3690, %v3695
        %s3698 = sadd.s32 %s3672, 4
        %s3699 = sld [smem:[#allocation2 + %s3698]]
        %v3700 = vstv %s3699
        %v3701 = vmul.f32 %v3700, %v298
        %v3702 = vmul.f32 %v3700, %v299
        %v3703 = vadd.f32 %v3696, %v3701
        %v3704 = vadd.f32 %v3697, %v3702
        %s3705 = sadd.s32 %s3672, 5
        %s3706 = sld [smem:[#allocation2 + %s3705]]
        %v3707 = vstv %s3706
        %v3708 = vmul.f32 %v3707, %v308
        %v3709 = vmul.f32 %v3707, %v309
        %v3710 = vadd.f32 %v3703, %v3708
        %v3711 = vadd.f32 %v3704, %v3709
        %s3712 = sadd.s32 %s3672, 6
        %s3713 = sld [smem:[#allocation2 + %s3712]]
        %v3714 = vstv %s3713
        %v3715 = vmul.f32 %v3714, %v318
        %v3716 = vmul.f32 %v3714, %v319
        %v3717 = vadd.f32 %v3710, %v3715
        %v3718 = vadd.f32 %v3711, %v3716
        %s3719 = sadd.s32 %s3672, 7
        %s3720 = sld [smem:[#allocation2 + %s3719]]
        %v3721 = vstv %s3720
        %v3722 = vmul.f32 %v3721, %v328
        %v3723 = vmul.f32 %v3721, %v329
        %v3724 = vadd.f32 %v3717, %v3722
        %v3725 = vadd.f32 %v3718, %v3723
        %s3726 = sadd.s32 %s3672, 8
        %s3727 = sld [smem:[#allocation2 + %s3726]]
        %v3728 = vstv %s3727
        %v3729 = vmul.f32 %v3728, %v338
        %v3730 = vmul.f32 %v3728, %v339
        %v3731 = vadd.f32 %v3724, %v3729
        %v3732 = vadd.f32 %v3725, %v3730
        %s3733 = sld [smem:[#allocation4 + %s3671]]
        %v3734 = vstv %s3733
        %v3735 = vadd.f32 %v3731, %v3734
        %v3736 = vadd.f32 %v3732, %v3734
        %v3737 = vmax.f32 %v3735, 0.0
        %v3738 = vmax.f32 %v3736, 0.0
        %s3739 = scalar_lea.vmem %s251, 1440
        %v3740 = vld [vmem:[%s3739] sm:$0xff]
        %v3741 = vld [vmem:[%s3739 + $0x8] sm:$0xff]
        %v3742 = vld [vmem:[%s3739 + $0x10] sm:$0xff]
        %v3743 = vld [vmem:[%s3739 + $0x18] sm:$0xff]
        %v3744 = vld [vmem:[%s3739 + $0x20] sm:$0xff]
        %v3745 = vld [vmem:[%s3739 + $0x28] sm:$0xff]
        %v3746 = vld [vmem:[%s3739 + $0x30] sm:$0x3]
        %v3747 = vld [vmem:[%s3739 + $0x38] sm:$0x3]
        %v3748 = vld [vmem:[%s3739 + $0x40] sm:$0x3]
        %v3749 = vld [vmem:[%s3739 + $0x48] sm:$0x3]
        %v3750 = vld [vmem:[%s3739 + $0x50] sm:$0x3]
        %v3751 = vld [vmem:[%s3739 + $0x58] sm:$0x3]
        %3754 = vst [vmem:[#allocation1] ss:$4 sm:$0xff] %v3737
        %s3755 = scalar_lea.vmem [#allocation1], 32
        %3756 = vst [vmem:[%s3755] ss:$4 sm:$0xff] %v3738
        %v3757 = vld.sshfl [vmem:[#allocation1] sm:$0xff pattern:$0x73625140]
        %v3758 = vld.sshfl [vmem:[#allocation1 + $0x8] sm:$0xff pattern:$0x73625140]
        %v3759 = vld.sshfl [vmem:[#allocation1 + $0x10] sm:$0xff pattern:$0x73625140]
        %v3760 = vld.sshfl [vmem:[#allocation1 + $0x18] sm:$0xff pattern:$0x73625140]
        %v3761 = vld.sshfl [vmem:[#allocation1 + $0x20] sm:$0xff pattern:$0x73625140]
        %v3762 = vld.sshfl [vmem:[#allocation1 + $0x28] sm:$0xff pattern:$0x73625140]
        %v3768 = vsel %vm460, %v3762, 0
        %v3771 = vsel %vm460, %v3745, 0
        %v3774 = vsel %vm460, %v3751, 0
        %3776 = vmatpush.xpose.msra.mxu0 0.0
        %3777 = vmatpush.xpose.msra.mxu0 0.0
        %3778 = vmatpush.xpose.msra.mxu0 0.0
        %3779 = vmatpush.xpose.msra.mxu0 0.0
        %3780 = vmatpush.xpose.msra.mxu0 0.0
        %3781 = vmatpush.xpose.msra.mxu0 0.0
        %3782 = vmatpush.xpose.msra.mxu0 0.0
        %3783 = vmatpush.xpose.msra.mxu0 0.0
        %3784 = vmatpush.xpose.msra.mxu0 0.0
        %3785 = vmatpush.xpose.msra.mxu0 0.0
        %3786 = vmatpush.xpose.msra.mxu0 0.0
        %3787 = vmatpush.xpose.msra.mxu0 0.0
        %3788 = vmatpush.xpose.msra.mxu0 0.0
        %3789 = vmatpush.xpose.msra.mxu0 0.0
        %3790 = vmatpush.xpose.msra.mxu0 %v3746
        %3791 = vmatpush.xpose.msra.mxu0 %v3740
        %3792 = vmatmul.f32.gmra.mxu0 %v3757
        %v3793 = vpop.f32.mrf.mxu0
        %v3794 = vadd.f32 0.0, %v3793
        %3795 = vdwg.mxu0
        %3796 = vmatpush.xpose.msra.mxu0 0.0
        %3797 = vmatpush.xpose.msra.mxu0 0.0
        %3798 = vmatpush.xpose.msra.mxu0 0.0
        %3799 = vmatpush.xpose.msra.mxu0 0.0
        %3800 = vmatpush.xpose.msra.mxu0 0.0
        %3801 = vmatpush.xpose.msra.mxu0 0.0
        %3802 = vmatpush.xpose.msra.mxu0 0.0
        %3803 = vmatpush.xpose.msra.mxu0 0.0
        %3804 = vmatpush.xpose.msra.mxu0 0.0
        %3805 = vmatpush.xpose.msra.mxu0 0.0
        %3806 = vmatpush.xpose.msra.mxu0 0.0
        %3807 = vmatpush.xpose.msra.mxu0 0.0
        %3808 = vmatpush.xpose.msra.mxu0 0.0
        %3809 = vmatpush.xpose.msra.mxu0 0.0
        %3810 = vmatpush.xpose.msra.mxu0 %v3747
        %3811 = vmatpush.xpose.msra.mxu0 %v3741
        %3812 = vmatmul.f32.gmra.mxu0 %v3758
        %v3813 = vpop.f32.mrf.mxu0
        %v3814 = vadd.f32 %v3794, %v3813
        %3815 = vdwg.mxu0
        %3816 = vmatpush.xpose.msra.mxu0 0.0
        %3817 = vmatpush.xpose.msra.mxu0 0.0
        %3818 = vmatpush.xpose.msra.mxu0 0.0
        %3819 = vmatpush.xpose.msra.mxu0 0.0
        %3820 = vmatpush.xpose.msra.mxu0 0.0
        %3821 = vmatpush.xpose.msra.mxu0 0.0
        %3822 = vmatpush.xpose.msra.mxu0 0.0
        %3823 = vmatpush.xpose.msra.mxu0 0.0
        %3824 = vmatpush.xpose.msra.mxu0 0.0
        %3825 = vmatpush.xpose.msra.mxu0 0.0
        %3826 = vmatpush.xpose.msra.mxu0 0.0
        %3827 = vmatpush.xpose.msra.mxu0 0.0
        %3828 = vmatpush.xpose.msra.mxu0 0.0
        %3829 = vmatpush.xpose.msra.mxu0 0.0
        %3830 = vmatpush.xpose.msra.mxu0 %v3748
        %3831 = vmatpush.xpose.msra.mxu0 %v3742
        %3832 = vmatmul.f32.gmra.mxu0 %v3759
        %v3833 = vpop.f32.mrf.mxu0
        %v3834 = vadd.f32 %v3814, %v3833
        %3835 = vdwg.mxu0
        %3836 = vmatpush.xpose.msra.mxu0 0.0
        %3837 = vmatpush.xpose.msra.mxu0 0.0
        %3838 = vmatpush.xpose.msra.mxu0 0.0
        %3839 = vmatpush.xpose.msra.mxu0 0.0
        %3840 = vmatpush.xpose.msra.mxu0 0.0
        %3841 = vmatpush.xpose.msra.mxu0 0.0
        %3842 = vmatpush.xpose.msra.mxu0 0.0
        %3843 = vmatpush.xpose.msra.mxu0 0.0
        %3844 = vmatpush.xpose.msra.mxu0 0.0
        %3845 = vmatpush.xpose.msra.mxu0 0.0
        %3846 = vmatpush.xpose.msra.mxu0 0.0
        %3847 = vmatpush.xpose.msra.mxu0 0.0
        %3848 = vmatpush.xpose.msra.mxu0 0.0
        %3849 = vmatpush.xpose.msra.mxu0 0.0
        %3850 = vmatpush.xpose.msra.mxu0 %v3749
        %3851 = vmatpush.xpose.msra.mxu0 %v3743
        %3852 = vmatmul.f32.gmra.mxu0 %v3760
        %v3853 = vpop.f32.mrf.mxu0
        %v3854 = vadd.f32 %v3834, %v3853
        %3855 = vdwg.mxu0
        %3856 = vmatpush.xpose.msra.mxu0 0.0
        %3857 = vmatpush.xpose.msra.mxu0 0.0
        %3858 = vmatpush.xpose.msra.mxu0 0.0
        %3859 = vmatpush.xpose.msra.mxu0 0.0
        %3860 = vmatpush.xpose.msra.mxu0 0.0
        %3861 = vmatpush.xpose.msra.mxu0 0.0
        %3862 = vmatpush.xpose.msra.mxu0 0.0
        %3863 = vmatpush.xpose.msra.mxu0 0.0
        %3864 = vmatpush.xpose.msra.mxu0 0.0
        %3865 = vmatpush.xpose.msra.mxu0 0.0
        %3866 = vmatpush.xpose.msra.mxu0 0.0
        %3867 = vmatpush.xpose.msra.mxu0 0.0
        %3868 = vmatpush.xpose.msra.mxu0 0.0
        %3869 = vmatpush.xpose.msra.mxu0 0.0
        %3870 = vmatpush.xpose.msra.mxu0 %v3750
        %3871 = vmatpush.xpose.msra.mxu0 %v3744
        %3872 = vmatmul.f32.gmra.mxu0 %v3761
        %v3873 = vpop.f32.mrf.mxu0
        %v3874 = vadd.f32 %v3854, %v3873
        %3875 = vdwg.mxu0
        %3876 = vmatpush.xpose.msra.mxu0 0.0
        %3877 = vmatpush.xpose.msra.mxu0 0.0
        %3878 = vmatpush.xpose.msra.mxu0 0.0
        %3879 = vmatpush.xpose.msra.mxu0 0.0
        %3880 = vmatpush.xpose.msra.mxu0 0.0
        %3881 = vmatpush.xpose.msra.mxu0 0.0
        %3882 = vmatpush.xpose.msra.mxu0 0.0
        %3883 = vmatpush.xpose.msra.mxu0 0.0
        %3884 = vmatpush.xpose.msra.mxu0 0.0
        %3885 = vmatpush.xpose.msra.mxu0 0.0
        %3886 = vmatpush.xpose.msra.mxu0 0.0
        %3887 = vmatpush.xpose.msra.mxu0 0.0
        %3888 = vmatpush.xpose.msra.mxu0 0.0
        %3889 = vmatpush.xpose.msra.mxu0 0.0
        %3890 = vmatpush.xpose.msra.mxu0 %v3774
        %3891 = vmatpush.xpose.msra.mxu0 %v3771
        %3892 = vmatmul.f32.gmra.mxu0 %v3768
        %v3893 = vpop.f32.mrf.mxu0
        %v3894 = vadd.f32 %v3874, %v3893
        %3895 = vdwg.mxu0
        %v3896 = vadd.f32 %v3670, %v3894
        %p3897 = scmp.eq.s32.totalorder %s18, 0
        %s3898 = scalar_select %p3897, 1.0, 0.0
        %v3899 = vld [vmem:[%s4] sm:$0x1]
        %v3900 = vstv %s3898
        %v3901 = vmul.f32 %v3900, %v3899
        %v3903 = vperm.slane %v3901, 0
        %v3905 = vadd.f32 %v3896, %v3903
        %vm3906 = vcmask 74752
        %3907 = vst.msk [vmem:[%s256] sm:$0x3] %vm3906, %v3905
        %p3908 = scmp.lt.s32.totalorder %s18, 1
        %s3909 = scalar_select %p3908, %s18, 1
        %s3910 = smul.addr %s3909, 2
        %s3911 = scalar_lea.vmem %s5, %s3910
        // Predicated region
        $region49: #{mnist_forward.1} parent=39 // pred_check
          %p3912 = pneg %p146
        $region50: #{mnist_forward.1} parent=39 // pred_check_branch
          %3914 = sbr.rel (%p3912) target = $region52
        $region51: #{mnist_forward.1} parent=39 // pred_region
          _
        $region52: #{mnist_forward.1} parent=39 // pred_fallthru
          _
      $region40: #{mnist_forward.1} parent=5 // pred_fallthru
        _
      %p3915 = scmp.le.s32.totalorder 2, %s13
      // Predicated region
      $region53: #{mnist_forward.1} parent=5 // pred_check
        %p3916 = pneg %p3915
      $region54: #{mnist_forward.1} parent=5 // pred_check_branch
        %3918 = sbr.rel (%p3916) target = $region56
      $region55: #{mnist_forward.1} parent=5 // pred_region
        %s3919 = ssub.s32 %s13, 2
        // Predicated region
        $region57: #{mnist_forward.1} parent=55 // pred_check
          %p3920 = pneg %p152
        $region58: #{mnist_forward.1} parent=55 // pred_check_branch
          %3922 = sbr.rel (%p3920) target = $region60
        $region59: #{mnist_forward.1} parent=55 // pred_region
          %p3923 = scmp.lt.s32.totalorder %s19, 1
          %s3924 = scalar_select %p3923, %s19, 1
          %s3925 = smul.addr %s3924, 2
          %s3926 = scalar_lea.vmem %s5, %s3925
        $region60: #{mnist_forward.1} parent=55 // pred_fallthru
          _
      $region56: #{mnist_forward.1} parent=5 // pred_fallthru
        _
    $region6: #{mnist_forward.1} parent=1 // loop_footer
      %s17 = sadd.s32 1, %s13
    $region7: #{mnist_forward.1} parent=1 // loop_footer_branch
      %12 = sbr.rel target = $region3
    $region8: #{mnist_forward.1} parent=1 // loop_exit
      _
    %3927 = vsyncpa [#allocation3], 1
    %s3928 = scalar_lea.sflag [#allocation3], 1
    %3929 = vsyncpa %s3928, 1
    %3930 = vsyncpa [#allocation5], 1

</llo_original>
